<compile_context>
chip_gen: v7x
topology: tpu7x:2x2x1
jax: 0.10.0
libtpu: 0.0.40
codegen_flags: <defaults>
</compile_context>

<pallas_src>
import math
import functools

import jax
import jax.numpy as jnp
from jax import lax
from jax.experimental import pallas as pl
from jax.experimental.pallas import tpu as pltpu


def _mha_kernel(xq_ref, xkv_ref, wqkv_ref, bqkv_ref, o_ref, *,
                n_heads, d_head, scale, use_bf16_mxu):
    # Block views:
    #   xq_ref   : (1, tq, d)      xkv_ref : (1, Tkv, d)
    #   wqkv_ref : (d, 3d)  = [W_q^T | W_k^T | W_v^T]
    #   bqkv_ref : (1, 3d)  = [b_q   | b_k   | b_v  ]
    #   o_ref    : (1, tq, d)
    d = n_heads * d_head
    if use_bf16_mxu:
        mxu_dtype = jnp.bfloat16
        precision = None                      # single bf16 MXU pass
    else:
        mxu_dtype = xq_ref.dtype
        precision = lax.Precision.HIGHEST     # true f32 matmul semantics

    xq = xq_ref[0].astype(mxu_dtype)        # (tq, d)
    xkv = xkv_ref[0].astype(mxu_dtype)      # (Tkv, d)
    wqkv = wqkv_ref[...].astype(mxu_dtype)  # (d, 3d)
    bqkv = bqkv_ref[...]                    # (1, 3d), f32

    # Fused full-width projections (static slices of the concatenated weight):
    #   one (tq,d)@(d,d) for Q on x_q, one (Tkv,d)@(d,2d) for K|V on x_kv.
    q = jnp.dot(xq, wqkv[:, :d], preferred_element_type=jnp.float32,
                precision=precision) + bqkv[:, :d]                    # (tq, d)
    kv = jnp.dot(xkv, wqkv[:, d:], preferred_element_type=jnp.float32,
                 precision=precision) + bqkv[:, d:]                   # (Tkv, 2d)
    k = kv[:, :d]
    v = kv[:, d:]

    # Scale Q (tq*d elements) instead of the (tq, Tkv) score matrix.
    q = q * scale

    outs = []
    # n_heads is a small static int -> unrolled loop with static slices.
    for h in range(n_heads):
        sl = slice(h * d_head, (h + 1) * d_head)
        qh, kh, vh = q[:, sl], k[:, sl], v[:, sl]
        if use_bf16_mxu:
            qh = qh.astype(jnp.bfloat16)
            kh = kh.astype(jnp.bfloat16)

        # s = qh @ kh.T without materializing a transpose (contract last axes).
        s = lax.dot_general(qh, kh, (((1,), (1,)), ((), ())),
                            preferred_element_type=jnp.float32,
                            precision=precision)                      # (tq, Tkv)

        m = jnp.max(s, axis=-1, keepdims=True)
        p = jnp.exp(s - m)
        l = jnp.sum(p, axis=-1, keepdims=True)
        # Exact reciprocal of the (tq, 1) row sums, then a broadcast multiply.
        attn = p * (1.0 / l)
        # TODO(synk): dropout on `attn` not implemented (module built with dropout=0).

        if use_bf16_mxu:
            attn = attn.astype(jnp.bfloat16)
            vh = vh.astype(jnp.bfloat16)
        outs.append(jnp.dot(attn, vh, preferred_element_type=jnp.float32,
                            precision=precision))                     # (tq, dh)

    # One lane-dense (tq, d) store; head h occupies columns [h*dh, (h+1)*dh),
    # matching reshape(B, H, Tq, dh).transpose(1, 2).reshape(B, Tq, d).
    o_ref[0] = jnp.concatenate(outs, axis=-1).astype(o_ref.dtype)


def multihead_attention(x_q, x_kv, w_q, b_q, w_k, b_k, w_v, b_v, n_heads,
                        *, use_bf16_mxu=False, block_q=256):
    """Forward pass of MultiheadAttention (no compression, no W_out, no dropout).

    x_q : (B, Tq, d), x_kv : (B, Tkv, d)
    w_* : (d, d) PyTorch Linear weights (out, in);  b_* : (d,)
    returns (B, Tq, d)
    """
    B, Tq, d = x_q.shape
    Tkv = x_kv.shape[1]
    assert d % n_heads == 0
    dh = d // n_heads
    scale = 1.0 / math.sqrt(dh)

    # PyTorch Linear computes x @ W.T + b with W stored (out, in); pre-transpose
    # and concatenate so the kernel sees a single (d, 3d) weight + (1, 3d) bias.
    w_qkv = jnp.concatenate([w_q.T, w_k.T, w_v.T], axis=1)                    # (d, 3d)
    b_qkv = jnp.concatenate([b_q, b_k, b_v]).reshape(1, 3 * d).astype(jnp.float32)

    # Query-axis tiling: full Tq for short sequences, otherwise a tile that
    # divides Tq (keeps the f32 score matrix bounded; second parallel axis).
    if Tq > block_q and Tq % 8 == 0:
        tq = block_q
        while Tq % tq != 0:
            tq //= 2
        tq = max(tq, 8)
    else:
        tq = Tq
    n_q_tiles = Tq // tq
    # TODO(synk): very long Tkv would additionally want an online-softmax Tkv
    # grid axis (flash-style) to stay inside v7x's 64 MiB VMEM.

    kernel = functools.partial(_mha_kernel, n_heads=n_heads, d_head=dh,
                               scale=scale, use_bf16_mxu=use_bf16_mxu)

    return pl.pallas_call(
        kernel,
        out_shape=jax.ShapeDtypeStruct((B, Tq, d), x_q.dtype),
        grid_spec=pltpu.PrefetchScalarGridSpec(
            num_scalar_prefetch=0,
            grid=(B, n_q_tiles),
            in_specs=[
                pl.BlockSpec((1, tq, d), lambda b, i: (b, i, 0)),     # x_q tile
                pl.BlockSpec((1, Tkv, d), lambda b, i: (b, 0, 0)),    # x_kv (full)
                pl.BlockSpec((d, 3 * d), lambda b, i: (0, 0)),        # fused W
                pl.BlockSpec((1, 3 * d), lambda b, i: (0, 0)),        # fused b
            ],
            out_specs=pl.BlockSpec((1, tq, d), lambda b, i: (b, i, 0)),
        ),
        compiler_params=pltpu.CompilerParams(
            dimension_semantics=("parallel", "parallel")),
    )(x_q, x_kv, w_qkv, b_qkv)


def _xavier_uniform(key, shape, gain):
    fan_out, fan_in = shape
    limit = gain * math.sqrt(6.0 / (fan_in + fan_out))
    return jax.random.uniform(key, shape, jnp.float32, -limit, limit)


def _reference(x_q, x_kv, w_q, b_q, w_k, b_k, w_v, b_v, n_heads):
    # Pure-JAX reference mirroring the PyTorch forward, with HIGHEST matmul
    # precision so it has the same f32 semantics as the kernel.
    prec = lax.Precision.HIGHEST
    B, Tq, d = x_q.shape
    dh = d // n_heads

    def lin(x, w, b):
        return jnp.einsum('btd,od->bto', x, w, precision=prec) + b

    def reshape(x):
        B_, T, D = x.shape
        return jnp.transpose(x.reshape(B_, T, n_heads, D // n_heads),
                             (0, 2, 1, 3)).reshape(B_ * n_heads, T, D // n_heads)

    q, k, v = lin(x_q, w_q, b_q), lin(x_kv, w_k, b_k), lin(x_kv, w_v, b_v)
    q, k, v = reshape(q), reshape(k), reshape(v)
    scores = jnp.einsum('bqe,bke->bqk', q, k, precision=prec) / math.sqrt(dh)
    attn = jax.nn.softmax(scores, axis=-1)
    x = jnp.einsum('bqk,bkd->bqd', attn, v, precision=prec)
    return jnp.transpose(x.reshape(B, n_heads, Tq, dh), (0, 2, 1, 3)).reshape(B, Tq, d)


if __name__ == "__main__":
    d, n_heads = 32, 4          # d % n_heads == 0, initialization='xavier'
    B, Tq, Tkv = 2, 8, 8

    key = jax.random.PRNGKey(0)
    kq, kk, kv, kxq, kxkv = jax.random.split(key, 5)

    gain = 1.0 / math.sqrt(2.0)
    # xavier_uniform_(weight, gain=1/sqrt(2)) for W_q, W_k, W_v (n_heads > 1)
    w_q = _xavier_uniform(kq, (d, d), gain)
    w_k = _xavier_uniform(kk, (d, d), gain)
    w_v = _xavier_uniform(kv, (d, d), gain)
    b_q = jnp.zeros((d,), jnp.float32)
    b_k = jnp.zeros((d,), jnp.float32)
    b_v = jnp.zeros((d,), jnp.float32)

    x_q = jax.random.normal(kxq, (B, Tq, d), jnp.float32)
    x_kv = jax.random.normal(kxkv, (B, Tkv, d), jnp.float32)

    out = multihead_attention(x_q, x_kv, w_q, b_q, w_k, b_k, w_v, b_v, n_heads)
    out = jax.block_until_ready(out)

    ref = _reference(x_q, x_kv, w_q, b_q, w_k, b_k, w_v, b_v, n_heads)
    assert out.shape == (B, Tq, d)
    assert jnp.allclose(out, ref, atol=1e-3, rtol=1e-3), \
        float(jnp.max(jnp.abs(out - ref)))

    print("KERNEL_OK")
</pallas_src>

<mosaic_0001>
module attributes {stable_mosaic.version = 11 : i64} {
  func.func @_mha_kernel(%arg0: i32, %arg1: i32, %arg2: memref<1x8x32xf32, #tpu.memory_space<vmem>>, %arg3: memref<1x8x32xf32, #tpu.memory_space<vmem>>, %arg4: memref<32x96xf32, #tpu.memory_space<vmem>>, %arg5: memref<1x96xf32, #tpu.memory_space<vmem>>, %arg6: memref<1x8x32xf32, #tpu.memory_space<vmem>>) attributes {dimension_semantics = [#tpu.dimension_semantics<parallel>, #tpu.dimension_semantics<parallel>], iteration_bounds = array<i64: 2, 1>, scalar_prefetch = 0 : i64, scratch_operands = 0 : i64, tpu.core_type = #tpu.core_type<tc>, window_params = [{transform_indices = @transform_0, window_bounds = array<i64: 1, 8, 32>}, {transform_indices = @transform_1, window_bounds = array<i64: 1, 8, 32>}, {pipeline_mode = #tpu.pipeline_mode<synchronous>, transform_indices = @transform_2, window_bounds = array<i64: 32, 96>}, {pipeline_mode = #tpu.pipeline_mode<synchronous>, transform_indices = @transform_3, window_bounds = array<i64: 1, 96>}, {transform_indices = @transform_4, window_bounds = array<i64: 1, 8, 32>}]} {
    %c0 = arith.constant 0 : index
    %c0_0 = arith.constant 0 : index
    %c0_1 = arith.constant 0 : index
    %0 = vector.load %arg2[%c0, %c0_0, %c0_1] : memref<1x8x32xf32, #tpu.memory_space<vmem>>, vector<1x8x32xf32>
    %1 = vector.shape_cast %0 : vector<1x8x32xf32> to vector<8x32xf32>
    %c0_2 = arith.constant 0 : index
    %c0_3 = arith.constant 0 : index
    %c0_4 = arith.constant 0 : index
    %2 = vector.load %arg3[%c0_2, %c0_3, %c0_4] : memref<1x8x32xf32, #tpu.memory_space<vmem>>, vector<1x8x32xf32>
    %3 = vector.shape_cast %2 : vector<1x8x32xf32> to vector<8x32xf32>
    %c0_5 = arith.constant 0 : index
    %c0_6 = arith.constant 0 : index
    %4 = vector.load %arg4[%c0_5, %c0_6] : memref<32x96xf32, #tpu.memory_space<vmem>>, vector<32x96xf32>
    %c0_7 = arith.constant 0 : index
    %c0_8 = arith.constant 0 : index
    %5 = vector.load %arg5[%c0_7, %c0_8] : memref<1x96xf32, #tpu.memory_space<vmem>>, vector<1x96xf32>
    %6 = vector.extract_strided_slice %4 {offsets = [0, 0], sizes = [32, 32], strides = [1, 1]} : vector<32x96xf32> to vector<32x32xf32>
    %cst = arith.constant dense<0.000000e+00> : vector<8x32xf32>
    %7 = tpu.matmul %1, %6, %cst {dimension_numbers = #tpu.dot_dimension_numbers<[1], [0], [0], [1], [0, 0, 1, 1], [], []>, precision = #tpu.contract_precision<fp32>} : vector<8x32xf32>, vector<32x32xf32>, vector<8x32xf32> -> vector<8x32xf32>
    %8 = vector.extract_strided_slice %5 {offsets = [0, 0], sizes = [1, 32], strides = [1, 1]} : vector<1x96xf32> to vector<1x32xf32>
    %9 = vector.broadcast %8 : vector<1x32xf32> to vector<8x32xf32>
    %10 = arith.addf %7, %9 : vector<8x32xf32>
    %11 = vector.extract_strided_slice %4 {offsets = [0, 32], sizes = [32, 64], strides = [1, 1]} : vector<32x96xf32> to vector<32x64xf32>
    %cst_9 = arith.constant dense<0.000000e+00> : vector<8x64xf32>
    %12 = tpu.matmul %3, %11, %cst_9 {dimension_numbers = #tpu.dot_dimension_numbers<[1], [0], [0], [1], [0, 0, 1, 1], [], []>, precision = #tpu.contract_precision<fp32>} : vector<8x32xf32>, vector<32x64xf32>, vector<8x64xf32> -> vector<8x64xf32>
    %13 = vector.extract_strided_slice %5 {offsets = [0, 32], sizes = [1, 64], strides = [1, 1]} : vector<1x96xf32> to vector<1x64xf32>
    %14 = vector.broadcast %13 : vector<1x64xf32> to vector<8x64xf32>
    %15 = arith.addf %12, %14 : vector<8x64xf32>
    %16 = vector.extract_strided_slice %15 {offsets = [0, 0], sizes = [8, 32], strides = [1, 1]} : vector<8x64xf32> to vector<8x32xf32>
    %17 = vector.extract_strided_slice %15 {offsets = [0, 32], sizes = [8, 32], strides = [1, 1]} : vector<8x64xf32> to vector<8x32xf32>
    %cst_10 = arith.constant 0.353553385 : f32
    %18 = vector.broadcast %cst_10 : f32 to vector<8x32xf32>
    %19 = arith.mulf %10, %18 : vector<8x32xf32>
    %20 = vector.extract_strided_slice %19 {offsets = [0, 0], sizes = [8, 8], strides = [1, 1]} : vector<8x32xf32> to vector<8x8xf32>
    %21 = vector.extract_strided_slice %16 {offsets = [0, 0], sizes = [8, 8], strides = [1, 1]} : vector<8x32xf32> to vector<8x8xf32>
    %22 = vector.extract_strided_slice %17 {offsets = [0, 0], sizes = [8, 8], strides = [1, 1]} : vector<8x32xf32> to vector<8x8xf32>
    %cst_11 = arith.constant dense<0.000000e+00> : vector<8x8xf32>
    %23 = tpu.matmul %20, %21, %cst_11 {dimension_numbers = #tpu.dot_dimension_numbers<[1], [1], [0], [0], [0, 0, 1, 0], [], []>, precision = #tpu.contract_precision<fp32>} : vector<8x8xf32>, vector<8x8xf32>, vector<8x8xf32> -> vector<8x8xf32>
    %cst_12 = arith.constant dense<0xFF800000> : vector<8xf32>
    %24 = vector.multi_reduction <maximumf>, %23, %cst_12 [1] : vector<8x8xf32> to vector<8xf32>
    %25 = vector.shape_cast %24 : vector<8xf32> to vector<8x1xf32>
    %26 = vector.broadcast %25 : vector<8x1xf32> to vector<8x8xf32>
    %27 = arith.subf %23, %26 : vector<8x8xf32>
    %28 = math.exp %27 : vector<8x8xf32>
    %cst_13 = arith.constant dense<0.000000e+00> : vector<8xf32>
    %29 = vector.multi_reduction <add>, %28, %cst_13 [1] : vector<8x8xf32> to vector<8xf32>
    %30 = vector.shape_cast %29 : vector<8xf32> to vector<8x1xf32>
    %cst_14 = arith.constant 1.000000e+00 : f32
    %31 = vector.broadcast %cst_14 : f32 to vector<8x1xf32>
    %32 = arith.divf %31, %30 : vector<8x1xf32>
    %33 = vector.broadcast %32 : vector<8x1xf32> to vector<8x8xf32>
    %34 = arith.mulf %28, %33 : vector<8x8xf32>
    %cst_15 = arith.constant dense<0.000000e+00> : vector<8x8xf32>
    %35 = tpu.matmul %34, %22, %cst_15 {dimension_numbers = #tpu.dot_dimension_numbers<[1], [0], [0], [1], [0, 0, 1, 1], [], []>, precision = #tpu.contract_precision<fp32>} : vector<8x8xf32>, vector<8x8xf32>, vector<8x8xf32> -> vector<8x8xf32>
    %36 = vector.extract_strided_slice %19 {offsets = [0, 8], sizes = [8, 8], strides = [1, 1]} : vector<8x32xf32> to vector<8x8xf32>
    %37 = vector.extract_strided_slice %16 {offsets = [0, 8], sizes = [8, 8], strides = [1, 1]} : vector<8x32xf32> to vector<8x8xf32>
    %38 = vector.extract_strided_slice %17 {offsets = [0, 8], sizes = [8, 8], strides = [1, 1]} : vector<8x32xf32> to vector<8x8xf32>
    %cst_16 = arith.constant dense<0.000000e+00> : vector<8x8xf32>
    %39 = tpu.matmul %36, %37, %cst_16 {dimension_numbers = #tpu.dot_dimension_numbers<[1], [1], [0], [0], [0, 0, 1, 0], [], []>, precision = #tpu.contract_precision<fp32>} : vector<8x8xf32>, vector<8x8xf32>, vector<8x8xf32> -> vector<8x8xf32>
    %cst_17 = arith.constant dense<0xFF800000> : vector<8xf32>
    %40 = vector.multi_reduction <maximumf>, %39, %cst_17 [1] : vector<8x8xf32> to vector<8xf32>
    %41 = vector.shape_cast %40 : vector<8xf32> to vector<8x1xf32>
    %42 = vector.broadcast %41 : vector<8x1xf32> to vector<8x8xf32>
    %43 = arith.subf %39, %42 : vector<8x8xf32>
    %44 = math.exp %43 : vector<8x8xf32>
    %cst_18 = arith.constant dense<0.000000e+00> : vector<8xf32>
    %45 = vector.multi_reduction <add>, %44, %cst_18 [1] : vector<8x8xf32> to vector<8xf32>
    %46 = vector.shape_cast %45 : vector<8xf32> to vector<8x1xf32>
    %cst_19 = arith.constant 1.000000e+00 : f32
    %47 = vector.broadcast %cst_19 : f32 to vector<8x1xf32>
    %48 = arith.divf %47, %46 : vector<8x1xf32>
    %49 = vector.broadcast %48 : vector<8x1xf32> to vector<8x8xf32>
    %50 = arith.mulf %44, %49 : vector<8x8xf32>
    %cst_20 = arith.constant dense<0.000000e+00> : vector<8x8xf32>
    %51 = tpu.matmul %50, %38, %cst_20 {dimension_numbers = #tpu.dot_dimension_numbers<[1], [0], [0], [1], [0, 0, 1, 1], [], []>, precision = #tpu.contract_precision<fp32>} : vector<8x8xf32>, vector<8x8xf32>, vector<8x8xf32> -> vector<8x8xf32>
    %52 = vector.extract_strided_slice %19 {offsets = [0, 16], sizes = [8, 8], strides = [1, 1]} : vector<8x32xf32> to vector<8x8xf32>
    %53 = vector.extract_strided_slice %16 {offsets = [0, 16], sizes = [8, 8], strides = [1, 1]} : vector<8x32xf32> to vector<8x8xf32>
    %54 = vector.extract_strided_slice %17 {offsets = [0, 16], sizes = [8, 8], strides = [1, 1]} : vector<8x32xf32> to vector<8x8xf32>
    %cst_21 = arith.constant dense<0.000000e+00> : vector<8x8xf32>
    %55 = tpu.matmul %52, %53, %cst_21 {dimension_numbers = #tpu.dot_dimension_numbers<[1], [1], [0], [0], [0, 0, 1, 0], [], []>, precision = #tpu.contract_precision<fp32>} : vector<8x8xf32>, vector<8x8xf32>, vector<8x8xf32> -> vector<8x8xf32>
    %cst_22 = arith.constant dense<0xFF800000> : vector<8xf32>
    %56 = vector.multi_reduction <maximumf>, %55, %cst_22 [1] : vector<8x8xf32> to vector<8xf32>
    %57 = vector.shape_cast %56 : vector<8xf32> to vector<8x1xf32>
    %58 = vector.broadcast %57 : vector<8x1xf32> to vector<8x8xf32>
    %59 = arith.subf %55, %58 : vector<8x8xf32>
    %60 = math.exp %59 : vector<8x8xf32>
    %cst_23 = arith.constant dense<0.000000e+00> : vector<8xf32>
    %61 = vector.multi_reduction <add>, %60, %cst_23 [1] : vector<8x8xf32> to vector<8xf32>
    %62 = vector.shape_cast %61 : vector<8xf32> to vector<8x1xf32>
    %cst_24 = arith.constant 1.000000e+00 : f32
    %63 = vector.broadcast %cst_24 : f32 to vector<8x1xf32>
    %64 = arith.divf %63, %62 : vector<8x1xf32>
    %65 = vector.broadcast %64 : vector<8x1xf32> to vector<8x8xf32>
    %66 = arith.mulf %60, %65 : vector<8x8xf32>
    %cst_25 = arith.constant dense<0.000000e+00> : vector<8x8xf32>
    %67 = tpu.matmul %66, %54, %cst_25 {dimension_numbers = #tpu.dot_dimension_numbers<[1], [0], [0], [1], [0, 0, 1, 1], [], []>, precision = #tpu.contract_precision<fp32>} : vector<8x8xf32>, vector<8x8xf32>, vector<8x8xf32> -> vector<8x8xf32>
    %68 = vector.extract_strided_slice %19 {offsets = [0, 24], sizes = [8, 8], strides = [1, 1]} : vector<8x32xf32> to vector<8x8xf32>
    %69 = vector.extract_strided_slice %16 {offsets = [0, 24], sizes = [8, 8], strides = [1, 1]} : vector<8x32xf32> to vector<8x8xf32>
    %70 = vector.extract_strided_slice %17 {offsets = [0, 24], sizes = [8, 8], strides = [1, 1]} : vector<8x32xf32> to vector<8x8xf32>
    %cst_26 = arith.constant dense<0.000000e+00> : vector<8x8xf32>
    %71 = tpu.matmul %68, %69, %cst_26 {dimension_numbers = #tpu.dot_dimension_numbers<[1], [1], [0], [0], [0, 0, 1, 0], [], []>, precision = #tpu.contract_precision<fp32>} : vector<8x8xf32>, vector<8x8xf32>, vector<8x8xf32> -> vector<8x8xf32>
    %cst_27 = arith.constant dense<0xFF800000> : vector<8xf32>
    %72 = vector.multi_reduction <maximumf>, %71, %cst_27 [1] : vector<8x8xf32> to vector<8xf32>
    %73 = vector.shape_cast %72 : vector<8xf32> to vector<8x1xf32>
    %74 = vector.broadcast %73 : vector<8x1xf32> to vector<8x8xf32>
    %75 = arith.subf %71, %74 : vector<8x8xf32>
    %76 = math.exp %75 : vector<8x8xf32>
    %cst_28 = arith.constant dense<0.000000e+00> : vector<8xf32>
    %77 = vector.multi_reduction <add>, %76, %cst_28 [1] : vector<8x8xf32> to vector<8xf32>
    %78 = vector.shape_cast %77 : vector<8xf32> to vector<8x1xf32>
    %cst_29 = arith.constant 1.000000e+00 : f32
    %79 = vector.broadcast %cst_29 : f32 to vector<8x1xf32>
    %80 = arith.divf %79, %78 : vector<8x1xf32>
    %81 = vector.broadcast %80 : vector<8x1xf32> to vector<8x8xf32>
    %82 = arith.mulf %76, %81 : vector<8x8xf32>
    %cst_30 = arith.constant dense<0.000000e+00> : vector<8x8xf32>
    %83 = tpu.matmul %82, %70, %cst_30 {dimension_numbers = #tpu.dot_dimension_numbers<[1], [0], [0], [1], [0, 0, 1, 1], [], []>, precision = #tpu.contract_precision<fp32>} : vector<8x8xf32>, vector<8x8xf32>, vector<8x8xf32> -> vector<8x8xf32>
    %84 = tpu.concatenate %35, %51, %67, %83 in 1 : vector<8x8xf32>, vector<8x8xf32>, vector<8x8xf32>, vector<8x8xf32> -> vector<8x32xf32>
    %c0_31 = arith.constant 0 : index
    %c0_32 = arith.constant 0 : index
    %c0_33 = arith.constant 0 : index
    %85 = vector.load %arg6[%c0_31, %c0_32, %c0_33] : memref<1x8x32xf32, #tpu.memory_space<vmem>>, vector<1x8x32xf32>
    %86 = vector.shape_cast %85 : vector<1x8x32xf32> to vector<8x32xf32>
    %87 = vector.shape_cast %84 : vector<8x32xf32> to vector<1x8x32xf32>
    tpu.vector_store %arg6[%c0_31, %c0_32, %c0_33], %87 {strides = array<i32>} : memref<1x8x32xf32, #tpu.memory_space<vmem>>, vector<1x8x32xf32>,
    return
  }
  func.func @transform_0(%arg0: i32, %arg1: i32) -> (i32, i32, i32) {
    %c0_i32 = arith.constant 0 : i32
    %c0_i32_0 = arith.constant 0 : i32
    return %arg0, %arg1, %c0_i32 : i32, i32, i32
  }
  func.func @transform_1(%arg0: i32, %arg1: i32) -> (i32, i32, i32) {
    %c0_i32 = arith.constant 0 : i32
    %c0_i32_0 = arith.constant 0 : i32
    %c0_i32_1 = arith.constant 0 : i32
    return %arg0, %c0_i32, %c0_i32_0 : i32, i32, i32
  }
  func.func @transform_2(%arg0: i32, %arg1: i32) -> (i32, i32) {
    %c0_i32 = arith.constant 0 : i32
    %c0_i32_0 = arith.constant 0 : i32
    %c0_i32_1 = arith.constant 0 : i32
    return %c0_i32, %c0_i32_0 : i32, i32
  }
  func.func @transform_3(%arg0: i32, %arg1: i32) -> (i32, i32) {
    %c0_i32 = arith.constant 0 : i32
    %c0_i32_0 = arith.constant 0 : i32
    %c0_i32_1 = arith.constant 0 : i32
    return %c0_i32, %c0_i32_0 : i32, i32
  }
  func.func @transform_4(%arg0: i32, %arg1: i32) -> (i32, i32, i32) {
    %c0_i32 = arith.constant 0 : i32
    %c0_i32_0 = arith.constant 0 : i32
    return %arg0, %arg1, %c0_i32 : i32, i32, i32
  }
}

</mosaic_0001>

<llo_original>
// kernel: tpu_custom_call.1
$region0: #{tpu_custom_call.1}
  #allocation0 [shape = 'u32[]', space=smem, size = 0x4, offset = 0x4, fixed_abs, tag = 'smem constant byte address 0x4 - core index']
  #allocation1 [shape = 'u32[144,128]{1,0:T(1,128)}', space=vmem, size = 0x12000, scoped, tag = 'internal scratch']
  %s0 = inlined_call_operand.hbm [shape: f32[2,8,32], index: 0, kind: input, shape index: {}]
  %s1 = inlined_call_operand.hbm [shape: f32[2,8,32], index: 1, kind: input, shape index: {}]
  %s2 = inlined_call_operand.hbm [shape: f32[32,96], index: 2, kind: input, shape index: {}]
  %s3 = inlined_call_operand.vmem [shape: f32[1,96], index: 3, kind: input, shape index: {}]
  %s4 = inlined_call_operand.hbm [shape: f32[2,8,32], index: 4, kind: output, shape index: {}]
  %s5 = sld [smem:[#allocation0]]
  $region61: #{tpu_custom_call.1} parent=0
    _
  %s7 = ssub.s32 1, %s5
  %s8 = scalar_select 0, %s7, %s5
  $region1: #{tpu_custom_call.1} parent=0
    #allocation2 [shape = 'u8[8192]{0}', space=vmem, size = 0x2000, scoped, tag = 'input window, operand 0']
    #allocation3 [shape = 's32[2]{0}', space=sflag, size = 0x8, scoped, tag = 'scoped memory for tpu_custom_call.1']
    #allocation4 [shape = 's32[2]{0}', space=sflag, size = 0x8, scoped, tag = 'scoped memory for tpu_custom_call.1']
    #allocation5 [shape = 'u8[8192]{0}', space=vmem, size = 0x2000, scoped, tag = 'input window, operand 1']
    #allocation6 [shape = 's32[2]{0}', space=sflag, size = 0x8, scoped, tag = 'scoped memory for tpu_custom_call.1']
    #allocation7 [shape = 'u8[16384]{0}', space=vmem, size = 0x4000, scoped, tag = 'input window, operand 2, single buffered']
    #allocation8 [shape = 'u8[8192]{0}', space=vmem, size = 0x2000, scoped, tag = 'output window, operand 0']
    %9 = vsyncpa [#allocation3], 0
    %s10 = scalar_lea.sflag [#allocation3], 1
    %11 = vsyncpa %s10, 0
    %12 = vsyncpa [#allocation6], 0
    %s13 = scalar_lea.sflag [#allocation6], 1
    %14 = vsyncpa %s13, 0
    %15 = vsyncpa [#allocation4], 0
    %s16 = scalar_lea.sflag [#allocation4], 1
    %17 = vsyncpa %s16, 0
    loop: start=0, step=1, limit=4
    $region2: #{tpu_custom_call.1} parent=1 // loop_pre_header
      _
    $region3: #{tpu_custom_call.1} parent=1 // loop_header
      %s19 = sphi 0, %s23
      %p20 = scmp.ge.s32.totalorder %s19, 4
      %s26 = sphi 0, %s38
      %s27 = sphi 0, %s34
      %s28 = sphi 0, %s26
      %s29 = sphi 0, %s27
      %s30 = sphi 0, %s28
      %s31 = sphi 0, %s29
      %s43 = sphi 0, %s45
      %s46 = sphi 0, %s43
      %s47 = sphi 0, %s46
      %s63 = sphi 0, %s47
      %s69 = sphi 0, %s71
      %s72 = sphi 0, %s69
      %s73 = sphi 0, %s72
      %s89 = sphi 0, %s73
      %s93 = sphi 0, %s93
      %s95 = sphi 0, %s93
      %s96 = sphi 0, %s95
      %s110 = sphi 0, %s96
      %s114 = sphi 0, %s114
      %s116 = sphi 0, %s114
      %s117 = sphi 0, %s116
      %s131 = sphi 0, %s117
      %s139 = sphi 0, %s141
      %s142 = sphi 0, %s139
      %s143 = sphi 0, %s142
      %s159 = sphi 0, %s143
    $region4: #{tpu_custom_call.1} parent=1 // loop_header_branch
      %22 = sbr.rel (%p20) target = $region8
    $region5: #{tpu_custom_call.1} parent=1 // loop_body
      %s24 = ssub.s32 %s19, 1
      %s25 = ssub.s32 %s19, 2
      %s32 = sadd.s32 1, %s27
      %p33 = scmp.ge.s32.totalorder %s32, 1
      %s34 = scalar_select %p33, 0, %s32
      %s35 = sadd.s32 1, %s26
      %s36 = scalar_select %p33, %s35, %s26
      %p37 = scmp.ge.s32.totalorder %s36, 2
      %s38 = scalar_select %p37, 0, %s36
      %s39 = ssub.s32 %s26, %s38
      %s40 = ssub.s32 %s27, %s34
      %s41 = sor.u32 %s39, %s40
      %p42 = scmp.eq.s32.totalorder %s41, 0
      %s44 = sadd.s32 %s43, 1
      %s45 = scalar_select %p42, %s43, %s44
      %p48 = pneg %p42
      %p49 = scmp.eq.s32.totalorder %s19, 1
      %p50 = por %p48, %p49
      %p51 = scmp.ne.s32.totalorder %s43, %s46
      %p52 = scmp.eq.s32.totalorder %s19, 0
      %p53 = por %p51, %p52
      %p54 = scmp.ne.s32.totalorder %s43, %s46
      %p55 = scmp.eq.s32.totalorder %s24, 1
      %p56 = por %p54, %p55
      %p57 = scmp.ne.s32.totalorder %s46, %s47
      %p58 = scmp.eq.s32.totalorder %s24, 0
      %p59 = por %p57, %p58
      %p60 = scmp.ne.s32.totalorder %s46, %s47
      %p61 = scmp.eq.s32.totalorder %s25, 1
      %p62 = por %p60, %p61
      %p64 = scmp.ne.s32.totalorder %s47, %s63
      %p65 = scmp.eq.s32.totalorder %s25, 0
      %p66 = por %p64, %p65
      %s67 = ssub.s32 %s26, %s38
      %p68 = scmp.eq.s32.totalorder %s67, 0
      %s70 = sadd.s32 %s69, 1
      %s71 = scalar_select %p68, %s69, %s70
      %p74 = pneg %p68
      %p75 = scmp.eq.s32.totalorder %s19, 1
      %p76 = por %p74, %p75
      %p77 = scmp.ne.s32.totalorder %s69, %s72
      %p78 = scmp.eq.s32.totalorder %s19, 0
      %p79 = por %p77, %p78
      %p80 = scmp.ne.s32.totalorder %s69, %s72
      %p81 = scmp.eq.s32.totalorder %s24, 1
      %p82 = por %p80, %p81
      %p83 = scmp.ne.s32.totalorder %s72, %s73
      %p84 = scmp.eq.s32.totalorder %s24, 0
      %p85 = por %p83, %p84
      %p86 = scmp.ne.s32.totalorder %s72, %s73
      %p87 = scmp.eq.s32.totalorder %s25, 1
      %p88 = por %p86, %p87
      %p90 = scmp.ne.s32.totalorder %s73, %s89
      %p91 = scmp.eq.s32.totalorder %s25, 0
      %p92 = por %p90, %p91
      %s94 = sadd.s32 %s93, 1
      %p97 = scmp.eq.s32.totalorder %s19, 1
      %p98 = scmp.ne.s32.totalorder %s93, %s95
      %p99 = scmp.eq.s32.totalorder %s19, 0
      %p100 = por %p98, %p99
      %p101 = scmp.ne.s32.totalorder %s93, %s95
      %p102 = scmp.eq.s32.totalorder %s24, 1
      %p103 = por %p101, %p102
      %p104 = scmp.ne.s32.totalorder %s95, %s96
      %p105 = scmp.eq.s32.totalorder %s24, 0
      %p106 = por %p104, %p105
      %p107 = scmp.ne.s32.totalorder %s95, %s96
      %p108 = scmp.eq.s32.totalorder %s25, 1
      %p109 = por %p107, %p108
      %p111 = scmp.ne.s32.totalorder %s96, %s110
      %p112 = scmp.eq.s32.totalorder %s25, 0
      %p113 = por %p111, %p112
      %s115 = sadd.s32 %s114, 1
      %p118 = scmp.eq.s32.totalorder %s19, 1
      %p119 = scmp.ne.s32.totalorder %s114, %s116
      %p120 = scmp.eq.s32.totalorder %s19, 0
      %p121 = por %p119, %p120
      %p122 = scmp.ne.s32.totalorder %s114, %s116
      %p123 = scmp.eq.s32.totalorder %s24, 1
      %p124 = por %p122, %p123
      %p125 = scmp.ne.s32.totalorder %s116, %s117
      %p126 = scmp.eq.s32.totalorder %s24, 0
      %p127 = por %p125, %p126
      %p128 = scmp.ne.s32.totalorder %s116, %s117
      %p129 = scmp.eq.s32.totalorder %s25, 1
      %p130 = por %p128, %p129
      %p132 = scmp.ne.s32.totalorder %s117, %s131
      %p133 = scmp.eq.s32.totalorder %s25, 0
      %p134 = por %p132, %p133
      %s135 = ssub.s32 %s26, %s38
      %s136 = ssub.s32 %s27, %s34
      %s137 = sor.u32 %s135, %s136
      %p138 = scmp.eq.s32.totalorder %s137, 0
      %s140 = sadd.s32 %s139, 1
      %s141 = scalar_select %p138, %s139, %s140
      %p144 = pneg %p138
      %p145 = scmp.eq.s32.totalorder %s19, 1
      %p146 = por %p144, %p145
      %p147 = scmp.ne.s32.totalorder %s139, %s142
      %p148 = scmp.eq.s32.totalorder %s19, 0
      %p149 = por %p147, %p148
      %p150 = scmp.ne.s32.totalorder %s139, %s142
      %p151 = scmp.eq.s32.totalorder %s24, 1
      %p152 = por %p150, %p151
      %p153 = scmp.ne.s32.totalorder %s142, %s143
      %p154 = scmp.eq.s32.totalorder %s24, 0
      %p155 = por %p153, %p154
      %p156 = scmp.ne.s32.totalorder %s142, %s143
      %p157 = scmp.eq.s32.totalorder %s25, 1
      %p158 = por %p156, %p157
      %p160 = scmp.ne.s32.totalorder %s143, %s159
      %p161 = scmp.eq.s32.totalorder %s25, 0
      %p162 = por %p160, %p161
      %p163 = scmp.le.s32.totalorder 1, %s19
      %p164 = scmp.lt.s32.totalorder %s19, 3
      %p165 = pnand %p163, %p164
      %p166 = pneg %p165
      // Predicated region
      $region9: #{tpu_custom_call.1} parent=5 // pred_check
        _
      $region10: #{tpu_custom_call.1} parent=5 // pred_check_branch
        %168 = sbr.rel (%p165) target = $region12
      $region11: #{tpu_custom_call.1} parent=5 // pred_region
        %s169 = ssub.s32 %s19, 1
        // Predicated region
        $region13: #{tpu_custom_call.1} parent=11 // pred_check
          %p170 = pneg %p106
        $region14: #{tpu_custom_call.1} parent=11 // pred_check_branch
          %172 = sbr.rel (%p170) target = $region16
        $region15: #{tpu_custom_call.1} parent=11 // pred_region
          %s174 = ssub.s32 512, 512
          %175 = vsyncadd [#allocation6], %s174
          %s176 = sshll.u32 [#allocation7], 4
          %s177 = int_to_ptr.vmem [resolvable:$true] %s176
          %182 = dma.hbm_to_vmem [thread:$0]  %s2, 512, %s177, [#allocation6], 128, 128, 8
        $region16: #{tpu_custom_call.1} parent=11 // pred_fallthru
          _
        // Predicated region
        $region17: #{tpu_custom_call.1} parent=11 // pred_check
          %p183 = pneg %p127
        $region18: #{tpu_custom_call.1} parent=11 // pred_check_branch
          %185 = sbr.rel (%p183) target = $region20
        $region19: #{tpu_custom_call.1} parent=11 // pred_region
          _
        $region20: #{tpu_custom_call.1} parent=11 // pred_fallthru
          _
      $region12: #{tpu_custom_call.1} parent=5 // pred_fallthru
        _
      %p186 = scmp.lt.s32.totalorder %s19, 2
      // Predicated region
      $region21: #{tpu_custom_call.1} parent=5 // pred_check
        %p187 = pneg %p186
      $region22: #{tpu_custom_call.1} parent=5 // pred_check_branch
        %189 = sbr.rel (%p187) target = $region24
      $region23: #{tpu_custom_call.1} parent=5 // pred_region
        // Predicated region
        $region25: #{tpu_custom_call.1} parent=23 // pred_check
          %p190 = pneg %p53
        $region26: #{tpu_custom_call.1} parent=23 // pred_check_branch
          %192 = sbr.rel (%p190) target = $region28
        $region27: #{tpu_custom_call.1} parent=23 // pred_region
          %s193 = sand.u32 %s43, 1
          %s194 = scalar_lea.sflag [#allocation3], %s193
          %s195 = sand.u32 %s43, 1
          %s196 = smul.addr %s195, 8
          %s197 = scalar_lea.vmem [#allocation2], %s196
          %s199 = ssub.s32 128, 128
          %200 = vsyncadd %s194, %s199
          %s201 = sadd.s32 %s27, %s26
          %s202 = smul.addr %s201, 128
          %s203 = scalar_lea.hbm %s0, %s202
          %s205 = sshll.u32 %s197, 4
          %s206 = int_to_ptr.vmem [resolvable:$true] %s205
          %208 = dma.hbm_to_vmem [thread:$0]  %s203, 128, %s206, %s194
        $region28: #{tpu_custom_call.1} parent=23 // pred_fallthru
          _
        // Predicated region
        $region29: #{tpu_custom_call.1} parent=23 // pred_check
          %p209 = pneg %p79
        $region30: #{tpu_custom_call.1} parent=23 // pred_check_branch
          %211 = sbr.rel (%p209) target = $region32
        $region31: #{tpu_custom_call.1} parent=23 // pred_region
          %s212 = sand.u32 %s19, 1
          %s213 = scalar_lea.sflag [#allocation6], %s212
          %s214 = sand.u32 %s69, 1
          %s215 = smul.addr %s214, 8
          %s216 = scalar_lea.vmem [#allocation5], %s215
          %s218 = ssub.s32 128, 128
          %219 = vsyncadd %s213, %s218
          %s220 = smul.addr %s26, 128
          %s221 = scalar_lea.hbm %s1, %s220
          %s223 = sshll.u32 %s216, 4
          %s224 = int_to_ptr.vmem [resolvable:$true] %s223
          %226 = dma.hbm_to_vmem [thread:$0]  %s221, 128, %s224, %s213
        $region32: #{tpu_custom_call.1} parent=23 // pred_fallthru
          _
      $region24: #{tpu_custom_call.1} parent=5 // pred_fallthru
        _
      %p227 = scmp.le.s32.totalorder 1, %s19
      %p228 = scmp.lt.s32.totalorder %s19, 3
      %p229 = pnand %p227, %p228
      %p230 = pneg %p229
      // Predicated region
      $region33: #{tpu_custom_call.1} parent=5 // pred_check
        _
      $region34: #{tpu_custom_call.1} parent=5 // pred_check_branch
        %232 = sbr.rel (%p229) target = $region36
      $region35: #{tpu_custom_call.1} parent=5 // pred_region
        %s233 = ssub.s32 %s19, 1
        %s234 = sand.u32 %s46, 1
        %s235 = scalar_lea.sflag [#allocation3], %s234
        %s236 = sand.u32 %s46, 1
        %s237 = smul.addr %s236, 8
        %s238 = scalar_lea.vmem [#allocation2], %s237
        // Predicated region
        $region37: #{tpu_custom_call.1} parent=35 // pred_check
          %p239 = pneg %p59
        $region38: #{tpu_custom_call.1} parent=35 // pred_check_branch
          %241 = sbr.rel (%p239) target = $region40
        $region39: #{tpu_custom_call.1} parent=35 // pred_region
          %242 = dma.done %s235, 128
        $region40: #{tpu_custom_call.1} parent=35 // pred_fallthru
          _
        %s243 = sand.u32 %s24, 1
        %s244 = scalar_lea.sflag [#allocation6], %s243
        %s245 = sand.u32 %s72, 1
        %s246 = smul.addr %s245, 8
        %s247 = scalar_lea.vmem [#allocation5], %s246
        // Predicated region
        $region41: #{tpu_custom_call.1} parent=35 // pred_check
          %p248 = pneg %p85
        $region42: #{tpu_custom_call.1} parent=35 // pred_check_branch
          %250 = sbr.rel (%p248) target = $region44
        $region43: #{tpu_custom_call.1} parent=35 // pred_region
          %251 = dma.done %s244, 128
        $region44: #{tpu_custom_call.1} parent=35 // pred_fallthru
          _
        // Predicated region
        $region45: #{tpu_custom_call.1} parent=35 // pred_check
          %p252 = pneg %p106
        $region46: #{tpu_custom_call.1} parent=35 // pred_check_branch
          %254 = sbr.rel (%p252) target = $region48
        $region47: #{tpu_custom_call.1} parent=35 // pred_region
          %255 = dma.done [#allocation6], 512
        $region48: #{tpu_custom_call.1} parent=35 // pred_fallthru
          _
        %s256 = sand.u32 %s46, 1
        %s257 = scalar_lea.sflag [#allocation3], %s256
        %s258 = sand.u32 %s46, 1
        %s259 = smul.addr %s258, 8
        %s260 = scalar_lea.vmem [#allocation2], %s259
        %p261 = pneg %p59
        %p262 = pneg %p56
        %s263 = sand.u32 %s24, 1
        %s264 = scalar_lea.sflag [#allocation6], %s263
        %s265 = sand.u32 %s72, 1
        %s266 = smul.addr %s265, 8
        %s267 = scalar_lea.vmem [#allocation5], %s266
        %p268 = pneg %p85
        %p269 = pneg %p82
        %p270 = pneg %p106
        %p271 = pneg %p103
        %p272 = pneg %p127
        %p273 = pneg %p124
        %p274 = pneg %p155
        %p275 = pneg %p152
        %s276 = sand.u32 %s142, 1
        %s277 = scalar_lea.sflag [#allocation4], %s276
        %s278 = sand.u32 %s142, 1
        %s279 = smul.addr %s278, 8
        %s280 = scalar_lea.vmem [#allocation8], %s279
        %v281 = vld [vmem:[%s238] sm:$0xff]
        %v282 = vld [vmem:[%s247] sm:$0xff]
        %v283 = vld [vmem:[#allocation7] sm:$0xff]
        %v284 = vld [vmem:[#allocation7 + $0x8] sm:$0xff]
        %v285 = vld [vmem:[#allocation7 + $0x10] sm:$0xff]
        %v286 = vld [vmem:[#allocation7 + $0x18] sm:$0xff]
        %v287 = vld [vmem:[%s3] sm:$0x1]
        %v289 = vlaneseq
        %v290 = vshrl.u32 %v289, 7
        %v291 = vsub.s32 0, %v290
        %v292 = vrot.slane %v287, %v291
        %vm294 = vcmask 261120
        %v296 = vsel %vm294, %v281, 0
        %298 = vmatprep.subr.mxu0 0.0
        %v299 = vand.u32 %v283, 4294901760
        %300 = vmatpush1.msra.mxu0 %v299
        %301 = vmatprep.subr.mxu0 0.0
        %v302 = vand.u32 %v284, 4294901760
        %303 = vmatpush1.msra.mxu0 %v302
        %304 = vmatprep.subr.mxu0 0.0
        %v305 = vand.u32 %v285, 4294901760
        %306 = vmatpush1.msra.mxu0 %v305
        %307 = vmatprep.subr.mxu0 0.0
        %v308 = vand.u32 %v286, 4294901760
        %309 = vmatpush1.msra.mxu0 %v308
        %310 = vmatprep.subr.mxu0 0.0
        %311 = vmatpush1.msra.mxu0 0.0
        %312 = vmatprep.subr.mxu0 0.0
        %313 = vmatpush1.msra.mxu0 0.0
        %314 = vmatprep.subr.mxu0 0.0
        %315 = vmatpush1.msra.mxu0 0.0
        %316 = vmatprep.subr.mxu0 0.0
        %317 = vmatpush1.msra.mxu0 0.0
        %318 = vmatprep.subr.mxu0 0.0
        %319 = vmatpush1.msra.mxu0 0.0
        %320 = vmatprep.subr.mxu0 0.0
        %321 = vmatpush1.msra.mxu0 0.0
        %322 = vmatprep.subr.mxu0 0.0
        %323 = vmatpush1.msra.mxu0 0.0
        %324 = vmatprep.subr.mxu0 0.0
        %325 = vmatpush1.msra.mxu0 0.0
        %326 = vmatprep.subr.mxu0 0.0
        %327 = vmatpush1.msra.mxu0 0.0
        %328 = vmatprep.subr.mxu0 0.0
        %329 = vmatpush1.msra.mxu0 0.0
        %330 = vmatprep.subr.mxu0 0.0
        %331 = vmatpush1.msra.mxu0 0.0
        %332 = vmatprep.subr.mxu0 0.0
        %333 = vmatpush1.msra.mxu0 0.0
        %334 = vmatprep.subr.mxu0 0.0
        %335 = vmatpush1.msra.mxu0 0.0
        %336 = vmatprep.subr.mxu0 0.0
        %337 = vmatpush1.msra.mxu0 0.0
        %338 = vmatprep.subr.mxu0 0.0
        %339 = vmatpush1.msra.mxu0 0.0
        %340 = vmatprep.subr.mxu0 0.0
        %341 = vmatpush1.msra.mxu0 0.0
        %342 = vmatprep.subr.mxu0 0.0
        %343 = vmatpush1.msra.mxu0 0.0
        %344 = vmatprep.subr.mxu0 0.0
        %345 = vmatpush1.msra.mxu0 0.0
        %346 = vmatprep.subr.mxu0 0.0
        %347 = vmatpush1.msra.mxu0 0.0
        %348 = vmatprep.subr.mxu0 0.0
        %349 = vmatpush1.msra.mxu0 0.0
        %350 = vmatprep.subr.mxu0 0.0
        %351 = vmatpush1.msra.mxu0 0.0
        %352 = vmatprep.subr.mxu0 0.0
        %353 = vmatpush1.msra.mxu0 0.0
        %354 = vmatprep.subr.mxu0 0.0
        %355 = vmatpush1.msra.mxu0 0.0
        %356 = vmatprep.subr.mxu0 0.0
        %357 = vmatpush1.msra.mxu0 0.0
        %358 = vmatprep.subr.mxu0 0.0
        %359 = vmatpush1.msra.mxu0 0.0
        %360 = vmatprep.subr.mxu0 0.0
        %361 = vmatpush1.msra.mxu0 0.0
        %362 = vmatprep.subr.mxu0 0.0
        %363 = vmatpush1.msra.mxu0 0.0
        %364 = vmatprep.subr.mxu0 0.0
        %365 = vmatpush1.msra.mxu0 0.0
        %366 = vmatprep.mubr.f32.mxu0 0.0
        %v367 = vand.u32 %v296, 4294901760
        %v368 = vsub.f32 %v296, %v367
        %v369 = vand.u32 %v368, 4294901760
        %v370 = vsub.f32 %v368, %v369
        %v371 = vand.u32 %v370, 4294901760
        %372 = vmatmul.mubr.f32.gmra.mrb[0].mxu0 %v371
        %v373 = vpop.f32.mrb[0].mxu0
        %v374 = vadd.f32 %v292, %v373
        %v375 = vpop.f32.mrb[0].mxu0
        %376 = vdwg.mxu0
        %377 = vmatprep.subr.mxu0 0.0
        %v378 = vand.u32 %v283, 4294901760
        %v379 = vsub.f32 %v283, %v378
        %v380 = vand.u32 %v379, 4294901760
        %v381 = vsub.f32 %v379, %v380
        %v382 = vand.u32 %v381, 4294901760
        %383 = vmatpush1.msra.mxu0 %v382
        %384 = vmatprep.subr.mxu0 0.0
        %v385 = vand.u32 %v284, 4294901760
        %v386 = vsub.f32 %v284, %v385
        %v387 = vand.u32 %v386, 4294901760
        %v388 = vsub.f32 %v386, %v387
        %v389 = vand.u32 %v388, 4294901760
        %390 = vmatpush1.msra.mxu0 %v389
        %391 = vmatprep.subr.mxu0 0.0
        %v392 = vand.u32 %v285, 4294901760
        %v393 = vsub.f32 %v285, %v392
        %v394 = vand.u32 %v393, 4294901760
        %v395 = vsub.f32 %v393, %v394
        %v396 = vand.u32 %v395, 4294901760
        %397 = vmatpush1.msra.mxu0 %v396
        %398 = vmatprep.subr.mxu0 0.0
        %v399 = vand.u32 %v286, 4294901760
        %v400 = vsub.f32 %v286, %v399
        %v401 = vand.u32 %v400, 4294901760
        %v402 = vsub.f32 %v400, %v401
        %v403 = vand.u32 %v402, 4294901760
        %404 = vmatpush1.msra.mxu0 %v403
        %405 = vmatprep.subr.mxu0 0.0
        %406 = vmatpush1.msra.mxu0 0.0
        %407 = vmatprep.subr.mxu0 0.0
        %408 = vmatpush1.msra.mxu0 0.0
        %409 = vmatprep.subr.mxu0 0.0
        %410 = vmatpush1.msra.mxu0 0.0
        %411 = vmatprep.subr.mxu0 0.0
        %412 = vmatpush1.msra.mxu0 0.0
        %413 = vmatprep.subr.mxu0 0.0
        %414 = vmatpush1.msra.mxu0 0.0
        %415 = vmatprep.subr.mxu0 0.0
        %416 = vmatpush1.msra.mxu0 0.0
        %417 = vmatprep.subr.mxu0 0.0
        %418 = vmatpush1.msra.mxu0 0.0
        %419 = vmatprep.subr.mxu0 0.0
        %420 = vmatpush1.msra.mxu0 0.0
        %421 = vmatprep.subr.mxu0 0.0
        %422 = vmatpush1.msra.mxu0 0.0
        %423 = vmatprep.subr.mxu0 0.0
        %424 = vmatpush1.msra.mxu0 0.0
        %425 = vmatprep.subr.mxu0 0.0
        %426 = vmatpush1.msra.mxu0 0.0
        %427 = vmatprep.subr.mxu0 0.0
        %428 = vmatpush1.msra.mxu0 0.0
        %429 = vmatprep.subr.mxu0 0.0
        %430 = vmatpush1.msra.mxu0 0.0
        %431 = vmatprep.subr.mxu0 0.0
        %432 = vmatpush1.msra.mxu0 0.0
        %433 = vmatprep.subr.mxu0 0.0
        %434 = vmatpush1.msra.mxu0 0.0
        %435 = vmatprep.subr.mxu0 0.0
        %436 = vmatpush1.msra.mxu0 0.0
        %437 = vmatprep.subr.mxu0 0.0
        %438 = vmatpush1.msra.mxu0 0.0
        %439 = vmatprep.subr.mxu0 0.0
        %440 = vmatpush1.msra.mxu0 0.0
        %441 = vmatprep.subr.mxu0 0.0
        %442 = vmatpush1.msra.mxu0 0.0
        %443 = vmatprep.subr.mxu0 0.0
        %444 = vmatpush1.msra.mxu0 0.0
        %445 = vmatprep.subr.mxu0 0.0
        %446 = vmatpush1.msra.mxu0 0.0
        %447 = vmatprep.subr.mxu0 0.0
        %448 = vmatpush1.msra.mxu0 0.0
        %449 = vmatprep.subr.mxu0 0.0
        %450 = vmatpush1.msra.mxu0 0.0
        %451 = vmatprep.subr.mxu0 0.0
        %452 = vmatpush1.msra.mxu0 0.0
        %453 = vmatprep.subr.mxu0 0.0
        %454 = vmatpush1.msra.mxu0 0.0
        %455 = vmatprep.subr.mxu0 0.0
        %456 = vmatpush1.msra.mxu0 0.0
        %457 = vmatprep.subr.mxu0 0.0
        %458 = vmatpush1.msra.mxu0 0.0
        %459 = vmatprep.subr.mxu0 0.0
        %460 = vmatpush1.msra.mxu0 0.0
        %461 = vmatprep.mubr.f32.mxu0 0.0
        %v462 = vand.u32 %v296, 4294901760
        %463 = vmatmul.mubr.f32.gmra.mrb[0].mxu0 %v462
        %v464 = vpop.f32.mrb[0].mxu0
        %v465 = vadd.f32 %v374, %v464
        %v466 = vpop.f32.mrb[0].mxu0
        %467 = vdwg.mxu0
        %468 = vmatprep.subr.mxu0 0.0
        %v469 = vand.u32 %v283, 4294901760
        %v470 = vsub.f32 %v283, %v469
        %471 = vmatpush1.msra.mxu0 %v470
        %472 = vmatprep.subr.mxu0 0.0
        %v473 = vand.u32 %v284, 4294901760
        %v474 = vsub.f32 %v284, %v473
        %475 = vmatpush1.msra.mxu0 %v474
        %476 = vmatprep.subr.mxu0 0.0
        %v477 = vand.u32 %v285, 4294901760
        %v478 = vsub.f32 %v285, %v477
        %479 = vmatpush1.msra.mxu0 %v478
        %480 = vmatprep.subr.mxu0 0.0
        %v481 = vand.u32 %v286, 4294901760
        %v482 = vsub.f32 %v286, %v481
        %483 = vmatpush1.msra.mxu0 %v482
        %484 = vmatprep.subr.mxu0 0.0
        %485 = vmatpush1.msra.mxu0 0.0
        %486 = vmatprep.subr.mxu0 0.0
        %487 = vmatpush1.msra.mxu0 0.0
        %488 = vmatprep.subr.mxu0 0.0
        %489 = vmatpush1.msra.mxu0 0.0
        %490 = vmatprep.subr.mxu0 0.0
        %491 = vmatpush1.msra.mxu0 0.0
        %492 = vmatprep.subr.mxu0 0.0
        %493 = vmatpush1.msra.mxu0 0.0
        %494 = vmatprep.subr.mxu0 0.0
        %495 = vmatpush1.msra.mxu0 0.0
        %496 = vmatprep.subr.mxu0 0.0
        %497 = vmatpush1.msra.mxu0 0.0
        %498 = vmatprep.subr.mxu0 0.0
        %499 = vmatpush1.msra.mxu0 0.0
        %500 = vmatprep.subr.mxu0 0.0
        %501 = vmatpush1.msra.mxu0 0.0
        %502 = vmatprep.subr.mxu0 0.0
        %503 = vmatpush1.msra.mxu0 0.0
        %504 = vmatprep.subr.mxu0 0.0
        %505 = vmatpush1.msra.mxu0 0.0
        %506 = vmatprep.subr.mxu0 0.0
        %507 = vmatpush1.msra.mxu0 0.0
        %508 = vmatprep.subr.mxu0 0.0
        %509 = vmatpush1.msra.mxu0 0.0
        %510 = vmatprep.subr.mxu0 0.0
        %511 = vmatpush1.msra.mxu0 0.0
        %512 = vmatprep.subr.mxu0 0.0
        %513 = vmatpush1.msra.mxu0 0.0
        %514 = vmatprep.subr.mxu0 0.0
        %515 = vmatpush1.msra.mxu0 0.0
        %516 = vmatprep.subr.mxu0 0.0
        %517 = vmatpush1.msra.mxu0 0.0
        %518 = vmatprep.subr.mxu0 0.0
        %519 = vmatpush1.msra.mxu0 0.0
        %520 = vmatprep.subr.mxu0 0.0
        %521 = vmatpush1.msra.mxu0 0.0
        %522 = vmatprep.subr.mxu0 0.0
        %523 = vmatpush1.msra.mxu0 0.0
        %524 = vmatprep.subr.mxu0 0.0
        %525 = vmatpush1.msra.mxu0 0.0
        %526 = vmatprep.subr.mxu0 0.0
        %527 = vmatpush1.msra.mxu0 0.0
        %528 = vmatprep.subr.mxu0 0.0
        %529 = vmatpush1.msra.mxu0 0.0
        %530 = vmatprep.subr.mxu0 0.0
        %531 = vmatpush1.msra.mxu0 0.0
        %532 = vmatprep.subr.mxu0 0.0
        %533 = vmatpush1.msra.mxu0 0.0
        %534 = vmatprep.subr.mxu0 0.0
        %535 = vmatpush1.msra.mxu0 0.0
        %536 = vmatprep.subr.mxu0 0.0
        %537 = vmatpush1.msra.mxu0 0.0
        %538 = vmatprep.subr.mxu0 0.0
        %539 = vmatpush1.msra.mxu0 0.0
        %540 = vmatprep.mubr.f32.mxu0 0.0
        %v541 = vand.u32 %v296, 4294901760
        %v542 = vsub.f32 %v296, %v541
        %543 = vmatmul.mubr.f32.gmra.mrb[0].mxu0 %v542
        %v544 = vpop.f32.mrb[0].mxu0
        %v545 = vadd.f32 %v465, %v544
        %v546 = vpop.f32.mrb[0].mxu0
        %547 = vdwg.mxu0
        %548 = vmatprep.subr.mxu0 0.0
        %v549 = vand.u32 %v283, 4294901760
        %550 = vmatpush1.msra.mxu0 %v549
        %551 = vmatprep.subr.mxu0 0.0
        %v552 = vand.u32 %v284, 4294901760
        %553 = vmatpush1.msra.mxu0 %v552
        %554 = vmatprep.subr.mxu0 0.0
        %v555 = vand.u32 %v285, 4294901760
        %556 = vmatpush1.msra.mxu0 %v555
        %557 = vmatprep.subr.mxu0 0.0
        %v558 = vand.u32 %v286, 4294901760
        %559 = vmatpush1.msra.mxu0 %v558
        %560 = vmatprep.subr.mxu0 0.0
        %561 = vmatpush1.msra.mxu0 0.0
        %562 = vmatprep.subr.mxu0 0.0
        %563 = vmatpush1.msra.mxu0 0.0
        %564 = vmatprep.subr.mxu0 0.0
        %565 = vmatpush1.msra.mxu0 0.0
        %566 = vmatprep.subr.mxu0 0.0
        %567 = vmatpush1.msra.mxu0 0.0
        %568 = vmatprep.subr.mxu0 0.0
        %569 = vmatpush1.msra.mxu0 0.0
        %570 = vmatprep.subr.mxu0 0.0
        %571 = vmatpush1.msra.mxu0 0.0
        %572 = vmatprep.subr.mxu0 0.0
        %573 = vmatpush1.msra.mxu0 0.0
        %574 = vmatprep.subr.mxu0 0.0
        %575 = vmatpush1.msra.mxu0 0.0
        %576 = vmatprep.subr.mxu0 0.0
        %577 = vmatpush1.msra.mxu0 0.0
        %578 = vmatprep.subr.mxu0 0.0
        %579 = vmatpush1.msra.mxu0 0.0
        %580 = vmatprep.subr.mxu0 0.0
        %581 = vmatpush1.msra.mxu0 0.0
        %582 = vmatprep.subr.mxu0 0.0
        %583 = vmatpush1.msra.mxu0 0.0
        %584 = vmatprep.subr.mxu0 0.0
        %585 = vmatpush1.msra.mxu0 0.0
        %586 = vmatprep.subr.mxu0 0.0
        %587 = vmatpush1.msra.mxu0 0.0
        %588 = vmatprep.subr.mxu0 0.0
        %589 = vmatpush1.msra.mxu0 0.0
        %590 = vmatprep.subr.mxu0 0.0
        %591 = vmatpush1.msra.mxu0 0.0
        %592 = vmatprep.subr.mxu0 0.0
        %593 = vmatpush1.msra.mxu0 0.0
        %594 = vmatprep.subr.mxu0 0.0
        %595 = vmatpush1.msra.mxu0 0.0
        %596 = vmatprep.subr.mxu0 0.0
        %597 = vmatpush1.msra.mxu0 0.0
        %598 = vmatprep.subr.mxu0 0.0
        %599 = vmatpush1.msra.mxu0 0.0
        %600 = vmatprep.subr.mxu0 0.0
        %601 = vmatpush1.msra.mxu0 0.0
        %602 = vmatprep.subr.mxu0 0.0
        %603 = vmatpush1.msra.mxu0 0.0
        %604 = vmatprep.subr.mxu0 0.0
        %605 = vmatpush1.msra.mxu0 0.0
        %606 = vmatprep.subr.mxu0 0.0
        %607 = vmatpush1.msra.mxu0 0.0
        %608 = vmatprep.subr.mxu0 0.0
        %609 = vmatpush1.msra.mxu0 0.0
        %610 = vmatprep.subr.mxu0 0.0
        %611 = vmatpush1.msra.mxu0 0.0
        %612 = vmatprep.subr.mxu0 0.0
        %613 = vmatpush1.msra.mxu0 0.0
        %614 = vmatprep.subr.mxu0 0.0
        %615 = vmatpush1.msra.mxu0 0.0
        %616 = vmatprep.mubr.f32.mxu0 0.0
        %v617 = vand.u32 %v296, 4294901760
        %v618 = vsub.f32 %v296, %v617
        %v619 = vand.u32 %v618, 4294901760
        %620 = vmatmul.mubr.f32.gmra.mrb[0].mxu0 %v619
        %v621 = vpop.f32.mrb[0].mxu0
        %v622 = vadd.f32 %v545, %v621
        %v623 = vpop.f32.mrb[0].mxu0
        %624 = vdwg.mxu0
        %625 = vmatprep.subr.mxu0 0.0
        %v626 = vand.u32 %v283, 4294901760
        %v627 = vsub.f32 %v283, %v626
        %v628 = vand.u32 %v627, 4294901760
        %629 = vmatpush1.msra.mxu0 %v628
        %630 = vmatprep.subr.mxu0 0.0
        %v631 = vand.u32 %v284, 4294901760
        %v632 = vsub.f32 %v284, %v631
        %v633 = vand.u32 %v632, 4294901760
        %634 = vmatpush1.msra.mxu0 %v633
        %635 = vmatprep.subr.mxu0 0.0
        %v636 = vand.u32 %v285, 4294901760
        %v637 = vsub.f32 %v285, %v636
        %v638 = vand.u32 %v637, 4294901760
        %639 = vmatpush1.msra.mxu0 %v638
        %640 = vmatprep.subr.mxu0 0.0
        %v641 = vand.u32 %v286, 4294901760
        %v642 = vsub.f32 %v286, %v641
        %v643 = vand.u32 %v642, 4294901760
        %644 = vmatpush1.msra.mxu0 %v643
        %645 = vmatprep.subr.mxu0 0.0
        %646 = vmatpush1.msra.mxu0 0.0
        %647 = vmatprep.subr.mxu0 0.0
        %648 = vmatpush1.msra.mxu0 0.0
        %649 = vmatprep.subr.mxu0 0.0
        %650 = vmatpush1.msra.mxu0 0.0
        %651 = vmatprep.subr.mxu0 0.0
        %652 = vmatpush1.msra.mxu0 0.0
        %653 = vmatprep.subr.mxu0 0.0
        %654 = vmatpush1.msra.mxu0 0.0
        %655 = vmatprep.subr.mxu0 0.0
        %656 = vmatpush1.msra.mxu0 0.0
        %657 = vmatprep.subr.mxu0 0.0
        %658 = vmatpush1.msra.mxu0 0.0
        %659 = vmatprep.subr.mxu0 0.0
        %660 = vmatpush1.msra.mxu0 0.0
        %661 = vmatprep.subr.mxu0 0.0
        %662 = vmatpush1.msra.mxu0 0.0
        %663 = vmatprep.subr.mxu0 0.0
        %664 = vmatpush1.msra.mxu0 0.0
        %665 = vmatprep.subr.mxu0 0.0
        %666 = vmatpush1.msra.mxu0 0.0
        %667 = vmatprep.subr.mxu0 0.0
        %668 = vmatpush1.msra.mxu0 0.0
        %669 = vmatprep.subr.mxu0 0.0
        %670 = vmatpush1.msra.mxu0 0.0
        %671 = vmatprep.subr.mxu0 0.0
        %672 = vmatpush1.msra.mxu0 0.0
        %673 = vmatprep.subr.mxu0 0.0
        %674 = vmatpush1.msra.mxu0 0.0
        %675 = vmatprep.subr.mxu0 0.0
        %676 = vmatpush1.msra.mxu0 0.0
        %677 = vmatprep.subr.mxu0 0.0
        %678 = vmatpush1.msra.mxu0 0.0
        %679 = vmatprep.subr.mxu0 0.0
        %680 = vmatpush1.msra.mxu0 0.0
        %681 = vmatprep.subr.mxu0 0.0
        %682 = vmatpush1.msra.mxu0 0.0
        %683 = vmatprep.subr.mxu0 0.0
        %684 = vmatpush1.msra.mxu0 0.0
        %685 = vmatprep.subr.mxu0 0.0
        %686 = vmatpush1.msra.mxu0 0.0
        %687 = vmatprep.subr.mxu0 0.0
        %688 = vmatpush1.msra.mxu0 0.0
        %689 = vmatprep.subr.mxu0 0.0
        %690 = vmatpush1.msra.mxu0 0.0
        %691 = vmatprep.subr.mxu0 0.0
        %692 = vmatpush1.msra.mxu0 0.0
        %693 = vmatprep.subr.mxu0 0.0
        %694 = vmatpush1.msra.mxu0 0.0
        %695 = vmatprep.subr.mxu0 0.0
        %696 = vmatpush1.msra.mxu0 0.0
        %697 = vmatprep.subr.mxu0 0.0
        %698 = vmatpush1.msra.mxu0 0.0
        %699 = vmatprep.subr.mxu0 0.0
        %700 = vmatpush1.msra.mxu0 0.0
        %701 = vmatprep.mubr.f32.mxu0 0.0
        %v702 = vand.u32 %v296, 4294901760
        %703 = vmatmul.mubr.f32.gmra.mrb[0].mxu0 %v702
        %v704 = vpop.f32.mrb[0].mxu0
        %v705 = vadd.f32 %v622, %v704
        %v706 = vpop.f32.mrb[0].mxu0
        %707 = vdwg.mxu0
        %708 = vmatprep.subr.mxu0 0.0
        %v709 = vand.u32 %v283, 4294901760
        %710 = vmatpush1.msra.mxu0 %v709
        %711 = vmatprep.subr.mxu0 0.0
        %v712 = vand.u32 %v284, 4294901760
        %713 = vmatpush1.msra.mxu0 %v712
        %714 = vmatprep.subr.mxu0 0.0
        %v715 = vand.u32 %v285, 4294901760
        %716 = vmatpush1.msra.mxu0 %v715
        %717 = vmatprep.subr.mxu0 0.0
        %v718 = vand.u32 %v286, 4294901760
        %719 = vmatpush1.msra.mxu0 %v718
        %720 = vmatprep.subr.mxu0 0.0
        %721 = vmatpush1.msra.mxu0 0.0
        %722 = vmatprep.subr.mxu0 0.0
        %723 = vmatpush1.msra.mxu0 0.0
        %724 = vmatprep.subr.mxu0 0.0
        %725 = vmatpush1.msra.mxu0 0.0
        %726 = vmatprep.subr.mxu0 0.0
        %727 = vmatpush1.msra.mxu0 0.0
        %728 = vmatprep.subr.mxu0 0.0
        %729 = vmatpush1.msra.mxu0 0.0
        %730 = vmatprep.subr.mxu0 0.0
        %731 = vmatpush1.msra.mxu0 0.0
        %732 = vmatprep.subr.mxu0 0.0
        %733 = vmatpush1.msra.mxu0 0.0
        %734 = vmatprep.subr.mxu0 0.0
        %735 = vmatpush1.msra.mxu0 0.0
        %736 = vmatprep.subr.mxu0 0.0
        %737 = vmatpush1.msra.mxu0 0.0
        %738 = vmatprep.subr.mxu0 0.0
        %739 = vmatpush1.msra.mxu0 0.0
        %740 = vmatprep.subr.mxu0 0.0
        %741 = vmatpush1.msra.mxu0 0.0
        %742 = vmatprep.subr.mxu0 0.0
        %743 = vmatpush1.msra.mxu0 0.0
        %744 = vmatprep.subr.mxu0 0.0
        %745 = vmatpush1.msra.mxu0 0.0
        %746 = vmatprep.subr.mxu0 0.0
        %747 = vmatpush1.msra.mxu0 0.0
        %748 = vmatprep.subr.mxu0 0.0
        %749 = vmatpush1.msra.mxu0 0.0
        %750 = vmatprep.subr.mxu0 0.0
        %751 = vmatpush1.msra.mxu0 0.0
        %752 = vmatprep.subr.mxu0 0.0
        %753 = vmatpush1.msra.mxu0 0.0
        %754 = vmatprep.subr.mxu0 0.0
        %755 = vmatpush1.msra.mxu0 0.0
        %756 = vmatprep.subr.mxu0 0.0
        %757 = vmatpush1.msra.mxu0 0.0
        %758 = vmatprep.subr.mxu0 0.0
        %759 = vmatpush1.msra.mxu0 0.0
        %760 = vmatprep.subr.mxu0 0.0
        %761 = vmatpush1.msra.mxu0 0.0
        %762 = vmatprep.subr.mxu0 0.0
        %763 = vmatpush1.msra.mxu0 0.0
        %764 = vmatprep.subr.mxu0 0.0
        %765 = vmatpush1.msra.mxu0 0.0
        %766 = vmatprep.subr.mxu0 0.0
        %767 = vmatpush1.msra.mxu0 0.0
        %768 = vmatprep.subr.mxu0 0.0
        %769 = vmatpush1.msra.mxu0 0.0
        %770 = vmatprep.subr.mxu0 0.0
        %771 = vmatpush1.msra.mxu0 0.0
        %772 = vmatprep.subr.mxu0 0.0
        %773 = vmatpush1.msra.mxu0 0.0
        %774 = vmatprep.subr.mxu0 0.0
        %775 = vmatpush1.msra.mxu0 0.0
        %776 = vmatprep.mubr.f32.mxu0 0.0
        %v777 = vand.u32 %v296, 4294901760
        %778 = vmatmul.mubr.f32.gmra.mrb[0].mxu0 %v777
        %v779 = vpop.f32.mrb[0].mxu0
        %v780 = vadd.f32 %v705, %v779
        %v781 = vpop.f32.mrb[0].mxu0
        %782 = vdwg.mxu0
        %787 = vrot.lane.b32.xlu0 %v283, 96
        %v788 = vpop.permute.xlu0 %787
        %789 = vrot.lane.b32.xlu0 %v284, 96
        %v790 = vpop.permute.xlu0 %789
        %791 = vrot.lane.b32.xlu0 %v285, 96
        %v792 = vpop.permute.xlu0 %791
        %793 = vrot.lane.b32.xlu0 %v286, 96
        %v794 = vpop.permute.xlu0 %793
        %799 = vrot.lane.b32.xlu0 %v292, 96
        %v800 = vpop.permute.xlu0 %799
        %v803 = vsel %vm294, %v282, 0
        %805 = vmatprep.subr.mxu0 0.0
        %v806 = vand.u32 %v788, 4294901760
        %807 = vmatpush1.msra.mxu0 %v806
        %808 = vmatprep.subr.mxu0 0.0
        %v809 = vand.u32 %v790, 4294901760
        %810 = vmatpush1.msra.mxu0 %v809
        %811 = vmatprep.subr.mxu0 0.0
        %v812 = vand.u32 %v792, 4294901760
        %813 = vmatpush1.msra.mxu0 %v812
        %814 = vmatprep.subr.mxu0 0.0
        %v815 = vand.u32 %v794, 4294901760
        %816 = vmatpush1.msra.mxu0 %v815
        %817 = vmatprep.subr.mxu0 0.0
        %818 = vmatpush1.msra.mxu0 0.0
        %819 = vmatprep.subr.mxu0 0.0
        %820 = vmatpush1.msra.mxu0 0.0
        %821 = vmatprep.subr.mxu0 0.0
        %822 = vmatpush1.msra.mxu0 0.0
        %823 = vmatprep.subr.mxu0 0.0
        %824 = vmatpush1.msra.mxu0 0.0
        %825 = vmatprep.subr.mxu0 0.0
        %826 = vmatpush1.msra.mxu0 0.0
        %827 = vmatprep.subr.mxu0 0.0
        %828 = vmatpush1.msra.mxu0 0.0
        %829 = vmatprep.subr.mxu0 0.0
        %830 = vmatpush1.msra.mxu0 0.0
        %831 = vmatprep.subr.mxu0 0.0
        %832 = vmatpush1.msra.mxu0 0.0
        %833 = vmatprep.subr.mxu0 0.0
        %834 = vmatpush1.msra.mxu0 0.0
        %835 = vmatprep.subr.mxu0 0.0
        %836 = vmatpush1.msra.mxu0 0.0
        %837 = vmatprep.subr.mxu0 0.0
        %838 = vmatpush1.msra.mxu0 0.0
        %839 = vmatprep.subr.mxu0 0.0
        %840 = vmatpush1.msra.mxu0 0.0
        %841 = vmatprep.subr.mxu0 0.0
        %842 = vmatpush1.msra.mxu0 0.0
        %843 = vmatprep.subr.mxu0 0.0
        %844 = vmatpush1.msra.mxu0 0.0
        %845 = vmatprep.subr.mxu0 0.0
        %846 = vmatpush1.msra.mxu0 0.0
        %847 = vmatprep.subr.mxu0 0.0
        %848 = vmatpush1.msra.mxu0 0.0
        %849 = vmatprep.subr.mxu0 0.0
        %850 = vmatpush1.msra.mxu0 0.0
        %851 = vmatprep.subr.mxu0 0.0
        %852 = vmatpush1.msra.mxu0 0.0
        %853 = vmatprep.subr.mxu0 0.0
        %854 = vmatpush1.msra.mxu0 0.0
        %855 = vmatprep.subr.mxu0 0.0
        %856 = vmatpush1.msra.mxu0 0.0
        %857 = vmatprep.subr.mxu0 0.0
        %858 = vmatpush1.msra.mxu0 0.0
        %859 = vmatprep.subr.mxu0 0.0
        %860 = vmatpush1.msra.mxu0 0.0
        %861 = vmatprep.subr.mxu0 0.0
        %862 = vmatpush1.msra.mxu0 0.0
        %863 = vmatprep.subr.mxu0 0.0
        %864 = vmatpush1.msra.mxu0 0.0
        %865 = vmatprep.subr.mxu0 0.0
        %866 = vmatpush1.msra.mxu0 0.0
        %867 = vmatprep.subr.mxu0 0.0
        %868 = vmatpush1.msra.mxu0 0.0
        %869 = vmatprep.subr.mxu0 0.0
        %870 = vmatpush1.msra.mxu0 0.0
        %871 = vmatprep.subr.mxu0 0.0
        %872 = vmatpush1.msra.mxu0 0.0
        %873 = vmatprep.mubr.f32.mxu0 0.0
        %v874 = vand.u32 %v803, 4294901760
        %v875 = vsub.f32 %v803, %v874
        %v876 = vand.u32 %v875, 4294901760
        %v877 = vsub.f32 %v875, %v876
        %v878 = vand.u32 %v877, 4294901760
        %879 = vmatmul.mubr.f32.gmra.mrb[0].mxu0 %v878
        %v880 = vpop.f32.mrb[0].mxu0
        %v881 = vadd.f32 %v800, %v880
        %v882 = vpop.f32.mrb[0].mxu0
        %883 = vdwg.mxu0
        %884 = vmatprep.subr.mxu0 0.0
        %v885 = vand.u32 %v788, 4294901760
        %v886 = vsub.f32 %v788, %v885
        %v887 = vand.u32 %v886, 4294901760
        %v888 = vsub.f32 %v886, %v887
        %v889 = vand.u32 %v888, 4294901760
        %890 = vmatpush1.msra.mxu0 %v889
        %891 = vmatprep.subr.mxu0 0.0
        %v892 = vand.u32 %v790, 4294901760
        %v893 = vsub.f32 %v790, %v892
        %v894 = vand.u32 %v893, 4294901760
        %v895 = vsub.f32 %v893, %v894
        %v896 = vand.u32 %v895, 4294901760
        %897 = vmatpush1.msra.mxu0 %v896
        %898 = vmatprep.subr.mxu0 0.0
        %v899 = vand.u32 %v792, 4294901760
        %v900 = vsub.f32 %v792, %v899
        %v901 = vand.u32 %v900, 4294901760
        %v902 = vsub.f32 %v900, %v901
        %v903 = vand.u32 %v902, 4294901760
        %904 = vmatpush1.msra.mxu0 %v903
        %905 = vmatprep.subr.mxu0 0.0
        %v906 = vand.u32 %v794, 4294901760
        %v907 = vsub.f32 %v794, %v906
        %v908 = vand.u32 %v907, 4294901760
        %v909 = vsub.f32 %v907, %v908
        %v910 = vand.u32 %v909, 4294901760
        %911 = vmatpush1.msra.mxu0 %v910
        %912 = vmatprep.subr.mxu0 0.0
        %913 = vmatpush1.msra.mxu0 0.0
        %914 = vmatprep.subr.mxu0 0.0
        %915 = vmatpush1.msra.mxu0 0.0
        %916 = vmatprep.subr.mxu0 0.0
        %917 = vmatpush1.msra.mxu0 0.0
        %918 = vmatprep.subr.mxu0 0.0
        %919 = vmatpush1.msra.mxu0 0.0
        %920 = vmatprep.subr.mxu0 0.0
        %921 = vmatpush1.msra.mxu0 0.0
        %922 = vmatprep.subr.mxu0 0.0
        %923 = vmatpush1.msra.mxu0 0.0
        %924 = vmatprep.subr.mxu0 0.0
        %925 = vmatpush1.msra.mxu0 0.0
        %926 = vmatprep.subr.mxu0 0.0
        %927 = vmatpush1.msra.mxu0 0.0
        %928 = vmatprep.subr.mxu0 0.0
        %929 = vmatpush1.msra.mxu0 0.0
        %930 = vmatprep.subr.mxu0 0.0
        %931 = vmatpush1.msra.mxu0 0.0
        %932 = vmatprep.subr.mxu0 0.0
        %933 = vmatpush1.msra.mxu0 0.0
        %934 = vmatprep.subr.mxu0 0.0
        %935 = vmatpush1.msra.mxu0 0.0
        %936 = vmatprep.subr.mxu0 0.0
        %937 = vmatpush1.msra.mxu0 0.0
        %938 = vmatprep.subr.mxu0 0.0
        %939 = vmatpush1.msra.mxu0 0.0
        %940 = vmatprep.subr.mxu0 0.0
        %941 = vmatpush1.msra.mxu0 0.0
        %942 = vmatprep.subr.mxu0 0.0
        %943 = vmatpush1.msra.mxu0 0.0
        %944 = vmatprep.subr.mxu0 0.0
        %945 = vmatpush1.msra.mxu0 0.0
        %946 = vmatprep.subr.mxu0 0.0
        %947 = vmatpush1.msra.mxu0 0.0
        %948 = vmatprep.subr.mxu0 0.0
        %949 = vmatpush1.msra.mxu0 0.0
        %950 = vmatprep.subr.mxu0 0.0
        %951 = vmatpush1.msra.mxu0 0.0
        %952 = vmatprep.subr.mxu0 0.0
        %953 = vmatpush1.msra.mxu0 0.0
        %954 = vmatprep.subr.mxu0 0.0
        %955 = vmatpush1.msra.mxu0 0.0
        %956 = vmatprep.subr.mxu0 0.0
        %957 = vmatpush1.msra.mxu0 0.0
        %958 = vmatprep.subr.mxu0 0.0
        %959 = vmatpush1.msra.mxu0 0.0
        %960 = vmatprep.subr.mxu0 0.0
        %961 = vmatpush1.msra.mxu0 0.0
        %962 = vmatprep.subr.mxu0 0.0
        %963 = vmatpush1.msra.mxu0 0.0
        %964 = vmatprep.subr.mxu0 0.0
        %965 = vmatpush1.msra.mxu0 0.0
        %966 = vmatprep.subr.mxu0 0.0
        %967 = vmatpush1.msra.mxu0 0.0
        %968 = vmatprep.mubr.f32.mxu0 0.0
        %v969 = vand.u32 %v803, 4294901760
        %970 = vmatmul.mubr.f32.gmra.mrb[0].mxu0 %v969
        %v971 = vpop.f32.mrb[0].mxu0
        %v972 = vadd.f32 %v881, %v971
        %v973 = vpop.f32.mrb[0].mxu0
        %974 = vdwg.mxu0
        %975 = vmatprep.subr.mxu0 0.0
        %v976 = vand.u32 %v788, 4294901760
        %v977 = vsub.f32 %v788, %v976
        %978 = vmatpush1.msra.mxu0 %v977
        %979 = vmatprep.subr.mxu0 0.0
        %v980 = vand.u32 %v790, 4294901760
        %v981 = vsub.f32 %v790, %v980
        %982 = vmatpush1.msra.mxu0 %v981
        %983 = vmatprep.subr.mxu0 0.0
        %v984 = vand.u32 %v792, 4294901760
        %v985 = vsub.f32 %v792, %v984
        %986 = vmatpush1.msra.mxu0 %v985
        %987 = vmatprep.subr.mxu0 0.0
        %v988 = vand.u32 %v794, 4294901760
        %v989 = vsub.f32 %v794, %v988
        %990 = vmatpush1.msra.mxu0 %v989
        %991 = vmatprep.subr.mxu0 0.0
        %992 = vmatpush1.msra.mxu0 0.0
        %993 = vmatprep.subr.mxu0 0.0
        %994 = vmatpush1.msra.mxu0 0.0
        %995 = vmatprep.subr.mxu0 0.0
        %996 = vmatpush1.msra.mxu0 0.0
        %997 = vmatprep.subr.mxu0 0.0
        %998 = vmatpush1.msra.mxu0 0.0
        %999 = vmatprep.subr.mxu0 0.0
        %1000 = vmatpush1.msra.mxu0 0.0
        %1001 = vmatprep.subr.mxu0 0.0
        %1002 = vmatpush1.msra.mxu0 0.0
        %1003 = vmatprep.subr.mxu0 0.0
        %1004 = vmatpush1.msra.mxu0 0.0
        %1005 = vmatprep.subr.mxu0 0.0
        %1006 = vmatpush1.msra.mxu0 0.0
        %1007 = vmatprep.subr.mxu0 0.0
        %1008 = vmatpush1.msra.mxu0 0.0
        %1009 = vmatprep.subr.mxu0 0.0
        %1010 = vmatpush1.msra.mxu0 0.0
        %1011 = vmatprep.subr.mxu0 0.0
        %1012 = vmatpush1.msra.mxu0 0.0
        %1013 = vmatprep.subr.mxu0 0.0
        %1014 = vmatpush1.msra.mxu0 0.0
        %1015 = vmatprep.subr.mxu0 0.0
        %1016 = vmatpush1.msra.mxu0 0.0
        %1017 = vmatprep.subr.mxu0 0.0
        %1018 = vmatpush1.msra.mxu0 0.0
        %1019 = vmatprep.subr.mxu0 0.0
        %1020 = vmatpush1.msra.mxu0 0.0
        %1021 = vmatprep.subr.mxu0 0.0
        %1022 = vmatpush1.msra.mxu0 0.0
        %1023 = vmatprep.subr.mxu0 0.0
        %1024 = vmatpush1.msra.mxu0 0.0
        %1025 = vmatprep.subr.mxu0 0.0
        %1026 = vmatpush1.msra.mxu0 0.0
        %1027 = vmatprep.subr.mxu0 0.0
        %1028 = vmatpush1.msra.mxu0 0.0
        %1029 = vmatprep.subr.mxu0 0.0
        %1030 = vmatpush1.msra.mxu0 0.0
        %1031 = vmatprep.subr.mxu0 0.0
        %1032 = vmatpush1.msra.mxu0 0.0
        %1033 = vmatprep.subr.mxu0 0.0
        %1034 = vmatpush1.msra.mxu0 0.0
        %1035 = vmatprep.subr.mxu0 0.0
        %1036 = vmatpush1.msra.mxu0 0.0
        %1037 = vmatprep.subr.mxu0 0.0
        %1038 = vmatpush1.msra.mxu0 0.0
        %1039 = vmatprep.subr.mxu0 0.0
        %1040 = vmatpush1.msra.mxu0 0.0
        %1041 = vmatprep.subr.mxu0 0.0
        %1042 = vmatpush1.msra.mxu0 0.0
        %1043 = vmatprep.subr.mxu0 0.0
        %1044 = vmatpush1.msra.mxu0 0.0
        %1045 = vmatprep.subr.mxu0 0.0
        %1046 = vmatpush1.msra.mxu0 0.0
        %1047 = vmatprep.mubr.f32.mxu0 0.0
        %v1048 = vand.u32 %v803, 4294901760
        %v1049 = vsub.f32 %v803, %v1048
        %1050 = vmatmul.mubr.f32.gmra.mrb[0].mxu0 %v1049
        %v1051 = vpop.f32.mrb[0].mxu0
        %v1052 = vadd.f32 %v972, %v1051
        %v1053 = vpop.f32.mrb[0].mxu0
        %1054 = vdwg.mxu0
        %1055 = vmatprep.subr.mxu0 0.0
        %v1056 = vand.u32 %v788, 4294901760
        %1057 = vmatpush1.msra.mxu0 %v1056
        %1058 = vmatprep.subr.mxu0 0.0
        %v1059 = vand.u32 %v790, 4294901760
        %1060 = vmatpush1.msra.mxu0 %v1059
        %1061 = vmatprep.subr.mxu0 0.0
        %v1062 = vand.u32 %v792, 4294901760
        %1063 = vmatpush1.msra.mxu0 %v1062
        %1064 = vmatprep.subr.mxu0 0.0
        %v1065 = vand.u32 %v794, 4294901760
        %1066 = vmatpush1.msra.mxu0 %v1065
        %1067 = vmatprep.subr.mxu0 0.0
        %1068 = vmatpush1.msra.mxu0 0.0
        %1069 = vmatprep.subr.mxu0 0.0
        %1070 = vmatpush1.msra.mxu0 0.0
        %1071 = vmatprep.subr.mxu0 0.0
        %1072 = vmatpush1.msra.mxu0 0.0
        %1073 = vmatprep.subr.mxu0 0.0
        %1074 = vmatpush1.msra.mxu0 0.0
        %1075 = vmatprep.subr.mxu0 0.0
        %1076 = vmatpush1.msra.mxu0 0.0
        %1077 = vmatprep.subr.mxu0 0.0
        %1078 = vmatpush1.msra.mxu0 0.0
        %1079 = vmatprep.subr.mxu0 0.0
        %1080 = vmatpush1.msra.mxu0 0.0
        %1081 = vmatprep.subr.mxu0 0.0
        %1082 = vmatpush1.msra.mxu0 0.0
        %1083 = vmatprep.subr.mxu0 0.0
        %1084 = vmatpush1.msra.mxu0 0.0
        %1085 = vmatprep.subr.mxu0 0.0
        %1086 = vmatpush1.msra.mxu0 0.0
        %1087 = vmatprep.subr.mxu0 0.0
        %1088 = vmatpush1.msra.mxu0 0.0
        %1089 = vmatprep.subr.mxu0 0.0
        %1090 = vmatpush1.msra.mxu0 0.0
        %1091 = vmatprep.subr.mxu0 0.0
        %1092 = vmatpush1.msra.mxu0 0.0
        %1093 = vmatprep.subr.mxu0 0.0
        %1094 = vmatpush1.msra.mxu0 0.0
        %1095 = vmatprep.subr.mxu0 0.0
        %1096 = vmatpush1.msra.mxu0 0.0
        %1097 = vmatprep.subr.mxu0 0.0
        %1098 = vmatpush1.msra.mxu0 0.0
        %1099 = vmatprep.subr.mxu0 0.0
        %1100 = vmatpush1.msra.mxu0 0.0
        %1101 = vmatprep.subr.mxu0 0.0
        %1102 = vmatpush1.msra.mxu0 0.0
        %1103 = vmatprep.subr.mxu0 0.0
        %1104 = vmatpush1.msra.mxu0 0.0
        %1105 = vmatprep.subr.mxu0 0.0
        %1106 = vmatpush1.msra.mxu0 0.0
        %1107 = vmatprep.subr.mxu0 0.0
        %1108 = vmatpush1.msra.mxu0 0.0
        %1109 = vmatprep.subr.mxu0 0.0
        %1110 = vmatpush1.msra.mxu0 0.0
        %1111 = vmatprep.subr.mxu0 0.0
        %1112 = vmatpush1.msra.mxu0 0.0
        %1113 = vmatprep.subr.mxu0 0.0
        %1114 = vmatpush1.msra.mxu0 0.0
        %1115 = vmatprep.subr.mxu0 0.0
        %1116 = vmatpush1.msra.mxu0 0.0
        %1117 = vmatprep.subr.mxu0 0.0
        %1118 = vmatpush1.msra.mxu0 0.0
        %1119 = vmatprep.subr.mxu0 0.0
        %1120 = vmatpush1.msra.mxu0 0.0
        %1121 = vmatprep.subr.mxu0 0.0
        %1122 = vmatpush1.msra.mxu0 0.0
        %1123 = vmatprep.mubr.f32.mxu0 0.0
        %v1124 = vand.u32 %v803, 4294901760
        %v1125 = vsub.f32 %v803, %v1124
        %v1126 = vand.u32 %v1125, 4294901760
        %1127 = vmatmul.mubr.f32.gmra.mrb[0].mxu0 %v1126
        %v1128 = vpop.f32.mrb[0].mxu0
        %v1129 = vadd.f32 %v1052, %v1128
        %v1130 = vpop.f32.mrb[0].mxu0
        %1131 = vdwg.mxu0
        %1132 = vmatprep.subr.mxu0 0.0
        %v1133 = vand.u32 %v788, 4294901760
        %v1134 = vsub.f32 %v788, %v1133
        %v1135 = vand.u32 %v1134, 4294901760
        %1136 = vmatpush1.msra.mxu0 %v1135
        %1137 = vmatprep.subr.mxu0 0.0
        %v1138 = vand.u32 %v790, 4294901760
        %v1139 = vsub.f32 %v790, %v1138
        %v1140 = vand.u32 %v1139, 4294901760
        %1141 = vmatpush1.msra.mxu0 %v1140
        %1142 = vmatprep.subr.mxu0 0.0
        %v1143 = vand.u32 %v792, 4294901760
        %v1144 = vsub.f32 %v792, %v1143
        %v1145 = vand.u32 %v1144, 4294901760
        %1146 = vmatpush1.msra.mxu0 %v1145
        %1147 = vmatprep.subr.mxu0 0.0
        %v1148 = vand.u32 %v794, 4294901760
        %v1149 = vsub.f32 %v794, %v1148
        %v1150 = vand.u32 %v1149, 4294901760
        %1151 = vmatpush1.msra.mxu0 %v1150
        %1152 = vmatprep.subr.mxu0 0.0
        %1153 = vmatpush1.msra.mxu0 0.0
        %1154 = vmatprep.subr.mxu0 0.0
        %1155 = vmatpush1.msra.mxu0 0.0
        %1156 = vmatprep.subr.mxu0 0.0
        %1157 = vmatpush1.msra.mxu0 0.0
        %1158 = vmatprep.subr.mxu0 0.0
        %1159 = vmatpush1.msra.mxu0 0.0
        %1160 = vmatprep.subr.mxu0 0.0
        %1161 = vmatpush1.msra.mxu0 0.0
        %1162 = vmatprep.subr.mxu0 0.0
        %1163 = vmatpush1.msra.mxu0 0.0
        %1164 = vmatprep.subr.mxu0 0.0
        %1165 = vmatpush1.msra.mxu0 0.0
        %1166 = vmatprep.subr.mxu0 0.0
        %1167 = vmatpush1.msra.mxu0 0.0
        %1168 = vmatprep.subr.mxu0 0.0
        %1169 = vmatpush1.msra.mxu0 0.0
        %1170 = vmatprep.subr.mxu0 0.0
        %1171 = vmatpush1.msra.mxu0 0.0
        %1172 = vmatprep.subr.mxu0 0.0
        %1173 = vmatpush1.msra.mxu0 0.0
        %1174 = vmatprep.subr.mxu0 0.0
        %1175 = vmatpush1.msra.mxu0 0.0
        %1176 = vmatprep.subr.mxu0 0.0
        %1177 = vmatpush1.msra.mxu0 0.0
        %1178 = vmatprep.subr.mxu0 0.0
        %1179 = vmatpush1.msra.mxu0 0.0
        %1180 = vmatprep.subr.mxu0 0.0
        %1181 = vmatpush1.msra.mxu0 0.0
        %1182 = vmatprep.subr.mxu0 0.0
        %1183 = vmatpush1.msra.mxu0 0.0
        %1184 = vmatprep.subr.mxu0 0.0
        %1185 = vmatpush1.msra.mxu0 0.0
        %1186 = vmatprep.subr.mxu0 0.0
        %1187 = vmatpush1.msra.mxu0 0.0
        %1188 = vmatprep.subr.mxu0 0.0
        %1189 = vmatpush1.msra.mxu0 0.0
        %1190 = vmatprep.subr.mxu0 0.0
        %1191 = vmatpush1.msra.mxu0 0.0
        %1192 = vmatprep.subr.mxu0 0.0
        %1193 = vmatpush1.msra.mxu0 0.0
        %1194 = vmatprep.subr.mxu0 0.0
        %1195 = vmatpush1.msra.mxu0 0.0
        %1196 = vmatprep.subr.mxu0 0.0
        %1197 = vmatpush1.msra.mxu0 0.0
        %1198 = vmatprep.subr.mxu0 0.0
        %1199 = vmatpush1.msra.mxu0 0.0
        %1200 = vmatprep.subr.mxu0 0.0
        %1201 = vmatpush1.msra.mxu0 0.0
        %1202 = vmatprep.subr.mxu0 0.0
        %1203 = vmatpush1.msra.mxu0 0.0
        %1204 = vmatprep.subr.mxu0 0.0
        %1205 = vmatpush1.msra.mxu0 0.0
        %1206 = vmatprep.subr.mxu0 0.0
        %1207 = vmatpush1.msra.mxu0 0.0
        %1208 = vmatprep.mubr.f32.mxu0 0.0
        %v1209 = vand.u32 %v803, 4294901760
        %1210 = vmatmul.mubr.f32.gmra.mrb[0].mxu0 %v1209
        %v1211 = vpop.f32.mrb[0].mxu0
        %v1212 = vadd.f32 %v1129, %v1211
        %v1213 = vpop.f32.mrb[0].mxu0
        %1214 = vdwg.mxu0
        %1215 = vmatprep.subr.mxu0 0.0
        %v1216 = vand.u32 %v788, 4294901760
        %1217 = vmatpush1.msra.mxu0 %v1216
        %1218 = vmatprep.subr.mxu0 0.0
        %v1219 = vand.u32 %v790, 4294901760
        %1220 = vmatpush1.msra.mxu0 %v1219
        %1221 = vmatprep.subr.mxu0 0.0
        %v1222 = vand.u32 %v792, 4294901760
        %1223 = vmatpush1.msra.mxu0 %v1222
        %1224 = vmatprep.subr.mxu0 0.0
        %v1225 = vand.u32 %v794, 4294901760
        %1226 = vmatpush1.msra.mxu0 %v1225
        %1227 = vmatprep.subr.mxu0 0.0
        %1228 = vmatpush1.msra.mxu0 0.0
        %1229 = vmatprep.subr.mxu0 0.0
        %1230 = vmatpush1.msra.mxu0 0.0
        %1231 = vmatprep.subr.mxu0 0.0
        %1232 = vmatpush1.msra.mxu0 0.0
        %1233 = vmatprep.subr.mxu0 0.0
        %1234 = vmatpush1.msra.mxu0 0.0
        %1235 = vmatprep.subr.mxu0 0.0
        %1236 = vmatpush1.msra.mxu0 0.0
        %1237 = vmatprep.subr.mxu0 0.0
        %1238 = vmatpush1.msra.mxu0 0.0
        %1239 = vmatprep.subr.mxu0 0.0
        %1240 = vmatpush1.msra.mxu0 0.0
        %1241 = vmatprep.subr.mxu0 0.0
        %1242 = vmatpush1.msra.mxu0 0.0
        %1243 = vmatprep.subr.mxu0 0.0
        %1244 = vmatpush1.msra.mxu0 0.0
        %1245 = vmatprep.subr.mxu0 0.0
        %1246 = vmatpush1.msra.mxu0 0.0
        %1247 = vmatprep.subr.mxu0 0.0
        %1248 = vmatpush1.msra.mxu0 0.0
        %1249 = vmatprep.subr.mxu0 0.0
        %1250 = vmatpush1.msra.mxu0 0.0
        %1251 = vmatprep.subr.mxu0 0.0
        %1252 = vmatpush1.msra.mxu0 0.0
        %1253 = vmatprep.subr.mxu0 0.0
        %1254 = vmatpush1.msra.mxu0 0.0
        %1255 = vmatprep.subr.mxu0 0.0
        %1256 = vmatpush1.msra.mxu0 0.0
        %1257 = vmatprep.subr.mxu0 0.0
        %1258 = vmatpush1.msra.mxu0 0.0
        %1259 = vmatprep.subr.mxu0 0.0
        %1260 = vmatpush1.msra.mxu0 0.0
        %1261 = vmatprep.subr.mxu0 0.0
        %1262 = vmatpush1.msra.mxu0 0.0
        %1263 = vmatprep.subr.mxu0 0.0
        %1264 = vmatpush1.msra.mxu0 0.0
        %1265 = vmatprep.subr.mxu0 0.0
        %1266 = vmatpush1.msra.mxu0 0.0
        %1267 = vmatprep.subr.mxu0 0.0
        %1268 = vmatpush1.msra.mxu0 0.0
        %1269 = vmatprep.subr.mxu0 0.0
        %1270 = vmatpush1.msra.mxu0 0.0
        %1271 = vmatprep.subr.mxu0 0.0
        %1272 = vmatpush1.msra.mxu0 0.0
        %1273 = vmatprep.subr.mxu0 0.0
        %1274 = vmatpush1.msra.mxu0 0.0
        %1275 = vmatprep.subr.mxu0 0.0
        %1276 = vmatpush1.msra.mxu0 0.0
        %1277 = vmatprep.subr.mxu0 0.0
        %1278 = vmatpush1.msra.mxu0 0.0
        %1279 = vmatprep.subr.mxu0 0.0
        %1280 = vmatpush1.msra.mxu0 0.0
        %1281 = vmatprep.subr.mxu0 0.0
        %1282 = vmatpush1.msra.mxu0 0.0
        %1283 = vmatprep.mubr.f32.mxu0 0.0
        %v1284 = vand.u32 %v803, 4294901760
        %1285 = vmatmul.mubr.f32.gmra.mrb[0].mxu0 %v1284
        %v1286 = vpop.f32.mrb[0].mxu0
        %v1287 = vadd.f32 %v1212, %v1286
        %v1288 = vpop.f32.mrb[0].mxu0
        %1289 = vdwg.mxu0
        %v1290 = vmul.f32 %v780, 0.35355338
        %vm1291 = vcmask 64512
        %v1293 = vsel %vm1291, %v1290, 0
        %v1296 = vsel %vm1291, %v1287, 0
        %1298 = vmatprep.subr.mxu0 0.0
        %v1299 = vand.u32 %v1296, 4294901760
        %1300 = vmatpush1.xpose.msra.mxu0 %v1299
        %1301 = vmatprep.subr.mxu0 0.0
        %1302 = vmatpush1.xpose.msra.mxu0 0.0
        %1303 = vmatprep.subr.mxu0 0.0
        %1304 = vmatpush1.xpose.msra.mxu0 0.0
        %1305 = vmatprep.subr.mxu0 0.0
        %1306 = vmatpush1.xpose.msra.mxu0 0.0
        %1307 = vmatprep.subr.mxu0 0.0
        %1308 = vmatpush1.xpose.msra.mxu0 0.0
        %1309 = vmatprep.subr.mxu0 0.0
        %1310 = vmatpush1.xpose.msra.mxu0 0.0
        %1311 = vmatprep.subr.mxu0 0.0
        %1312 = vmatpush1.xpose.msra.mxu0 0.0
        %1313 = vmatprep.subr.mxu0 0.0
        %1314 = vmatpush1.xpose.msra.mxu0 0.0
        %1315 = vmatprep.subr.mxu0 0.0
        %1316 = vmatpush1.xpose.msra.mxu0 0.0
        %1317 = vmatprep.subr.mxu0 0.0
        %1318 = vmatpush1.xpose.msra.mxu0 0.0
        %1319 = vmatprep.subr.mxu0 0.0
        %1320 = vmatpush1.xpose.msra.mxu0 0.0
        %1321 = vmatprep.subr.mxu0 0.0
        %1322 = vmatpush1.xpose.msra.mxu0 0.0
        %1323 = vmatprep.subr.mxu0 0.0
        %1324 = vmatpush1.xpose.msra.mxu0 0.0
        %1325 = vmatprep.subr.mxu0 0.0
        %1326 = vmatpush1.xpose.msra.mxu0 0.0
        %1327 = vmatprep.subr.mxu0 0.0
        %1328 = vmatpush1.xpose.msra.mxu0 0.0
        %1329 = vmatprep.subr.mxu0 0.0
        %1330 = vmatpush1.xpose.msra.mxu0 0.0
        %1331 = vmatprep.subr.mxu0 0.0
        %1332 = vmatpush1.xpose.msra.mxu0 0.0
        %1333 = vmatprep.subr.mxu0 0.0
        %1334 = vmatpush1.xpose.msra.mxu0 0.0
        %1335 = vmatprep.subr.mxu0 0.0
        %1336 = vmatpush1.xpose.msra.mxu0 0.0
        %1337 = vmatprep.subr.mxu0 0.0
        %1338 = vmatpush1.xpose.msra.mxu0 0.0
        %1339 = vmatprep.subr.mxu0 0.0
        %1340 = vmatpush1.xpose.msra.mxu0 0.0
        %1341 = vmatprep.subr.mxu0 0.0
        %1342 = vmatpush1.xpose.msra.mxu0 0.0
        %1343 = vmatprep.subr.mxu0 0.0
        %1344 = vmatpush1.xpose.msra.mxu0 0.0
        %1345 = vmatprep.subr.mxu0 0.0
        %1346 = vmatpush1.xpose.msra.mxu0 0.0
        %1347 = vmatprep.subr.mxu0 0.0
        %1348 = vmatpush1.xpose.msra.mxu0 0.0
        %1349 = vmatprep.subr.mxu0 0.0
        %1350 = vmatpush1.xpose.msra.mxu0 0.0
        %1351 = vmatprep.subr.mxu0 0.0
        %1352 = vmatpush1.xpose.msra.mxu0 0.0
        %1353 = vmatprep.subr.mxu0 0.0
        %1354 = vmatpush1.xpose.msra.mxu0 0.0
        %1355 = vmatprep.subr.mxu0 0.0
        %1356 = vmatpush1.xpose.msra.mxu0 0.0
        %1357 = vmatprep.subr.mxu0 0.0
        %1358 = vmatpush1.xpose.msra.mxu0 0.0
        %1359 = vmatprep.subr.mxu0 0.0
        %1360 = vmatpush1.xpose.msra.mxu0 0.0
        %1361 = vmatprep.subr.mxu0 0.0
        %1362 = vmatpush1.xpose.msra.mxu0 0.0
        %1363 = vmatprep.mubr.f32.mxu0 0.0
        %v1364 = vand.u32 %v1293, 4294901760
        %v1365 = vsub.f32 %v1293, %v1364
        %v1366 = vand.u32 %v1365, 4294901760
        %v1367 = vsub.f32 %v1365, %v1366
        %v1368 = vand.u32 %v1367, 4294901760
        %1369 = vmatmul.mubr.f32.gmra.mrb[0].mxu0 %v1368
        %v1370 = vpop.f32.mrb[0].mxu0
        %v1371 = vadd.f32 0.0, %v1370
        %v1372 = vpop.f32.mrb[0].mxu0
        %1373 = vdwg.mxu0
        %1374 = vmatprep.subr.mxu0 0.0
        %v1375 = vand.u32 %v1296, 4294901760
        %v1376 = vsub.f32 %v1296, %v1375
        %v1377 = vand.u32 %v1376, 4294901760
        %v1378 = vsub.f32 %v1376, %v1377
        %v1379 = vand.u32 %v1378, 4294901760
        %1380 = vmatpush1.xpose.msra.mxu0 %v1379
        %1381 = vmatprep.subr.mxu0 0.0
        %1382 = vmatpush1.xpose.msra.mxu0 0.0
        %1383 = vmatprep.subr.mxu0 0.0
        %1384 = vmatpush1.xpose.msra.mxu0 0.0
        %1385 = vmatprep.subr.mxu0 0.0
        %1386 = vmatpush1.xpose.msra.mxu0 0.0
        %1387 = vmatprep.subr.mxu0 0.0
        %1388 = vmatpush1.xpose.msra.mxu0 0.0
        %1389 = vmatprep.subr.mxu0 0.0
        %1390 = vmatpush1.xpose.msra.mxu0 0.0
        %1391 = vmatprep.subr.mxu0 0.0
        %1392 = vmatpush1.xpose.msra.mxu0 0.0
        %1393 = vmatprep.subr.mxu0 0.0
        %1394 = vmatpush1.xpose.msra.mxu0 0.0
        %1395 = vmatprep.subr.mxu0 0.0
        %1396 = vmatpush1.xpose.msra.mxu0 0.0
        %1397 = vmatprep.subr.mxu0 0.0
        %1398 = vmatpush1.xpose.msra.mxu0 0.0
        %1399 = vmatprep.subr.mxu0 0.0
        %1400 = vmatpush1.xpose.msra.mxu0 0.0
        %1401 = vmatprep.subr.mxu0 0.0
        %1402 = vmatpush1.xpose.msra.mxu0 0.0
        %1403 = vmatprep.subr.mxu0 0.0
        %1404 = vmatpush1.xpose.msra.mxu0 0.0
        %1405 = vmatprep.subr.mxu0 0.0
        %1406 = vmatpush1.xpose.msra.mxu0 0.0
        %1407 = vmatprep.subr.mxu0 0.0
        %1408 = vmatpush1.xpose.msra.mxu0 0.0
        %1409 = vmatprep.subr.mxu0 0.0
        %1410 = vmatpush1.xpose.msra.mxu0 0.0
        %1411 = vmatprep.subr.mxu0 0.0
        %1412 = vmatpush1.xpose.msra.mxu0 0.0
        %1413 = vmatprep.subr.mxu0 0.0
        %1414 = vmatpush1.xpose.msra.mxu0 0.0
        %1415 = vmatprep.subr.mxu0 0.0
        %1416 = vmatpush1.xpose.msra.mxu0 0.0
        %1417 = vmatprep.subr.mxu0 0.0
        %1418 = vmatpush1.xpose.msra.mxu0 0.0
        %1419 = vmatprep.subr.mxu0 0.0
        %1420 = vmatpush1.xpose.msra.mxu0 0.0
        %1421 = vmatprep.subr.mxu0 0.0
        %1422 = vmatpush1.xpose.msra.mxu0 0.0
        %1423 = vmatprep.subr.mxu0 0.0
        %1424 = vmatpush1.xpose.msra.mxu0 0.0
        %1425 = vmatprep.subr.mxu0 0.0
        %1426 = vmatpush1.xpose.msra.mxu0 0.0
        %1427 = vmatprep.subr.mxu0 0.0
        %1428 = vmatpush1.xpose.msra.mxu0 0.0
        %1429 = vmatprep.subr.mxu0 0.0
        %1430 = vmatpush1.xpose.msra.mxu0 0.0
        %1431 = vmatprep.subr.mxu0 0.0
        %1432 = vmatpush1.xpose.msra.mxu0 0.0
        %1433 = vmatprep.subr.mxu0 0.0
        %1434 = vmatpush1.xpose.msra.mxu0 0.0
        %1435 = vmatprep.subr.mxu0 0.0
        %1436 = vmatpush1.xpose.msra.mxu0 0.0
        %1437 = vmatprep.subr.mxu0 0.0
        %1438 = vmatpush1.xpose.msra.mxu0 0.0
        %1439 = vmatprep.subr.mxu0 0.0
        %1440 = vmatpush1.xpose.msra.mxu0 0.0
        %1441 = vmatprep.subr.mxu0 0.0
        %1442 = vmatpush1.xpose.msra.mxu0 0.0
        %1443 = vmatprep.mubr.f32.mxu0 0.0
        %v1444 = vand.u32 %v1293, 4294901760
        %1445 = vmatmul.mubr.f32.gmra.mrb[0].mxu0 %v1444
        %v1446 = vpop.f32.mrb[0].mxu0
        %v1447 = vadd.f32 %v1371, %v1446
        %v1448 = vpop.f32.mrb[0].mxu0
        %1449 = vdwg.mxu0
        %1450 = vmatprep.subr.mxu0 0.0
        %v1451 = vand.u32 %v1296, 4294901760
        %v1452 = vsub.f32 %v1296, %v1451
        %1453 = vmatpush1.xpose.msra.mxu0 %v1452
        %1454 = vmatprep.subr.mxu0 0.0
        %1455 = vmatpush1.xpose.msra.mxu0 0.0
        %1456 = vmatprep.subr.mxu0 0.0
        %1457 = vmatpush1.xpose.msra.mxu0 0.0
        %1458 = vmatprep.subr.mxu0 0.0
        %1459 = vmatpush1.xpose.msra.mxu0 0.0
        %1460 = vmatprep.subr.mxu0 0.0
        %1461 = vmatpush1.xpose.msra.mxu0 0.0
        %1462 = vmatprep.subr.mxu0 0.0
        %1463 = vmatpush1.xpose.msra.mxu0 0.0
        %1464 = vmatprep.subr.mxu0 0.0
        %1465 = vmatpush1.xpose.msra.mxu0 0.0
        %1466 = vmatprep.subr.mxu0 0.0
        %1467 = vmatpush1.xpose.msra.mxu0 0.0
        %1468 = vmatprep.subr.mxu0 0.0
        %1469 = vmatpush1.xpose.msra.mxu0 0.0
        %1470 = vmatprep.subr.mxu0 0.0
        %1471 = vmatpush1.xpose.msra.mxu0 0.0
        %1472 = vmatprep.subr.mxu0 0.0
        %1473 = vmatpush1.xpose.msra.mxu0 0.0
        %1474 = vmatprep.subr.mxu0 0.0
        %1475 = vmatpush1.xpose.msra.mxu0 0.0
        %1476 = vmatprep.subr.mxu0 0.0
        %1477 = vmatpush1.xpose.msra.mxu0 0.0
        %1478 = vmatprep.subr.mxu0 0.0
        %1479 = vmatpush1.xpose.msra.mxu0 0.0
        %1480 = vmatprep.subr.mxu0 0.0
        %1481 = vmatpush1.xpose.msra.mxu0 0.0
        %1482 = vmatprep.subr.mxu0 0.0
        %1483 = vmatpush1.xpose.msra.mxu0 0.0
        %1484 = vmatprep.subr.mxu0 0.0
        %1485 = vmatpush1.xpose.msra.mxu0 0.0
        %1486 = vmatprep.subr.mxu0 0.0
        %1487 = vmatpush1.xpose.msra.mxu0 0.0
        %1488 = vmatprep.subr.mxu0 0.0
        %1489 = vmatpush1.xpose.msra.mxu0 0.0
        %1490 = vmatprep.subr.mxu0 0.0
        %1491 = vmatpush1.xpose.msra.mxu0 0.0
        %1492 = vmatprep.subr.mxu0 0.0
        %1493 = vmatpush1.xpose.msra.mxu0 0.0
        %1494 = vmatprep.subr.mxu0 0.0
        %1495 = vmatpush1.xpose.msra.mxu0 0.0
        %1496 = vmatprep.subr.mxu0 0.0
        %1497 = vmatpush1.xpose.msra.mxu0 0.0
        %1498 = vmatprep.subr.mxu0 0.0
        %1499 = vmatpush1.xpose.msra.mxu0 0.0
        %1500 = vmatprep.subr.mxu0 0.0
        %1501 = vmatpush1.xpose.msra.mxu0 0.0
        %1502 = vmatprep.subr.mxu0 0.0
        %1503 = vmatpush1.xpose.msra.mxu0 0.0
        %1504 = vmatprep.subr.mxu0 0.0
        %1505 = vmatpush1.xpose.msra.mxu0 0.0
        %1506 = vmatprep.subr.mxu0 0.0
        %1507 = vmatpush1.xpose.msra.mxu0 0.0
        %1508 = vmatprep.subr.mxu0 0.0
        %1509 = vmatpush1.xpose.msra.mxu0 0.0
        %1510 = vmatprep.subr.mxu0 0.0
        %1511 = vmatpush1.xpose.msra.mxu0 0.0
        %1512 = vmatprep.subr.mxu0 0.0
        %1513 = vmatpush1.xpose.msra.mxu0 0.0
        %1514 = vmatprep.subr.mxu0 0.0
        %1515 = vmatpush1.xpose.msra.mxu0 0.0
        %1516 = vmatprep.mubr.f32.mxu0 0.0
        %v1517 = vand.u32 %v1293, 4294901760
        %v1518 = vsub.f32 %v1293, %v1517
        %1519 = vmatmul.mubr.f32.gmra.mrb[0].mxu0 %v1518
        %v1520 = vpop.f32.mrb[0].mxu0
        %v1521 = vadd.f32 %v1447, %v1520
        %v1522 = vpop.f32.mrb[0].mxu0
        %1523 = vdwg.mxu0
        %1524 = vmatprep.subr.mxu0 0.0
        %v1525 = vand.u32 %v1296, 4294901760
        %1526 = vmatpush1.xpose.msra.mxu0 %v1525
        %1527 = vmatprep.subr.mxu0 0.0
        %1528 = vmatpush1.xpose.msra.mxu0 0.0
        %1529 = vmatprep.subr.mxu0 0.0
        %1530 = vmatpush1.xpose.msra.mxu0 0.0
        %1531 = vmatprep.subr.mxu0 0.0
        %1532 = vmatpush1.xpose.msra.mxu0 0.0
        %1533 = vmatprep.subr.mxu0 0.0
        %1534 = vmatpush1.xpose.msra.mxu0 0.0
        %1535 = vmatprep.subr.mxu0 0.0
        %1536 = vmatpush1.xpose.msra.mxu0 0.0
        %1537 = vmatprep.subr.mxu0 0.0
        %1538 = vmatpush1.xpose.msra.mxu0 0.0
        %1539 = vmatprep.subr.mxu0 0.0
        %1540 = vmatpush1.xpose.msra.mxu0 0.0
        %1541 = vmatprep.subr.mxu0 0.0
        %1542 = vmatpush1.xpose.msra.mxu0 0.0
        %1543 = vmatprep.subr.mxu0 0.0
        %1544 = vmatpush1.xpose.msra.mxu0 0.0
        %1545 = vmatprep.subr.mxu0 0.0
        %1546 = vmatpush1.xpose.msra.mxu0 0.0
        %1547 = vmatprep.subr.mxu0 0.0
        %1548 = vmatpush1.xpose.msra.mxu0 0.0
        %1549 = vmatprep.subr.mxu0 0.0
        %1550 = vmatpush1.xpose.msra.mxu0 0.0
        %1551 = vmatprep.subr.mxu0 0.0
        %1552 = vmatpush1.xpose.msra.mxu0 0.0
        %1553 = vmatprep.subr.mxu0 0.0
        %1554 = vmatpush1.xpose.msra.mxu0 0.0
        %1555 = vmatprep.subr.mxu0 0.0
        %1556 = vmatpush1.xpose.msra.mxu0 0.0
        %1557 = vmatprep.subr.mxu0 0.0
        %1558 = vmatpush1.xpose.msra.mxu0 0.0
        %1559 = vmatprep.subr.mxu0 0.0
        %1560 = vmatpush1.xpose.msra.mxu0 0.0
        %1561 = vmatprep.subr.mxu0 0.0
        %1562 = vmatpush1.xpose.msra.mxu0 0.0
        %1563 = vmatprep.subr.mxu0 0.0
        %1564 = vmatpush1.xpose.msra.mxu0 0.0
        %1565 = vmatprep.subr.mxu0 0.0
        %1566 = vmatpush1.xpose.msra.mxu0 0.0
        %1567 = vmatprep.subr.mxu0 0.0
        %1568 = vmatpush1.xpose.msra.mxu0 0.0
        %1569 = vmatprep.subr.mxu0 0.0
        %1570 = vmatpush1.xpose.msra.mxu0 0.0
        %1571 = vmatprep.subr.mxu0 0.0
        %1572 = vmatpush1.xpose.msra.mxu0 0.0
        %1573 = vmatprep.subr.mxu0 0.0
        %1574 = vmatpush1.xpose.msra.mxu0 0.0
        %1575 = vmatprep.subr.mxu0 0.0
        %1576 = vmatpush1.xpose.msra.mxu0 0.0
        %1577 = vmatprep.subr.mxu0 0.0
        %1578 = vmatpush1.xpose.msra.mxu0 0.0
        %1579 = vmatprep.subr.mxu0 0.0
        %1580 = vmatpush1.xpose.msra.mxu0 0.0
        %1581 = vmatprep.subr.mxu0 0.0
        %1582 = vmatpush1.xpose.msra.mxu0 0.0
        %1583 = vmatprep.subr.mxu0 0.0
        %1584 = vmatpush1.xpose.msra.mxu0 0.0
        %1585 = vmatprep.subr.mxu0 0.0
        %1586 = vmatpush1.xpose.msra.mxu0 0.0
        %1587 = vmatprep.subr.mxu0 0.0
        %1588 = vmatpush1.xpose.msra.mxu0 0.0
        %1589 = vmatprep.mubr.f32.mxu0 0.0
        %v1590 = vand.u32 %v1293, 4294901760
        %v1591 = vsub.f32 %v1293, %v1590
        %v1592 = vand.u32 %v1591, 4294901760
        %1593 = vmatmul.mubr.f32.gmra.mrb[0].mxu0 %v1592
        %v1594 = vpop.f32.mrb[0].mxu0
        %v1595 = vadd.f32 %v1521, %v1594
        %v1596 = vpop.f32.mrb[0].mxu0
        %1597 = vdwg.mxu0
        %1598 = vmatprep.subr.mxu0 0.0
        %v1599 = vand.u32 %v1296, 4294901760
        %v1600 = vsub.f32 %v1296, %v1599
        %v1601 = vand.u32 %v1600, 4294901760
        %1602 = vmatpush1.xpose.msra.mxu0 %v1601
        %1603 = vmatprep.subr.mxu0 0.0
        %1604 = vmatpush1.xpose.msra.mxu0 0.0
        %1605 = vmatprep.subr.mxu0 0.0
        %1606 = vmatpush1.xpose.msra.mxu0 0.0
        %1607 = vmatprep.subr.mxu0 0.0
        %1608 = vmatpush1.xpose.msra.mxu0 0.0
        %1609 = vmatprep.subr.mxu0 0.0
        %1610 = vmatpush1.xpose.msra.mxu0 0.0
        %1611 = vmatprep.subr.mxu0 0.0
        %1612 = vmatpush1.xpose.msra.mxu0 0.0
        %1613 = vmatprep.subr.mxu0 0.0
        %1614 = vmatpush1.xpose.msra.mxu0 0.0
        %1615 = vmatprep.subr.mxu0 0.0
        %1616 = vmatpush1.xpose.msra.mxu0 0.0
        %1617 = vmatprep.subr.mxu0 0.0
        %1618 = vmatpush1.xpose.msra.mxu0 0.0
        %1619 = vmatprep.subr.mxu0 0.0
        %1620 = vmatpush1.xpose.msra.mxu0 0.0
        %1621 = vmatprep.subr.mxu0 0.0
        %1622 = vmatpush1.xpose.msra.mxu0 0.0
        %1623 = vmatprep.subr.mxu0 0.0
        %1624 = vmatpush1.xpose.msra.mxu0 0.0
        %1625 = vmatprep.subr.mxu0 0.0
        %1626 = vmatpush1.xpose.msra.mxu0 0.0
        %1627 = vmatprep.subr.mxu0 0.0
        %1628 = vmatpush1.xpose.msra.mxu0 0.0
        %1629 = vmatprep.subr.mxu0 0.0
        %1630 = vmatpush1.xpose.msra.mxu0 0.0
        %1631 = vmatprep.subr.mxu0 0.0
        %1632 = vmatpush1.xpose.msra.mxu0 0.0
        %1633 = vmatprep.subr.mxu0 0.0
        %1634 = vmatpush1.xpose.msra.mxu0 0.0
        %1635 = vmatprep.subr.mxu0 0.0
        %1636 = vmatpush1.xpose.msra.mxu0 0.0
        %1637 = vmatprep.subr.mxu0 0.0
        %1638 = vmatpush1.xpose.msra.mxu0 0.0
        %1639 = vmatprep.subr.mxu0 0.0
        %1640 = vmatpush1.xpose.msra.mxu0 0.0
        %1641 = vmatprep.subr.mxu0 0.0
        %1642 = vmatpush1.xpose.msra.mxu0 0.0
        %1643 = vmatprep.subr.mxu0 0.0
        %1644 = vmatpush1.xpose.msra.mxu0 0.0
        %1645 = vmatprep.subr.mxu0 0.0
        %1646 = vmatpush1.xpose.msra.mxu0 0.0
        %1647 = vmatprep.subr.mxu0 0.0
        %1648 = vmatpush1.xpose.msra.mxu0 0.0
        %1649 = vmatprep.subr.mxu0 0.0
        %1650 = vmatpush1.xpose.msra.mxu0 0.0
        %1651 = vmatprep.subr.mxu0 0.0
        %1652 = vmatpush1.xpose.msra.mxu0 0.0
        %1653 = vmatprep.subr.mxu0 0.0
        %1654 = vmatpush1.xpose.msra.mxu0 0.0
        %1655 = vmatprep.subr.mxu0 0.0
        %1656 = vmatpush1.xpose.msra.mxu0 0.0
        %1657 = vmatprep.subr.mxu0 0.0
        %1658 = vmatpush1.xpose.msra.mxu0 0.0
        %1659 = vmatprep.subr.mxu0 0.0
        %1660 = vmatpush1.xpose.msra.mxu0 0.0
        %1661 = vmatprep.subr.mxu0 0.0
        %1662 = vmatpush1.xpose.msra.mxu0 0.0
        %1663 = vmatprep.subr.mxu0 0.0
        %1664 = vmatpush1.xpose.msra.mxu0 0.0
        %1665 = vmatprep.mubr.f32.mxu0 0.0
        %v1666 = vand.u32 %v1293, 4294901760
        %1667 = vmatmul.mubr.f32.gmra.mrb[0].mxu0 %v1666
        %v1668 = vpop.f32.mrb[0].mxu0
        %v1669 = vadd.f32 %v1595, %v1668
        %v1670 = vpop.f32.mrb[0].mxu0
        %1671 = vdwg.mxu0
        %1672 = vmatprep.subr.mxu0 0.0
        %v1673 = vand.u32 %v1296, 4294901760
        %1674 = vmatpush1.xpose.msra.mxu0 %v1673
        %1675 = vmatprep.subr.mxu0 0.0
        %1676 = vmatpush1.xpose.msra.mxu0 0.0
        %1677 = vmatprep.subr.mxu0 0.0
        %1678 = vmatpush1.xpose.msra.mxu0 0.0
        %1679 = vmatprep.subr.mxu0 0.0
        %1680 = vmatpush1.xpose.msra.mxu0 0.0
        %1681 = vmatprep.subr.mxu0 0.0
        %1682 = vmatpush1.xpose.msra.mxu0 0.0
        %1683 = vmatprep.subr.mxu0 0.0
        %1684 = vmatpush1.xpose.msra.mxu0 0.0
        %1685 = vmatprep.subr.mxu0 0.0
        %1686 = vmatpush1.xpose.msra.mxu0 0.0
        %1687 = vmatprep.subr.mxu0 0.0
        %1688 = vmatpush1.xpose.msra.mxu0 0.0
        %1689 = vmatprep.subr.mxu0 0.0
        %1690 = vmatpush1.xpose.msra.mxu0 0.0
        %1691 = vmatprep.subr.mxu0 0.0
        %1692 = vmatpush1.xpose.msra.mxu0 0.0
        %1693 = vmatprep.subr.mxu0 0.0
        %1694 = vmatpush1.xpose.msra.mxu0 0.0
        %1695 = vmatprep.subr.mxu0 0.0
        %1696 = vmatpush1.xpose.msra.mxu0 0.0
        %1697 = vmatprep.subr.mxu0 0.0
        %1698 = vmatpush1.xpose.msra.mxu0 0.0
        %1699 = vmatprep.subr.mxu0 0.0
        %1700 = vmatpush1.xpose.msra.mxu0 0.0
        %1701 = vmatprep.subr.mxu0 0.0
        %1702 = vmatpush1.xpose.msra.mxu0 0.0
        %1703 = vmatprep.subr.mxu0 0.0
        %1704 = vmatpush1.xpose.msra.mxu0 0.0
        %1705 = vmatprep.subr.mxu0 0.0
        %1706 = vmatpush1.xpose.msra.mxu0 0.0
        %1707 = vmatprep.subr.mxu0 0.0
        %1708 = vmatpush1.xpose.msra.mxu0 0.0
        %1709 = vmatprep.subr.mxu0 0.0
        %1710 = vmatpush1.xpose.msra.mxu0 0.0
        %1711 = vmatprep.subr.mxu0 0.0
        %1712 = vmatpush1.xpose.msra.mxu0 0.0
        %1713 = vmatprep.subr.mxu0 0.0
        %1714 = vmatpush1.xpose.msra.mxu0 0.0
        %1715 = vmatprep.subr.mxu0 0.0
        %1716 = vmatpush1.xpose.msra.mxu0 0.0
        %1717 = vmatprep.subr.mxu0 0.0
        %1718 = vmatpush1.xpose.msra.mxu0 0.0
        %1719 = vmatprep.subr.mxu0 0.0
        %1720 = vmatpush1.xpose.msra.mxu0 0.0
        %1721 = vmatprep.subr.mxu0 0.0
        %1722 = vmatpush1.xpose.msra.mxu0 0.0
        %1723 = vmatprep.subr.mxu0 0.0
        %1724 = vmatpush1.xpose.msra.mxu0 0.0
        %1725 = vmatprep.subr.mxu0 0.0
        %1726 = vmatpush1.xpose.msra.mxu0 0.0
        %1727 = vmatprep.subr.mxu0 0.0
        %1728 = vmatpush1.xpose.msra.mxu0 0.0
        %1729 = vmatprep.subr.mxu0 0.0
        %1730 = vmatpush1.xpose.msra.mxu0 0.0
        %1731 = vmatprep.subr.mxu0 0.0
        %1732 = vmatpush1.xpose.msra.mxu0 0.0
        %1733 = vmatprep.subr.mxu0 0.0
        %1734 = vmatpush1.xpose.msra.mxu0 0.0
        %1735 = vmatprep.subr.mxu0 0.0
        %1736 = vmatpush1.xpose.msra.mxu0 0.0
        %1737 = vmatprep.mubr.f32.mxu0 0.0
        %v1738 = vand.u32 %v1293, 4294901760
        %1739 = vmatmul.mubr.f32.gmra.mrb[0].mxu0 %v1738
        %v1740 = vpop.f32.mrb[0].mxu0
        %v1741 = vadd.f32 %v1669, %v1740
        %v1742 = vpop.f32.mrb[0].mxu0
        %1743 = vdwg.mxu0
        %v1744 = vsel %vm1291, %v1741, -inf
        %1745 = vmax.xlane.f32.xlu0 %v1744
        %v1746 = vpop.xlane.xlu0 %1745
        %v1747 = vsub.f32 %v1741, %v1746
        %v1748 = vmul.f32 %v1747, 1.442695
        %v1749 = vpow.pop %v1748
        %v1750 = vsel %vm1291, %v1749, 0.0
        %1751 = vadd.xlane.f32.xlu0 %v1750
        %v1752 = vpop.xlane.xlu0 %1751
        %v1753 = vrcp.pop %v1752
        %v1754 = vmul.f32 1.0, %v1753
        %v1755 = vmul.f32 %v1749, %v1754
        %1756 = vrot.lane.b32.xlu0 %v1287, 96
        %v1757 = vpop.permute.xlu0 %1756
        %v1760 = vsel %vm1291, %v1755, 0
        %1762 = vmatprep.subr.mxu0 0.0
        %v1763 = vand.u32 %v1757, 4294901760
        %1764 = vmatpush1.msra.mxu0 %v1763
        %1765 = vmatprep.subr.mxu0 0.0
        %1766 = vmatpush1.msra.mxu0 0.0
        %1767 = vmatprep.subr.mxu0 0.0
        %1768 = vmatpush1.msra.mxu0 0.0
        %1769 = vmatprep.subr.mxu0 0.0
        %1770 = vmatpush1.msra.mxu0 0.0
        %1771 = vmatprep.subr.mxu0 0.0
        %1772 = vmatpush1.msra.mxu0 0.0
        %1773 = vmatprep.subr.mxu0 0.0
        %1774 = vmatpush1.msra.mxu0 0.0
        %1775 = vmatprep.subr.mxu0 0.0
        %1776 = vmatpush1.msra.mxu0 0.0
        %1777 = vmatprep.subr.mxu0 0.0
        %1778 = vmatpush1.msra.mxu0 0.0
        %1779 = vmatprep.subr.mxu0 0.0
        %1780 = vmatpush1.msra.mxu0 0.0
        %1781 = vmatprep.subr.mxu0 0.0
        %1782 = vmatpush1.msra.mxu0 0.0
        %1783 = vmatprep.subr.mxu0 0.0
        %1784 = vmatpush1.msra.mxu0 0.0
        %1785 = vmatprep.subr.mxu0 0.0
        %1786 = vmatpush1.msra.mxu0 0.0
        %1787 = vmatprep.subr.mxu0 0.0
        %1788 = vmatpush1.msra.mxu0 0.0
        %1789 = vmatprep.subr.mxu0 0.0
        %1790 = vmatpush1.msra.mxu0 0.0
        %1791 = vmatprep.subr.mxu0 0.0
        %1792 = vmatpush1.msra.mxu0 0.0
        %1793 = vmatprep.subr.mxu0 0.0
        %1794 = vmatpush1.msra.mxu0 0.0
        %1795 = vmatprep.subr.mxu0 0.0
        %1796 = vmatpush1.msra.mxu0 0.0
        %1797 = vmatprep.subr.mxu0 0.0
        %1798 = vmatpush1.msra.mxu0 0.0
        %1799 = vmatprep.subr.mxu0 0.0
        %1800 = vmatpush1.msra.mxu0 0.0
        %1801 = vmatprep.subr.mxu0 0.0
        %1802 = vmatpush1.msra.mxu0 0.0
        %1803 = vmatprep.subr.mxu0 0.0
        %1804 = vmatpush1.msra.mxu0 0.0
        %1805 = vmatprep.subr.mxu0 0.0
        %1806 = vmatpush1.msra.mxu0 0.0
        %1807 = vmatprep.subr.mxu0 0.0
        %1808 = vmatpush1.msra.mxu0 0.0
        %1809 = vmatprep.subr.mxu0 0.0
        %1810 = vmatpush1.msra.mxu0 0.0
        %1811 = vmatprep.subr.mxu0 0.0
        %1812 = vmatpush1.msra.mxu0 0.0
        %1813 = vmatprep.subr.mxu0 0.0
        %1814 = vmatpush1.msra.mxu0 0.0
        %1815 = vmatprep.subr.mxu0 0.0
        %1816 = vmatpush1.msra.mxu0 0.0
        %1817 = vmatprep.subr.mxu0 0.0
        %1818 = vmatpush1.msra.mxu0 0.0
        %1819 = vmatprep.subr.mxu0 0.0
        %1820 = vmatpush1.msra.mxu0 0.0
        %1821 = vmatprep.subr.mxu0 0.0
        %1822 = vmatpush1.msra.mxu0 0.0
        %1823 = vmatprep.subr.mxu0 0.0
        %1824 = vmatpush1.msra.mxu0 0.0
        %1825 = vmatprep.subr.mxu0 0.0
        %1826 = vmatpush1.msra.mxu0 0.0
        %1827 = vmatprep.mubr.f32.mxu0 0.0
        %v1828 = vand.u32 %v1760, 4294901760
        %v1829 = vsub.f32 %v1760, %v1828
        %v1830 = vand.u32 %v1829, 4294901760
        %v1831 = vsub.f32 %v1829, %v1830
        %v1832 = vand.u32 %v1831, 4294901760
        %1833 = vmatmul.mubr.f32.gmra.mrb[0].mxu0 %v1832
        %v1834 = vpop.f32.mrb[0].mxu0
        %v1835 = vadd.f32 0.0, %v1834
        %v1836 = vpop.f32.mrb[0].mxu0
        %1837 = vdwg.mxu0
        %1838 = vmatprep.subr.mxu0 0.0
        %v1839 = vand.u32 %v1757, 4294901760
        %v1840 = vsub.f32 %v1757, %v1839
        %v1841 = vand.u32 %v1840, 4294901760
        %v1842 = vsub.f32 %v1840, %v1841
        %v1843 = vand.u32 %v1842, 4294901760
        %1844 = vmatpush1.msra.mxu0 %v1843
        %1845 = vmatprep.subr.mxu0 0.0
        %1846 = vmatpush1.msra.mxu0 0.0
        %1847 = vmatprep.subr.mxu0 0.0
        %1848 = vmatpush1.msra.mxu0 0.0
        %1849 = vmatprep.subr.mxu0 0.0
        %1850 = vmatpush1.msra.mxu0 0.0
        %1851 = vmatprep.subr.mxu0 0.0
        %1852 = vmatpush1.msra.mxu0 0.0
        %1853 = vmatprep.subr.mxu0 0.0
        %1854 = vmatpush1.msra.mxu0 0.0
        %1855 = vmatprep.subr.mxu0 0.0
        %1856 = vmatpush1.msra.mxu0 0.0
        %1857 = vmatprep.subr.mxu0 0.0
        %1858 = vmatpush1.msra.mxu0 0.0
        %1859 = vmatprep.subr.mxu0 0.0
        %1860 = vmatpush1.msra.mxu0 0.0
        %1861 = vmatprep.subr.mxu0 0.0
        %1862 = vmatpush1.msra.mxu0 0.0
        %1863 = vmatprep.subr.mxu0 0.0
        %1864 = vmatpush1.msra.mxu0 0.0
        %1865 = vmatprep.subr.mxu0 0.0
        %1866 = vmatpush1.msra.mxu0 0.0
        %1867 = vmatprep.subr.mxu0 0.0
        %1868 = vmatpush1.msra.mxu0 0.0
        %1869 = vmatprep.subr.mxu0 0.0
        %1870 = vmatpush1.msra.mxu0 0.0
        %1871 = vmatprep.subr.mxu0 0.0
        %1872 = vmatpush1.msra.mxu0 0.0
        %1873 = vmatprep.subr.mxu0 0.0
        %1874 = vmatpush1.msra.mxu0 0.0
        %1875 = vmatprep.subr.mxu0 0.0
        %1876 = vmatpush1.msra.mxu0 0.0
        %1877 = vmatprep.subr.mxu0 0.0
        %1878 = vmatpush1.msra.mxu0 0.0
        %1879 = vmatprep.subr.mxu0 0.0
        %1880 = vmatpush1.msra.mxu0 0.0
        %1881 = vmatprep.subr.mxu0 0.0
        %1882 = vmatpush1.msra.mxu0 0.0
        %1883 = vmatprep.subr.mxu0 0.0
        %1884 = vmatpush1.msra.mxu0 0.0
        %1885 = vmatprep.subr.mxu0 0.0
        %1886 = vmatpush1.msra.mxu0 0.0
        %1887 = vmatprep.subr.mxu0 0.0
        %1888 = vmatpush1.msra.mxu0 0.0
        %1889 = vmatprep.subr.mxu0 0.0
        %1890 = vmatpush1.msra.mxu0 0.0
        %1891 = vmatprep.subr.mxu0 0.0
        %1892 = vmatpush1.msra.mxu0 0.0
        %1893 = vmatprep.subr.mxu0 0.0
        %1894 = vmatpush1.msra.mxu0 0.0
        %1895 = vmatprep.subr.mxu0 0.0
        %1896 = vmatpush1.msra.mxu0 0.0
        %1897 = vmatprep.subr.mxu0 0.0
        %1898 = vmatpush1.msra.mxu0 0.0
        %1899 = vmatprep.subr.mxu0 0.0
        %1900 = vmatpush1.msra.mxu0 0.0
        %1901 = vmatprep.subr.mxu0 0.0
        %1902 = vmatpush1.msra.mxu0 0.0
        %1903 = vmatprep.subr.mxu0 0.0
        %1904 = vmatpush1.msra.mxu0 0.0
        %1905 = vmatprep.subr.mxu0 0.0
        %1906 = vmatpush1.msra.mxu0 0.0
        %1907 = vmatprep.mubr.f32.mxu0 0.0
        %v1908 = vand.u32 %v1760, 4294901760
        %1909 = vmatmul.mubr.f32.gmra.mrb[0].mxu0 %v1908
        %v1910 = vpop.f32.mrb[0].mxu0
        %v1911 = vadd.f32 %v1835, %v1910
        %v1912 = vpop.f32.mrb[0].mxu0
        %1913 = vdwg.mxu0
        %1914 = vmatprep.subr.mxu0 0.0
        %v1915 = vand.u32 %v1757, 4294901760
        %v1916 = vsub.f32 %v1757, %v1915
        %1917 = vmatpush1.msra.mxu0 %v1916
        %1918 = vmatprep.subr.mxu0 0.0
        %1919 = vmatpush1.msra.mxu0 0.0
        %1920 = vmatprep.subr.mxu0 0.0
        %1921 = vmatpush1.msra.mxu0 0.0
        %1922 = vmatprep.subr.mxu0 0.0
        %1923 = vmatpush1.msra.mxu0 0.0
        %1924 = vmatprep.subr.mxu0 0.0
        %1925 = vmatpush1.msra.mxu0 0.0
        %1926 = vmatprep.subr.mxu0 0.0
        %1927 = vmatpush1.msra.mxu0 0.0
        %1928 = vmatprep.subr.mxu0 0.0
        %1929 = vmatpush1.msra.mxu0 0.0
        %1930 = vmatprep.subr.mxu0 0.0
        %1931 = vmatpush1.msra.mxu0 0.0
        %1932 = vmatprep.subr.mxu0 0.0
        %1933 = vmatpush1.msra.mxu0 0.0
        %1934 = vmatprep.subr.mxu0 0.0
        %1935 = vmatpush1.msra.mxu0 0.0
        %1936 = vmatprep.subr.mxu0 0.0
        %1937 = vmatpush1.msra.mxu0 0.0
        %1938 = vmatprep.subr.mxu0 0.0
        %1939 = vmatpush1.msra.mxu0 0.0
        %1940 = vmatprep.subr.mxu0 0.0
        %1941 = vmatpush1.msra.mxu0 0.0
        %1942 = vmatprep.subr.mxu0 0.0
        %1943 = vmatpush1.msra.mxu0 0.0
        %1944 = vmatprep.subr.mxu0 0.0
        %1945 = vmatpush1.msra.mxu0 0.0
        %1946 = vmatprep.subr.mxu0 0.0
        %1947 = vmatpush1.msra.mxu0 0.0
        %1948 = vmatprep.subr.mxu0 0.0
        %1949 = vmatpush1.msra.mxu0 0.0
        %1950 = vmatprep.subr.mxu0 0.0
        %1951 = vmatpush1.msra.mxu0 0.0
        %1952 = vmatprep.subr.mxu0 0.0
        %1953 = vmatpush1.msra.mxu0 0.0
        %1954 = vmatprep.subr.mxu0 0.0
        %1955 = vmatpush1.msra.mxu0 0.0
        %1956 = vmatprep.subr.mxu0 0.0
        %1957 = vmatpush1.msra.mxu0 0.0
        %1958 = vmatprep.subr.mxu0 0.0
        %1959 = vmatpush1.msra.mxu0 0.0
        %1960 = vmatprep.subr.mxu0 0.0
        %1961 = vmatpush1.msra.mxu0 0.0
        %1962 = vmatprep.subr.mxu0 0.0
        %1963 = vmatpush1.msra.mxu0 0.0
        %1964 = vmatprep.subr.mxu0 0.0
        %1965 = vmatpush1.msra.mxu0 0.0
        %1966 = vmatprep.subr.mxu0 0.0
        %1967 = vmatpush1.msra.mxu0 0.0
        %1968 = vmatprep.subr.mxu0 0.0
        %1969 = vmatpush1.msra.mxu0 0.0
        %1970 = vmatprep.subr.mxu0 0.0
        %1971 = vmatpush1.msra.mxu0 0.0
        %1972 = vmatprep.subr.mxu0 0.0
        %1973 = vmatpush1.msra.mxu0 0.0
        %1974 = vmatprep.subr.mxu0 0.0
        %1975 = vmatpush1.msra.mxu0 0.0
        %1976 = vmatprep.subr.mxu0 0.0
        %1977 = vmatpush1.msra.mxu0 0.0
        %1978 = vmatprep.subr.mxu0 0.0
        %1979 = vmatpush1.msra.mxu0 0.0
        %1980 = vmatprep.mubr.f32.mxu0 0.0
        %v1981 = vand.u32 %v1760, 4294901760
        %v1982 = vsub.f32 %v1760, %v1981
        %1983 = vmatmul.mubr.f32.gmra.mrb[0].mxu0 %v1982
        %v1984 = vpop.f32.mrb[0].mxu0
        %v1985 = vadd.f32 %v1911, %v1984
        %v1986 = vpop.f32.mrb[0].mxu0
        %1987 = vdwg.mxu0
        %1988 = vmatprep.subr.mxu0 0.0
        %v1989 = vand.u32 %v1757, 4294901760
        %1990 = vmatpush1.msra.mxu0 %v1989
        %1991 = vmatprep.subr.mxu0 0.0
        %1992 = vmatpush1.msra.mxu0 0.0
        %1993 = vmatprep.subr.mxu0 0.0
        %1994 = vmatpush1.msra.mxu0 0.0
        %1995 = vmatprep.subr.mxu0 0.0
        %1996 = vmatpush1.msra.mxu0 0.0
        %1997 = vmatprep.subr.mxu0 0.0
        %1998 = vmatpush1.msra.mxu0 0.0
        %1999 = vmatprep.subr.mxu0 0.0
        %2000 = vmatpush1.msra.mxu0 0.0
        %2001 = vmatprep.subr.mxu0 0.0
        %2002 = vmatpush1.msra.mxu0 0.0
        %2003 = vmatprep.subr.mxu0 0.0
        %2004 = vmatpush1.msra.mxu0 0.0
        %2005 = vmatprep.subr.mxu0 0.0
        %2006 = vmatpush1.msra.mxu0 0.0
        %2007 = vmatprep.subr.mxu0 0.0
        %2008 = vmatpush1.msra.mxu0 0.0
        %2009 = vmatprep.subr.mxu0 0.0
        %2010 = vmatpush1.msra.mxu0 0.0
        %2011 = vmatprep.subr.mxu0 0.0
        %2012 = vmatpush1.msra.mxu0 0.0
        %2013 = vmatprep.subr.mxu0 0.0
        %2014 = vmatpush1.msra.mxu0 0.0
        %2015 = vmatprep.subr.mxu0 0.0
        %2016 = vmatpush1.msra.mxu0 0.0
        %2017 = vmatprep.subr.mxu0 0.0
        %2018 = vmatpush1.msra.mxu0 0.0
        %2019 = vmatprep.subr.mxu0 0.0
        %2020 = vmatpush1.msra.mxu0 0.0
        %2021 = vmatprep.subr.mxu0 0.0
        %2022 = vmatpush1.msra.mxu0 0.0
        %2023 = vmatprep.subr.mxu0 0.0
        %2024 = vmatpush1.msra.mxu0 0.0
        %2025 = vmatprep.subr.mxu0 0.0
        %2026 = vmatpush1.msra.mxu0 0.0
        %2027 = vmatprep.subr.mxu0 0.0
        %2028 = vmatpush1.msra.mxu0 0.0
        %2029 = vmatprep.subr.mxu0 0.0
        %2030 = vmatpush1.msra.mxu0 0.0
        %2031 = vmatprep.subr.mxu0 0.0
        %2032 = vmatpush1.msra.mxu0 0.0
        %2033 = vmatprep.subr.mxu0 0.0
        %2034 = vmatpush1.msra.mxu0 0.0
        %2035 = vmatprep.subr.mxu0 0.0
        %2036 = vmatpush1.msra.mxu0 0.0
        %2037 = vmatprep.subr.mxu0 0.0
        %2038 = vmatpush1.msra.mxu0 0.0
        %2039 = vmatprep.subr.mxu0 0.0
        %2040 = vmatpush1.msra.mxu0 0.0
        %2041 = vmatprep.subr.mxu0 0.0
        %2042 = vmatpush1.msra.mxu0 0.0
        %2043 = vmatprep.subr.mxu0 0.0
        %2044 = vmatpush1.msra.mxu0 0.0
        %2045 = vmatprep.subr.mxu0 0.0
        %2046 = vmatpush1.msra.mxu0 0.0
        %2047 = vmatprep.subr.mxu0 0.0
        %2048 = vmatpush1.msra.mxu0 0.0
        %2049 = vmatprep.subr.mxu0 0.0
        %2050 = vmatpush1.msra.mxu0 0.0
        %2051 = vmatprep.subr.mxu0 0.0
        %2052 = vmatpush1.msra.mxu0 0.0
        %2053 = vmatprep.mubr.f32.mxu0 0.0
        %v2054 = vand.u32 %v1760, 4294901760
        %v2055 = vsub.f32 %v1760, %v2054
        %v2056 = vand.u32 %v2055, 4294901760
        %2057 = vmatmul.mubr.f32.gmra.mrb[0].mxu0 %v2056
        %v2058 = vpop.f32.mrb[0].mxu0
        %v2059 = vadd.f32 %v1985, %v2058
        %v2060 = vpop.f32.mrb[0].mxu0
        %2061 = vdwg.mxu0
        %2062 = vmatprep.subr.mxu0 0.0
        %v2063 = vand.u32 %v1757, 4294901760
        %v2064 = vsub.f32 %v1757, %v2063
        %v2065 = vand.u32 %v2064, 4294901760
        %2066 = vmatpush1.msra.mxu0 %v2065
        %2067 = vmatprep.subr.mxu0 0.0
        %2068 = vmatpush1.msra.mxu0 0.0
        %2069 = vmatprep.subr.mxu0 0.0
        %2070 = vmatpush1.msra.mxu0 0.0
        %2071 = vmatprep.subr.mxu0 0.0
        %2072 = vmatpush1.msra.mxu0 0.0
        %2073 = vmatprep.subr.mxu0 0.0
        %2074 = vmatpush1.msra.mxu0 0.0
        %2075 = vmatprep.subr.mxu0 0.0
        %2076 = vmatpush1.msra.mxu0 0.0
        %2077 = vmatprep.subr.mxu0 0.0
        %2078 = vmatpush1.msra.mxu0 0.0
        %2079 = vmatprep.subr.mxu0 0.0
        %2080 = vmatpush1.msra.mxu0 0.0
        %2081 = vmatprep.subr.mxu0 0.0
        %2082 = vmatpush1.msra.mxu0 0.0
        %2083 = vmatprep.subr.mxu0 0.0
        %2084 = vmatpush1.msra.mxu0 0.0
        %2085 = vmatprep.subr.mxu0 0.0
        %2086 = vmatpush1.msra.mxu0 0.0
        %2087 = vmatprep.subr.mxu0 0.0
        %2088 = vmatpush1.msra.mxu0 0.0
        %2089 = vmatprep.subr.mxu0 0.0
        %2090 = vmatpush1.msra.mxu0 0.0
        %2091 = vmatprep.subr.mxu0 0.0
        %2092 = vmatpush1.msra.mxu0 0.0
        %2093 = vmatprep.subr.mxu0 0.0
        %2094 = vmatpush1.msra.mxu0 0.0
        %2095 = vmatprep.subr.mxu0 0.0
        %2096 = vmatpush1.msra.mxu0 0.0
        %2097 = vmatprep.subr.mxu0 0.0
        %2098 = vmatpush1.msra.mxu0 0.0
        %2099 = vmatprep.subr.mxu0 0.0
        %2100 = vmatpush1.msra.mxu0 0.0
        %2101 = vmatprep.subr.mxu0 0.0
        %2102 = vmatpush1.msra.mxu0 0.0
        %2103 = vmatprep.subr.mxu0 0.0
        %2104 = vmatpush1.msra.mxu0 0.0
        %2105 = vmatprep.subr.mxu0 0.0
        %2106 = vmatpush1.msra.mxu0 0.0
        %2107 = vmatprep.subr.mxu0 0.0
        %2108 = vmatpush1.msra.mxu0 0.0
        %2109 = vmatprep.subr.mxu0 0.0
        %2110 = vmatpush1.msra.mxu0 0.0
        %2111 = vmatprep.subr.mxu0 0.0
        %2112 = vmatpush1.msra.mxu0 0.0
        %2113 = vmatprep.subr.mxu0 0.0
        %2114 = vmatpush1.msra.mxu0 0.0
        %2115 = vmatprep.subr.mxu0 0.0
        %2116 = vmatpush1.msra.mxu0 0.0
        %2117 = vmatprep.subr.mxu0 0.0
        %2118 = vmatpush1.msra.mxu0 0.0
        %2119 = vmatprep.subr.mxu0 0.0
        %2120 = vmatpush1.msra.mxu0 0.0
        %2121 = vmatprep.subr.mxu0 0.0
        %2122 = vmatpush1.msra.mxu0 0.0
        %2123 = vmatprep.subr.mxu0 0.0
        %2124 = vmatpush1.msra.mxu0 0.0
        %2125 = vmatprep.subr.mxu0 0.0
        %2126 = vmatpush1.msra.mxu0 0.0
        %2127 = vmatprep.subr.mxu0 0.0
        %2128 = vmatpush1.msra.mxu0 0.0
        %2129 = vmatprep.mubr.f32.mxu0 0.0
        %v2130 = vand.u32 %v1760, 4294901760
        %2131 = vmatmul.mubr.f32.gmra.mrb[0].mxu0 %v2130
        %v2132 = vpop.f32.mrb[0].mxu0
        %v2133 = vadd.f32 %v2059, %v2132
        %v2134 = vpop.f32.mrb[0].mxu0
        %2135 = vdwg.mxu0
        %2136 = vmatprep.subr.mxu0 0.0
        %v2137 = vand.u32 %v1757, 4294901760
        %2138 = vmatpush1.msra.mxu0 %v2137
        %2139 = vmatprep.subr.mxu0 0.0
        %2140 = vmatpush1.msra.mxu0 0.0
        %2141 = vmatprep.subr.mxu0 0.0
        %2142 = vmatpush1.msra.mxu0 0.0
        %2143 = vmatprep.subr.mxu0 0.0
        %2144 = vmatpush1.msra.mxu0 0.0
        %2145 = vmatprep.subr.mxu0 0.0
        %2146 = vmatpush1.msra.mxu0 0.0
        %2147 = vmatprep.subr.mxu0 0.0
        %2148 = vmatpush1.msra.mxu0 0.0
        %2149 = vmatprep.subr.mxu0 0.0
        %2150 = vmatpush1.msra.mxu0 0.0
        %2151 = vmatprep.subr.mxu0 0.0
        %2152 = vmatpush1.msra.mxu0 0.0
        %2153 = vmatprep.subr.mxu0 0.0
        %2154 = vmatpush1.msra.mxu0 0.0
        %2155 = vmatprep.subr.mxu0 0.0
        %2156 = vmatpush1.msra.mxu0 0.0
        %2157 = vmatprep.subr.mxu0 0.0
        %2158 = vmatpush1.msra.mxu0 0.0
        %2159 = vmatprep.subr.mxu0 0.0
        %2160 = vmatpush1.msra.mxu0 0.0
        %2161 = vmatprep.subr.mxu0 0.0
        %2162 = vmatpush1.msra.mxu0 0.0
        %2163 = vmatprep.subr.mxu0 0.0
        %2164 = vmatpush1.msra.mxu0 0.0
        %2165 = vmatprep.subr.mxu0 0.0
        %2166 = vmatpush1.msra.mxu0 0.0
        %2167 = vmatprep.subr.mxu0 0.0
        %2168 = vmatpush1.msra.mxu0 0.0
        %2169 = vmatprep.subr.mxu0 0.0
        %2170 = vmatpush1.msra.mxu0 0.0
        %2171 = vmatprep.subr.mxu0 0.0
        %2172 = vmatpush1.msra.mxu0 0.0
        %2173 = vmatprep.subr.mxu0 0.0
        %2174 = vmatpush1.msra.mxu0 0.0
        %2175 = vmatprep.subr.mxu0 0.0
        %2176 = vmatpush1.msra.mxu0 0.0
        %2177 = vmatprep.subr.mxu0 0.0
        %2178 = vmatpush1.msra.mxu0 0.0
        %2179 = vmatprep.subr.mxu0 0.0
        %2180 = vmatpush1.msra.mxu0 0.0
        %2181 = vmatprep.subr.mxu0 0.0
        %2182 = vmatpush1.msra.mxu0 0.0
        %2183 = vmatprep.subr.mxu0 0.0
        %2184 = vmatpush1.msra.mxu0 0.0
        %2185 = vmatprep.subr.mxu0 0.0
        %2186 = vmatpush1.msra.mxu0 0.0
        %2187 = vmatprep.subr.mxu0 0.0
        %2188 = vmatpush1.msra.mxu0 0.0
        %2189 = vmatprep.subr.mxu0 0.0
        %2190 = vmatpush1.msra.mxu0 0.0
        %2191 = vmatprep.subr.mxu0 0.0
        %2192 = vmatpush1.msra.mxu0 0.0
        %2193 = vmatprep.subr.mxu0 0.0
        %2194 = vmatpush1.msra.mxu0 0.0
        %2195 = vmatprep.subr.mxu0 0.0
        %2196 = vmatpush1.msra.mxu0 0.0
        %2197 = vmatprep.subr.mxu0 0.0
        %2198 = vmatpush1.msra.mxu0 0.0
        %2199 = vmatprep.subr.mxu0 0.0
        %2200 = vmatpush1.msra.mxu0 0.0
        %2201 = vmatprep.mubr.f32.mxu0 0.0
        %v2202 = vand.u32 %v1760, 4294901760
        %2203 = vmatmul.mubr.f32.gmra.mrb[0].mxu0 %v2202
        %v2204 = vpop.f32.mrb[0].mxu0
        %v2205 = vadd.f32 %v2133, %v2204
        %v2206 = vpop.f32.mrb[0].mxu0
        %2207 = vdwg.mxu0
        %2208 = vrot.lane.b32.xlu0 %v1290, 120
        %v2209 = vpop.permute.xlu0 %2208
        %2210 = vrot.lane.b32.xlu0 %v1287, 120
        %v2211 = vpop.permute.xlu0 %2210
        %v2212 = vsel %vm1291, %v2209, 0
        %v2214 = vsel %vm1291, %v2211, 0
        %2216 = vmatprep.subr.mxu0 0.0
        %v2217 = vand.u32 %v2214, 4294901760
        %2218 = vmatpush1.xpose.msra.mxu0 %v2217
        %2219 = vmatprep.subr.mxu0 0.0
        %2220 = vmatpush1.xpose.msra.mxu0 0.0
        %2221 = vmatprep.subr.mxu0 0.0
        %2222 = vmatpush1.xpose.msra.mxu0 0.0
        %2223 = vmatprep.subr.mxu0 0.0
        %2224 = vmatpush1.xpose.msra.mxu0 0.0
        %2225 = vmatprep.subr.mxu0 0.0
        %2226 = vmatpush1.xpose.msra.mxu0 0.0
        %2227 = vmatprep.subr.mxu0 0.0
        %2228 = vmatpush1.xpose.msra.mxu0 0.0
        %2229 = vmatprep.subr.mxu0 0.0
        %2230 = vmatpush1.xpose.msra.mxu0 0.0
        %2231 = vmatprep.subr.mxu0 0.0
        %2232 = vmatpush1.xpose.msra.mxu0 0.0
        %2233 = vmatprep.subr.mxu0 0.0
        %2234 = vmatpush1.xpose.msra.mxu0 0.0
        %2235 = vmatprep.subr.mxu0 0.0
        %2236 = vmatpush1.xpose.msra.mxu0 0.0
        %2237 = vmatprep.subr.mxu0 0.0
        %2238 = vmatpush1.xpose.msra.mxu0 0.0
        %2239 = vmatprep.subr.mxu0 0.0
        %2240 = vmatpush1.xpose.msra.mxu0 0.0
        %2241 = vmatprep.subr.mxu0 0.0
        %2242 = vmatpush1.xpose.msra.mxu0 0.0
        %2243 = vmatprep.subr.mxu0 0.0
        %2244 = vmatpush1.xpose.msra.mxu0 0.0
        %2245 = vmatprep.subr.mxu0 0.0
        %2246 = vmatpush1.xpose.msra.mxu0 0.0
        %2247 = vmatprep.subr.mxu0 0.0
        %2248 = vmatpush1.xpose.msra.mxu0 0.0
        %2249 = vmatprep.subr.mxu0 0.0
        %2250 = vmatpush1.xpose.msra.mxu0 0.0
        %2251 = vmatprep.subr.mxu0 0.0
        %2252 = vmatpush1.xpose.msra.mxu0 0.0
        %2253 = vmatprep.subr.mxu0 0.0
        %2254 = vmatpush1.xpose.msra.mxu0 0.0
        %2255 = vmatprep.subr.mxu0 0.0
        %2256 = vmatpush1.xpose.msra.mxu0 0.0
        %2257 = vmatprep.subr.mxu0 0.0
        %2258 = vmatpush1.xpose.msra.mxu0 0.0
        %2259 = vmatprep.subr.mxu0 0.0
        %2260 = vmatpush1.xpose.msra.mxu0 0.0
        %2261 = vmatprep.subr.mxu0 0.0
        %2262 = vmatpush1.xpose.msra.mxu0 0.0
        %2263 = vmatprep.subr.mxu0 0.0
        %2264 = vmatpush1.xpose.msra.mxu0 0.0
        %2265 = vmatprep.subr.mxu0 0.0
        %2266 = vmatpush1.xpose.msra.mxu0 0.0
        %2267 = vmatprep.subr.mxu0 0.0
        %2268 = vmatpush1.xpose.msra.mxu0 0.0
        %2269 = vmatprep.subr.mxu0 0.0
        %2270 = vmatpush1.xpose.msra.mxu0 0.0
        %2271 = vmatprep.subr.mxu0 0.0
        %2272 = vmatpush1.xpose.msra.mxu0 0.0
        %2273 = vmatprep.subr.mxu0 0.0
        %2274 = vmatpush1.xpose.msra.mxu0 0.0
        %2275 = vmatprep.subr.mxu0 0.0
        %2276 = vmatpush1.xpose.msra.mxu0 0.0
        %2277 = vmatprep.subr.mxu0 0.0
        %2278 = vmatpush1.xpose.msra.mxu0 0.0
        %2279 = vmatprep.subr.mxu0 0.0
        %2280 = vmatpush1.xpose.msra.mxu0 0.0
        %2281 = vmatprep.mubr.f32.mxu0 0.0
        %v2282 = vand.u32 %v2212, 4294901760
        %v2283 = vsub.f32 %v2212, %v2282
        %v2284 = vand.u32 %v2283, 4294901760
        %v2285 = vsub.f32 %v2283, %v2284
        %v2286 = vand.u32 %v2285, 4294901760
        %2287 = vmatmul.mubr.f32.gmra.mrb[0].mxu0 %v2286
        %v2288 = vpop.f32.mrb[0].mxu0
        %v2289 = vadd.f32 0.0, %v2288
        %v2290 = vpop.f32.mrb[0].mxu0
        %2291 = vdwg.mxu0
        %2292 = vmatprep.subr.mxu0 0.0
        %v2293 = vand.u32 %v2214, 4294901760
        %v2294 = vsub.f32 %v2214, %v2293
        %v2295 = vand.u32 %v2294, 4294901760
        %v2296 = vsub.f32 %v2294, %v2295
        %v2297 = vand.u32 %v2296, 4294901760
        %2298 = vmatpush1.xpose.msra.mxu0 %v2297
        %2299 = vmatprep.subr.mxu0 0.0
        %2300 = vmatpush1.xpose.msra.mxu0 0.0
        %2301 = vmatprep.subr.mxu0 0.0
        %2302 = vmatpush1.xpose.msra.mxu0 0.0
        %2303 = vmatprep.subr.mxu0 0.0
        %2304 = vmatpush1.xpose.msra.mxu0 0.0
        %2305 = vmatprep.subr.mxu0 0.0
        %2306 = vmatpush1.xpose.msra.mxu0 0.0
        %2307 = vmatprep.subr.mxu0 0.0
        %2308 = vmatpush1.xpose.msra.mxu0 0.0
        %2309 = vmatprep.subr.mxu0 0.0
        %2310 = vmatpush1.xpose.msra.mxu0 0.0
        %2311 = vmatprep.subr.mxu0 0.0
        %2312 = vmatpush1.xpose.msra.mxu0 0.0
        %2313 = vmatprep.subr.mxu0 0.0
        %2314 = vmatpush1.xpose.msra.mxu0 0.0
        %2315 = vmatprep.subr.mxu0 0.0
        %2316 = vmatpush1.xpose.msra.mxu0 0.0
        %2317 = vmatprep.subr.mxu0 0.0
        %2318 = vmatpush1.xpose.msra.mxu0 0.0
        %2319 = vmatprep.subr.mxu0 0.0
        %2320 = vmatpush1.xpose.msra.mxu0 0.0
        %2321 = vmatprep.subr.mxu0 0.0
        %2322 = vmatpush1.xpose.msra.mxu0 0.0
        %2323 = vmatprep.subr.mxu0 0.0
        %2324 = vmatpush1.xpose.msra.mxu0 0.0
        %2325 = vmatprep.subr.mxu0 0.0
        %2326 = vmatpush1.xpose.msra.mxu0 0.0
        %2327 = vmatprep.subr.mxu0 0.0
        %2328 = vmatpush1.xpose.msra.mxu0 0.0
        %2329 = vmatprep.subr.mxu0 0.0
        %2330 = vmatpush1.xpose.msra.mxu0 0.0
        %2331 = vmatprep.subr.mxu0 0.0
        %2332 = vmatpush1.xpose.msra.mxu0 0.0
        %2333 = vmatprep.subr.mxu0 0.0
        %2334 = vmatpush1.xpose.msra.mxu0 0.0
        %2335 = vmatprep.subr.mxu0 0.0
        %2336 = vmatpush1.xpose.msra.mxu0 0.0
        %2337 = vmatprep.subr.mxu0 0.0
        %2338 = vmatpush1.xpose.msra.mxu0 0.0
        %2339 = vmatprep.subr.mxu0 0.0
        %2340 = vmatpush1.xpose.msra.mxu0 0.0
        %2341 = vmatprep.subr.mxu0 0.0
        %2342 = vmatpush1.xpose.msra.mxu0 0.0
        %2343 = vmatprep.subr.mxu0 0.0
        %2344 = vmatpush1.xpose.msra.mxu0 0.0
        %2345 = vmatprep.subr.mxu0 0.0
        %2346 = vmatpush1.xpose.msra.mxu0 0.0
        %2347 = vmatprep.subr.mxu0 0.0
        %2348 = vmatpush1.xpose.msra.mxu0 0.0
        %2349 = vmatprep.subr.mxu0 0.0
        %2350 = vmatpush1.xpose.msra.mxu0 0.0
        %2351 = vmatprep.subr.mxu0 0.0
        %2352 = vmatpush1.xpose.msra.mxu0 0.0
        %2353 = vmatprep.subr.mxu0 0.0
        %2354 = vmatpush1.xpose.msra.mxu0 0.0
        %2355 = vmatprep.subr.mxu0 0.0
        %2356 = vmatpush1.xpose.msra.mxu0 0.0
        %2357 = vmatprep.subr.mxu0 0.0
        %2358 = vmatpush1.xpose.msra.mxu0 0.0
        %2359 = vmatprep.subr.mxu0 0.0
        %2360 = vmatpush1.xpose.msra.mxu0 0.0
        %2361 = vmatprep.mubr.f32.mxu0 0.0
        %v2362 = vand.u32 %v2212, 4294901760
        %2363 = vmatmul.mubr.f32.gmra.mrb[0].mxu0 %v2362
        %v2364 = vpop.f32.mrb[0].mxu0
        %v2365 = vadd.f32 %v2289, %v2364
        %v2366 = vpop.f32.mrb[0].mxu0
        %2367 = vdwg.mxu0
        %2368 = vmatprep.subr.mxu0 0.0
        %v2369 = vand.u32 %v2214, 4294901760
        %v2370 = vsub.f32 %v2214, %v2369
        %2371 = vmatpush1.xpose.msra.mxu0 %v2370
        %2372 = vmatprep.subr.mxu0 0.0
        %2373 = vmatpush1.xpose.msra.mxu0 0.0
        %2374 = vmatprep.subr.mxu0 0.0
        %2375 = vmatpush1.xpose.msra.mxu0 0.0
        %2376 = vmatprep.subr.mxu0 0.0
        %2377 = vmatpush1.xpose.msra.mxu0 0.0
        %2378 = vmatprep.subr.mxu0 0.0
        %2379 = vmatpush1.xpose.msra.mxu0 0.0
        %2380 = vmatprep.subr.mxu0 0.0
        %2381 = vmatpush1.xpose.msra.mxu0 0.0
        %2382 = vmatprep.subr.mxu0 0.0
        %2383 = vmatpush1.xpose.msra.mxu0 0.0
        %2384 = vmatprep.subr.mxu0 0.0
        %2385 = vmatpush1.xpose.msra.mxu0 0.0
        %2386 = vmatprep.subr.mxu0 0.0
        %2387 = vmatpush1.xpose.msra.mxu0 0.0
        %2388 = vmatprep.subr.mxu0 0.0
        %2389 = vmatpush1.xpose.msra.mxu0 0.0
        %2390 = vmatprep.subr.mxu0 0.0
        %2391 = vmatpush1.xpose.msra.mxu0 0.0
        %2392 = vmatprep.subr.mxu0 0.0
        %2393 = vmatpush1.xpose.msra.mxu0 0.0
        %2394 = vmatprep.subr.mxu0 0.0
        %2395 = vmatpush1.xpose.msra.mxu0 0.0
        %2396 = vmatprep.subr.mxu0 0.0
        %2397 = vmatpush1.xpose.msra.mxu0 0.0
        %2398 = vmatprep.subr.mxu0 0.0
        %2399 = vmatpush1.xpose.msra.mxu0 0.0
        %2400 = vmatprep.subr.mxu0 0.0
        %2401 = vmatpush1.xpose.msra.mxu0 0.0
        %2402 = vmatprep.subr.mxu0 0.0
        %2403 = vmatpush1.xpose.msra.mxu0 0.0
        %2404 = vmatprep.subr.mxu0 0.0
        %2405 = vmatpush1.xpose.msra.mxu0 0.0
        %2406 = vmatprep.subr.mxu0 0.0
        %2407 = vmatpush1.xpose.msra.mxu0 0.0
        %2408 = vmatprep.subr.mxu0 0.0
        %2409 = vmatpush1.xpose.msra.mxu0 0.0
        %2410 = vmatprep.subr.mxu0 0.0
        %2411 = vmatpush1.xpose.msra.mxu0 0.0
        %2412 = vmatprep.subr.mxu0 0.0
        %2413 = vmatpush1.xpose.msra.mxu0 0.0
        %2414 = vmatprep.subr.mxu0 0.0
        %2415 = vmatpush1.xpose.msra.mxu0 0.0
        %2416 = vmatprep.subr.mxu0 0.0
        %2417 = vmatpush1.xpose.msra.mxu0 0.0
        %2418 = vmatprep.subr.mxu0 0.0
        %2419 = vmatpush1.xpose.msra.mxu0 0.0
        %2420 = vmatprep.subr.mxu0 0.0
        %2421 = vmatpush1.xpose.msra.mxu0 0.0
        %2422 = vmatprep.subr.mxu0 0.0
        %2423 = vmatpush1.xpose.msra.mxu0 0.0
        %2424 = vmatprep.subr.mxu0 0.0
        %2425 = vmatpush1.xpose.msra.mxu0 0.0
        %2426 = vmatprep.subr.mxu0 0.0
        %2427 = vmatpush1.xpose.msra.mxu0 0.0
        %2428 = vmatprep.subr.mxu0 0.0
        %2429 = vmatpush1.xpose.msra.mxu0 0.0
        %2430 = vmatprep.subr.mxu0 0.0
        %2431 = vmatpush1.xpose.msra.mxu0 0.0
        %2432 = vmatprep.subr.mxu0 0.0
        %2433 = vmatpush1.xpose.msra.mxu0 0.0
        %2434 = vmatprep.mubr.f32.mxu0 0.0
        %v2435 = vand.u32 %v2212, 4294901760
        %v2436 = vsub.f32 %v2212, %v2435
        %2437 = vmatmul.mubr.f32.gmra.mrb[0].mxu0 %v2436
        %v2438 = vpop.f32.mrb[0].mxu0
        %v2439 = vadd.f32 %v2365, %v2438
        %v2440 = vpop.f32.mrb[0].mxu0
        %2441 = vdwg.mxu0
        %2442 = vmatprep.subr.mxu0 0.0
        %v2443 = vand.u32 %v2214, 4294901760
        %2444 = vmatpush1.xpose.msra.mxu0 %v2443
        %2445 = vmatprep.subr.mxu0 0.0
        %2446 = vmatpush1.xpose.msra.mxu0 0.0
        %2447 = vmatprep.subr.mxu0 0.0
        %2448 = vmatpush1.xpose.msra.mxu0 0.0
        %2449 = vmatprep.subr.mxu0 0.0
        %2450 = vmatpush1.xpose.msra.mxu0 0.0
        %2451 = vmatprep.subr.mxu0 0.0
        %2452 = vmatpush1.xpose.msra.mxu0 0.0
        %2453 = vmatprep.subr.mxu0 0.0
        %2454 = vmatpush1.xpose.msra.mxu0 0.0
        %2455 = vmatprep.subr.mxu0 0.0
        %2456 = vmatpush1.xpose.msra.mxu0 0.0
        %2457 = vmatprep.subr.mxu0 0.0
        %2458 = vmatpush1.xpose.msra.mxu0 0.0
        %2459 = vmatprep.subr.mxu0 0.0
        %2460 = vmatpush1.xpose.msra.mxu0 0.0
        %2461 = vmatprep.subr.mxu0 0.0
        %2462 = vmatpush1.xpose.msra.mxu0 0.0
        %2463 = vmatprep.subr.mxu0 0.0
        %2464 = vmatpush1.xpose.msra.mxu0 0.0
        %2465 = vmatprep.subr.mxu0 0.0
        %2466 = vmatpush1.xpose.msra.mxu0 0.0
        %2467 = vmatprep.subr.mxu0 0.0
        %2468 = vmatpush1.xpose.msra.mxu0 0.0
        %2469 = vmatprep.subr.mxu0 0.0
        %2470 = vmatpush1.xpose.msra.mxu0 0.0
        %2471 = vmatprep.subr.mxu0 0.0
        %2472 = vmatpush1.xpose.msra.mxu0 0.0
        %2473 = vmatprep.subr.mxu0 0.0
        %2474 = vmatpush1.xpose.msra.mxu0 0.0
        %2475 = vmatprep.subr.mxu0 0.0
        %2476 = vmatpush1.xpose.msra.mxu0 0.0
        %2477 = vmatprep.subr.mxu0 0.0
        %2478 = vmatpush1.xpose.msra.mxu0 0.0
        %2479 = vmatprep.subr.mxu0 0.0
        %2480 = vmatpush1.xpose.msra.mxu0 0.0
        %2481 = vmatprep.subr.mxu0 0.0
        %2482 = vmatpush1.xpose.msra.mxu0 0.0
        %2483 = vmatprep.subr.mxu0 0.0
        %2484 = vmatpush1.xpose.msra.mxu0 0.0
        %2485 = vmatprep.subr.mxu0 0.0
        %2486 = vmatpush1.xpose.msra.mxu0 0.0
        %2487 = vmatprep.subr.mxu0 0.0
        %2488 = vmatpush1.xpose.msra.mxu0 0.0
        %2489 = vmatprep.subr.mxu0 0.0
        %2490 = vmatpush1.xpose.msra.mxu0 0.0
        %2491 = vmatprep.subr.mxu0 0.0
        %2492 = vmatpush1.xpose.msra.mxu0 0.0
        %2493 = vmatprep.subr.mxu0 0.0
        %2494 = vmatpush1.xpose.msra.mxu0 0.0
        %2495 = vmatprep.subr.mxu0 0.0
        %2496 = vmatpush1.xpose.msra.mxu0 0.0
        %2497 = vmatprep.subr.mxu0 0.0
        %2498 = vmatpush1.xpose.msra.mxu0 0.0
        %2499 = vmatprep.subr.mxu0 0.0
        %2500 = vmatpush1.xpose.msra.mxu0 0.0
        %2501 = vmatprep.subr.mxu0 0.0
        %2502 = vmatpush1.xpose.msra.mxu0 0.0
        %2503 = vmatprep.subr.mxu0 0.0
        %2504 = vmatpush1.xpose.msra.mxu0 0.0
        %2505 = vmatprep.subr.mxu0 0.0
        %2506 = vmatpush1.xpose.msra.mxu0 0.0
        %2507 = vmatprep.mubr.f32.mxu0 0.0
        %v2508 = vand.u32 %v2212, 4294901760
        %v2509 = vsub.f32 %v2212, %v2508
        %v2510 = vand.u32 %v2509, 4294901760
        %2511 = vmatmul.mubr.f32.gmra.mrb[0].mxu0 %v2510
        %v2512 = vpop.f32.mrb[0].mxu0
        %v2513 = vadd.f32 %v2439, %v2512
        %v2514 = vpop.f32.mrb[0].mxu0
        %2515 = vdwg.mxu0
        %2516 = vmatprep.subr.mxu0 0.0
        %v2517 = vand.u32 %v2214, 4294901760
        %v2518 = vsub.f32 %v2214, %v2517
        %v2519 = vand.u32 %v2518, 4294901760
        %2520 = vmatpush1.xpose.msra.mxu0 %v2519
        %2521 = vmatprep.subr.mxu0 0.0
        %2522 = vmatpush1.xpose.msra.mxu0 0.0
        %2523 = vmatprep.subr.mxu0 0.0
        %2524 = vmatpush1.xpose.msra.mxu0 0.0
        %2525 = vmatprep.subr.mxu0 0.0
        %2526 = vmatpush1.xpose.msra.mxu0 0.0
        %2527 = vmatprep.subr.mxu0 0.0
        %2528 = vmatpush1.xpose.msra.mxu0 0.0
        %2529 = vmatprep.subr.mxu0 0.0
        %2530 = vmatpush1.xpose.msra.mxu0 0.0
        %2531 = vmatprep.subr.mxu0 0.0
        %2532 = vmatpush1.xpose.msra.mxu0 0.0
        %2533 = vmatprep.subr.mxu0 0.0
        %2534 = vmatpush1.xpose.msra.mxu0 0.0
        %2535 = vmatprep.subr.mxu0 0.0
        %2536 = vmatpush1.xpose.msra.mxu0 0.0
        %2537 = vmatprep.subr.mxu0 0.0
        %2538 = vmatpush1.xpose.msra.mxu0 0.0
        %2539 = vmatprep.subr.mxu0 0.0
        %2540 = vmatpush1.xpose.msra.mxu0 0.0
        %2541 = vmatprep.subr.mxu0 0.0
        %2542 = vmatpush1.xpose.msra.mxu0 0.0
        %2543 = vmatprep.subr.mxu0 0.0
        %2544 = vmatpush1.xpose.msra.mxu0 0.0
        %2545 = vmatprep.subr.mxu0 0.0
        %2546 = vmatpush1.xpose.msra.mxu0 0.0
        %2547 = vmatprep.subr.mxu0 0.0
        %2548 = vmatpush1.xpose.msra.mxu0 0.0
        %2549 = vmatprep.subr.mxu0 0.0
        %2550 = vmatpush1.xpose.msra.mxu0 0.0
        %2551 = vmatprep.subr.mxu0 0.0
        %2552 = vmatpush1.xpose.msra.mxu0 0.0
        %2553 = vmatprep.subr.mxu0 0.0
        %2554 = vmatpush1.xpose.msra.mxu0 0.0
        %2555 = vmatprep.subr.mxu0 0.0
        %2556 = vmatpush1.xpose.msra.mxu0 0.0
        %2557 = vmatprep.subr.mxu0 0.0
        %2558 = vmatpush1.xpose.msra.mxu0 0.0
        %2559 = vmatprep.subr.mxu0 0.0
        %2560 = vmatpush1.xpose.msra.mxu0 0.0
        %2561 = vmatprep.subr.mxu0 0.0
        %2562 = vmatpush1.xpose.msra.mxu0 0.0
        %2563 = vmatprep.subr.mxu0 0.0
        %2564 = vmatpush1.xpose.msra.mxu0 0.0
        %2565 = vmatprep.subr.mxu0 0.0
        %2566 = vmatpush1.xpose.msra.mxu0 0.0
        %2567 = vmatprep.subr.mxu0 0.0
        %2568 = vmatpush1.xpose.msra.mxu0 0.0
        %2569 = vmatprep.subr.mxu0 0.0
        %2570 = vmatpush1.xpose.msra.mxu0 0.0
        %2571 = vmatprep.subr.mxu0 0.0
        %2572 = vmatpush1.xpose.msra.mxu0 0.0
        %2573 = vmatprep.subr.mxu0 0.0
        %2574 = vmatpush1.xpose.msra.mxu0 0.0
        %2575 = vmatprep.subr.mxu0 0.0
        %2576 = vmatpush1.xpose.msra.mxu0 0.0
        %2577 = vmatprep.subr.mxu0 0.0
        %2578 = vmatpush1.xpose.msra.mxu0 0.0
        %2579 = vmatprep.subr.mxu0 0.0
        %2580 = vmatpush1.xpose.msra.mxu0 0.0
        %2581 = vmatprep.subr.mxu0 0.0
        %2582 = vmatpush1.xpose.msra.mxu0 0.0
        %2583 = vmatprep.mubr.f32.mxu0 0.0
        %v2584 = vand.u32 %v2212, 4294901760
        %2585 = vmatmul.mubr.f32.gmra.mrb[0].mxu0 %v2584
        %v2586 = vpop.f32.mrb[0].mxu0
        %v2587 = vadd.f32 %v2513, %v2586
        %v2588 = vpop.f32.mrb[0].mxu0
        %2589 = vdwg.mxu0
        %2590 = vmatprep.subr.mxu0 0.0
        %v2591 = vand.u32 %v2214, 4294901760
        %2592 = vmatpush1.xpose.msra.mxu0 %v2591
        %2593 = vmatprep.subr.mxu0 0.0
        %2594 = vmatpush1.xpose.msra.mxu0 0.0
        %2595 = vmatprep.subr.mxu0 0.0
        %2596 = vmatpush1.xpose.msra.mxu0 0.0
        %2597 = vmatprep.subr.mxu0 0.0
        %2598 = vmatpush1.xpose.msra.mxu0 0.0
        %2599 = vmatprep.subr.mxu0 0.0
        %2600 = vmatpush1.xpose.msra.mxu0 0.0
        %2601 = vmatprep.subr.mxu0 0.0
        %2602 = vmatpush1.xpose.msra.mxu0 0.0
        %2603 = vmatprep.subr.mxu0 0.0
        %2604 = vmatpush1.xpose.msra.mxu0 0.0
        %2605 = vmatprep.subr.mxu0 0.0
        %2606 = vmatpush1.xpose.msra.mxu0 0.0
        %2607 = vmatprep.subr.mxu0 0.0
        %2608 = vmatpush1.xpose.msra.mxu0 0.0
        %2609 = vmatprep.subr.mxu0 0.0
        %2610 = vmatpush1.xpose.msra.mxu0 0.0
        %2611 = vmatprep.subr.mxu0 0.0
        %2612 = vmatpush1.xpose.msra.mxu0 0.0
        %2613 = vmatprep.subr.mxu0 0.0
        %2614 = vmatpush1.xpose.msra.mxu0 0.0
        %2615 = vmatprep.subr.mxu0 0.0
        %2616 = vmatpush1.xpose.msra.mxu0 0.0
        %2617 = vmatprep.subr.mxu0 0.0
        %2618 = vmatpush1.xpose.msra.mxu0 0.0
        %2619 = vmatprep.subr.mxu0 0.0
        %2620 = vmatpush1.xpose.msra.mxu0 0.0
        %2621 = vmatprep.subr.mxu0 0.0
        %2622 = vmatpush1.xpose.msra.mxu0 0.0
        %2623 = vmatprep.subr.mxu0 0.0
        %2624 = vmatpush1.xpose.msra.mxu0 0.0
        %2625 = vmatprep.subr.mxu0 0.0
        %2626 = vmatpush1.xpose.msra.mxu0 0.0
        %2627 = vmatprep.subr.mxu0 0.0
        %2628 = vmatpush1.xpose.msra.mxu0 0.0
        %2629 = vmatprep.subr.mxu0 0.0
        %2630 = vmatpush1.xpose.msra.mxu0 0.0
        %2631 = vmatprep.subr.mxu0 0.0
        %2632 = vmatpush1.xpose.msra.mxu0 0.0
        %2633 = vmatprep.subr.mxu0 0.0
        %2634 = vmatpush1.xpose.msra.mxu0 0.0
        %2635 = vmatprep.subr.mxu0 0.0
        %2636 = vmatpush1.xpose.msra.mxu0 0.0
        %2637 = vmatprep.subr.mxu0 0.0
        %2638 = vmatpush1.xpose.msra.mxu0 0.0
        %2639 = vmatprep.subr.mxu0 0.0
        %2640 = vmatpush1.xpose.msra.mxu0 0.0
        %2641 = vmatprep.subr.mxu0 0.0
        %2642 = vmatpush1.xpose.msra.mxu0 0.0
        %2643 = vmatprep.subr.mxu0 0.0
        %2644 = vmatpush1.xpose.msra.mxu0 0.0
        %2645 = vmatprep.subr.mxu0 0.0
        %2646 = vmatpush1.xpose.msra.mxu0 0.0
        %2647 = vmatprep.subr.mxu0 0.0
        %2648 = vmatpush1.xpose.msra.mxu0 0.0
        %2649 = vmatprep.subr.mxu0 0.0
        %2650 = vmatpush1.xpose.msra.mxu0 0.0
        %2651 = vmatprep.subr.mxu0 0.0
        %2652 = vmatpush1.xpose.msra.mxu0 0.0
        %2653 = vmatprep.subr.mxu0 0.0
        %2654 = vmatpush1.xpose.msra.mxu0 0.0
        %2655 = vmatprep.mubr.f32.mxu0 0.0
        %v2656 = vand.u32 %v2212, 4294901760
        %2657 = vmatmul.mubr.f32.gmra.mrb[0].mxu0 %v2656
        %v2658 = vpop.f32.mrb[0].mxu0
        %v2659 = vadd.f32 %v2587, %v2658
        %v2660 = vpop.f32.mrb[0].mxu0
        %2661 = vdwg.mxu0
        %v2662 = vsel %vm1291, %v2659, -inf
        %2663 = vmax.xlane.f32.xlu0 %v2662
        %v2664 = vpop.xlane.xlu0 %2663
        %v2665 = vsub.f32 %v2659, %v2664
        %v2666 = vmul.f32 %v2665, 1.442695
        %v2667 = vpow.pop %v2666
        %v2668 = vsel %vm1291, %v2667, 0.0
        %2669 = vadd.xlane.f32.xlu0 %v2668
        %v2670 = vpop.xlane.xlu0 %2669
        %v2671 = vrcp.pop %v2670
        %v2672 = vmul.f32 1.0, %v2671
        %v2673 = vmul.f32 %v2667, %v2672
        %2674 = vrot.lane.b32.xlu0 %v1287, 88
        %v2675 = vpop.permute.xlu0 %2674
        %v2678 = vsel %vm1291, %v2673, 0
        %2680 = vmatprep.subr.mxu0 0.0
        %v2681 = vand.u32 %v2675, 4294901760
        %2682 = vmatpush1.msra.mxu0 %v2681
        %2683 = vmatprep.subr.mxu0 0.0
        %2684 = vmatpush1.msra.mxu0 0.0
        %2685 = vmatprep.subr.mxu0 0.0
        %2686 = vmatpush1.msra.mxu0 0.0
        %2687 = vmatprep.subr.mxu0 0.0
        %2688 = vmatpush1.msra.mxu0 0.0
        %2689 = vmatprep.subr.mxu0 0.0
        %2690 = vmatpush1.msra.mxu0 0.0
        %2691 = vmatprep.subr.mxu0 0.0
        %2692 = vmatpush1.msra.mxu0 0.0
        %2693 = vmatprep.subr.mxu0 0.0
        %2694 = vmatpush1.msra.mxu0 0.0
        %2695 = vmatprep.subr.mxu0 0.0
        %2696 = vmatpush1.msra.mxu0 0.0
        %2697 = vmatprep.subr.mxu0 0.0
        %2698 = vmatpush1.msra.mxu0 0.0
        %2699 = vmatprep.subr.mxu0 0.0
        %2700 = vmatpush1.msra.mxu0 0.0
        %2701 = vmatprep.subr.mxu0 0.0
        %2702 = vmatpush1.msra.mxu0 0.0
        %2703 = vmatprep.subr.mxu0 0.0
        %2704 = vmatpush1.msra.mxu0 0.0
        %2705 = vmatprep.subr.mxu0 0.0
        %2706 = vmatpush1.msra.mxu0 0.0
        %2707 = vmatprep.subr.mxu0 0.0
        %2708 = vmatpush1.msra.mxu0 0.0
        %2709 = vmatprep.subr.mxu0 0.0
        %2710 = vmatpush1.msra.mxu0 0.0
        %2711 = vmatprep.subr.mxu0 0.0
        %2712 = vmatpush1.msra.mxu0 0.0
        %2713 = vmatprep.subr.mxu0 0.0
        %2714 = vmatpush1.msra.mxu0 0.0
        %2715 = vmatprep.subr.mxu0 0.0
        %2716 = vmatpush1.msra.mxu0 0.0
        %2717 = vmatprep.subr.mxu0 0.0
        %2718 = vmatpush1.msra.mxu0 0.0
        %2719 = vmatprep.subr.mxu0 0.0
        %2720 = vmatpush1.msra.mxu0 0.0
        %2721 = vmatprep.subr.mxu0 0.0
        %2722 = vmatpush1.msra.mxu0 0.0
        %2723 = vmatprep.subr.mxu0 0.0
        %2724 = vmatpush1.msra.mxu0 0.0
        %2725 = vmatprep.subr.mxu0 0.0
        %2726 = vmatpush1.msra.mxu0 0.0
        %2727 = vmatprep.subr.mxu0 0.0
        %2728 = vmatpush1.msra.mxu0 0.0
        %2729 = vmatprep.subr.mxu0 0.0
        %2730 = vmatpush1.msra.mxu0 0.0
        %2731 = vmatprep.subr.mxu0 0.0
        %2732 = vmatpush1.msra.mxu0 0.0
        %2733 = vmatprep.subr.mxu0 0.0
        %2734 = vmatpush1.msra.mxu0 0.0
        %2735 = vmatprep.subr.mxu0 0.0
        %2736 = vmatpush1.msra.mxu0 0.0
        %2737 = vmatprep.subr.mxu0 0.0
        %2738 = vmatpush1.msra.mxu0 0.0
        %2739 = vmatprep.subr.mxu0 0.0
        %2740 = vmatpush1.msra.mxu0 0.0
        %2741 = vmatprep.subr.mxu0 0.0
        %2742 = vmatpush1.msra.mxu0 0.0
        %2743 = vmatprep.subr.mxu0 0.0
        %2744 = vmatpush1.msra.mxu0 0.0
        %2745 = vmatprep.mubr.f32.mxu0 0.0
        %v2746 = vand.u32 %v2678, 4294901760
        %v2747 = vsub.f32 %v2678, %v2746
        %v2748 = vand.u32 %v2747, 4294901760
        %v2749 = vsub.f32 %v2747, %v2748
        %v2750 = vand.u32 %v2749, 4294901760
        %2751 = vmatmul.mubr.f32.gmra.mrb[0].mxu0 %v2750
        %v2752 = vpop.f32.mrb[0].mxu0
        %v2753 = vadd.f32 0.0, %v2752
        %v2754 = vpop.f32.mrb[0].mxu0
        %2755 = vdwg.mxu0
        %2756 = vmatprep.subr.mxu0 0.0
        %v2757 = vand.u32 %v2675, 4294901760
        %v2758 = vsub.f32 %v2675, %v2757
        %v2759 = vand.u32 %v2758, 4294901760
        %v2760 = vsub.f32 %v2758, %v2759
        %v2761 = vand.u32 %v2760, 4294901760
        %2762 = vmatpush1.msra.mxu0 %v2761
        %2763 = vmatprep.subr.mxu0 0.0
        %2764 = vmatpush1.msra.mxu0 0.0
        %2765 = vmatprep.subr.mxu0 0.0
        %2766 = vmatpush1.msra.mxu0 0.0
        %2767 = vmatprep.subr.mxu0 0.0
        %2768 = vmatpush1.msra.mxu0 0.0
        %2769 = vmatprep.subr.mxu0 0.0
        %2770 = vmatpush1.msra.mxu0 0.0
        %2771 = vmatprep.subr.mxu0 0.0
        %2772 = vmatpush1.msra.mxu0 0.0
        %2773 = vmatprep.subr.mxu0 0.0
        %2774 = vmatpush1.msra.mxu0 0.0
        %2775 = vmatprep.subr.mxu0 0.0
        %2776 = vmatpush1.msra.mxu0 0.0
        %2777 = vmatprep.subr.mxu0 0.0
        %2778 = vmatpush1.msra.mxu0 0.0
        %2779 = vmatprep.subr.mxu0 0.0
        %2780 = vmatpush1.msra.mxu0 0.0
        %2781 = vmatprep.subr.mxu0 0.0
        %2782 = vmatpush1.msra.mxu0 0.0
        %2783 = vmatprep.subr.mxu0 0.0
        %2784 = vmatpush1.msra.mxu0 0.0
        %2785 = vmatprep.subr.mxu0 0.0
        %2786 = vmatpush1.msra.mxu0 0.0
        %2787 = vmatprep.subr.mxu0 0.0
        %2788 = vmatpush1.msra.mxu0 0.0
        %2789 = vmatprep.subr.mxu0 0.0
        %2790 = vmatpush1.msra.mxu0 0.0
        %2791 = vmatprep.subr.mxu0 0.0
        %2792 = vmatpush1.msra.mxu0 0.0
        %2793 = vmatprep.subr.mxu0 0.0
        %2794 = vmatpush1.msra.mxu0 0.0
        %2795 = vmatprep.subr.mxu0 0.0
        %2796 = vmatpush1.msra.mxu0 0.0
        %2797 = vmatprep.subr.mxu0 0.0
        %2798 = vmatpush1.msra.mxu0 0.0
        %2799 = vmatprep.subr.mxu0 0.0
        %2800 = vmatpush1.msra.mxu0 0.0
        %2801 = vmatprep.subr.mxu0 0.0
        %2802 = vmatpush1.msra.mxu0 0.0
        %2803 = vmatprep.subr.mxu0 0.0
        %2804 = vmatpush1.msra.mxu0 0.0
        %2805 = vmatprep.subr.mxu0 0.0
        %2806 = vmatpush1.msra.mxu0 0.0
        %2807 = vmatprep.subr.mxu0 0.0
        %2808 = vmatpush1.msra.mxu0 0.0
        %2809 = vmatprep.subr.mxu0 0.0
        %2810 = vmatpush1.msra.mxu0 0.0
        %2811 = vmatprep.subr.mxu0 0.0
        %2812 = vmatpush1.msra.mxu0 0.0
        %2813 = vmatprep.subr.mxu0 0.0
        %2814 = vmatpush1.msra.mxu0 0.0
        %2815 = vmatprep.subr.mxu0 0.0
        %2816 = vmatpush1.msra.mxu0 0.0
        %2817 = vmatprep.subr.mxu0 0.0
        %2818 = vmatpush1.msra.mxu0 0.0
        %2819 = vmatprep.subr.mxu0 0.0
        %2820 = vmatpush1.msra.mxu0 0.0
        %2821 = vmatprep.subr.mxu0 0.0
        %2822 = vmatpush1.msra.mxu0 0.0
        %2823 = vmatprep.subr.mxu0 0.0
        %2824 = vmatpush1.msra.mxu0 0.0
        %2825 = vmatprep.mubr.f32.mxu0 0.0
        %v2826 = vand.u32 %v2678, 4294901760
        %2827 = vmatmul.mubr.f32.gmra.mrb[0].mxu0 %v2826
        %v2828 = vpop.f32.mrb[0].mxu0
        %v2829 = vadd.f32 %v2753, %v2828
        %v2830 = vpop.f32.mrb[0].mxu0
        %2831 = vdwg.mxu0
        %2832 = vmatprep.subr.mxu0 0.0
        %v2833 = vand.u32 %v2675, 4294901760
        %v2834 = vsub.f32 %v2675, %v2833
        %2835 = vmatpush1.msra.mxu0 %v2834
        %2836 = vmatprep.subr.mxu0 0.0
        %2837 = vmatpush1.msra.mxu0 0.0
        %2838 = vmatprep.subr.mxu0 0.0
        %2839 = vmatpush1.msra.mxu0 0.0
        %2840 = vmatprep.subr.mxu0 0.0
        %2841 = vmatpush1.msra.mxu0 0.0
        %2842 = vmatprep.subr.mxu0 0.0
        %2843 = vmatpush1.msra.mxu0 0.0
        %2844 = vmatprep.subr.mxu0 0.0
        %2845 = vmatpush1.msra.mxu0 0.0
        %2846 = vmatprep.subr.mxu0 0.0
        %2847 = vmatpush1.msra.mxu0 0.0
        %2848 = vmatprep.subr.mxu0 0.0
        %2849 = vmatpush1.msra.mxu0 0.0
        %2850 = vmatprep.subr.mxu0 0.0
        %2851 = vmatpush1.msra.mxu0 0.0
        %2852 = vmatprep.subr.mxu0 0.0
        %2853 = vmatpush1.msra.mxu0 0.0
        %2854 = vmatprep.subr.mxu0 0.0
        %2855 = vmatpush1.msra.mxu0 0.0
        %2856 = vmatprep.subr.mxu0 0.0
        %2857 = vmatpush1.msra.mxu0 0.0
        %2858 = vmatprep.subr.mxu0 0.0
        %2859 = vmatpush1.msra.mxu0 0.0
        %2860 = vmatprep.subr.mxu0 0.0
        %2861 = vmatpush1.msra.mxu0 0.0
        %2862 = vmatprep.subr.mxu0 0.0
        %2863 = vmatpush1.msra.mxu0 0.0
        %2864 = vmatprep.subr.mxu0 0.0
        %2865 = vmatpush1.msra.mxu0 0.0
        %2866 = vmatprep.subr.mxu0 0.0
        %2867 = vmatpush1.msra.mxu0 0.0
        %2868 = vmatprep.subr.mxu0 0.0
        %2869 = vmatpush1.msra.mxu0 0.0
        %2870 = vmatprep.subr.mxu0 0.0
        %2871 = vmatpush1.msra.mxu0 0.0
        %2872 = vmatprep.subr.mxu0 0.0
        %2873 = vmatpush1.msra.mxu0 0.0
        %2874 = vmatprep.subr.mxu0 0.0
        %2875 = vmatpush1.msra.mxu0 0.0
        %2876 = vmatprep.subr.mxu0 0.0
        %2877 = vmatpush1.msra.mxu0 0.0
        %2878 = vmatprep.subr.mxu0 0.0
        %2879 = vmatpush1.msra.mxu0 0.0
        %2880 = vmatprep.subr.mxu0 0.0
        %2881 = vmatpush1.msra.mxu0 0.0
        %2882 = vmatprep.subr.mxu0 0.0
        %2883 = vmatpush1.msra.mxu0 0.0
        %2884 = vmatprep.subr.mxu0 0.0
        %2885 = vmatpush1.msra.mxu0 0.0
        %2886 = vmatprep.subr.mxu0 0.0
        %2887 = vmatpush1.msra.mxu0 0.0
        %2888 = vmatprep.subr.mxu0 0.0
        %2889 = vmatpush1.msra.mxu0 0.0
        %2890 = vmatprep.subr.mxu0 0.0
        %2891 = vmatpush1.msra.mxu0 0.0
        %2892 = vmatprep.subr.mxu0 0.0
        %2893 = vmatpush1.msra.mxu0 0.0
        %2894 = vmatprep.subr.mxu0 0.0
        %2895 = vmatpush1.msra.mxu0 0.0
        %2896 = vmatprep.subr.mxu0 0.0
        %2897 = vmatpush1.msra.mxu0 0.0
        %2898 = vmatprep.mubr.f32.mxu0 0.0
        %v2899 = vand.u32 %v2678, 4294901760
        %v2900 = vsub.f32 %v2678, %v2899
        %2901 = vmatmul.mubr.f32.gmra.mrb[0].mxu0 %v2900
        %v2902 = vpop.f32.mrb[0].mxu0
        %v2903 = vadd.f32 %v2829, %v2902
        %v2904 = vpop.f32.mrb[0].mxu0
        %2905 = vdwg.mxu0
        %2906 = vmatprep.subr.mxu0 0.0
        %v2907 = vand.u32 %v2675, 4294901760
        %2908 = vmatpush1.msra.mxu0 %v2907
        %2909 = vmatprep.subr.mxu0 0.0
        %2910 = vmatpush1.msra.mxu0 0.0
        %2911 = vmatprep.subr.mxu0 0.0
        %2912 = vmatpush1.msra.mxu0 0.0
        %2913 = vmatprep.subr.mxu0 0.0
        %2914 = vmatpush1.msra.mxu0 0.0
        %2915 = vmatprep.subr.mxu0 0.0
        %2916 = vmatpush1.msra.mxu0 0.0
        %2917 = vmatprep.subr.mxu0 0.0
        %2918 = vmatpush1.msra.mxu0 0.0
        %2919 = vmatprep.subr.mxu0 0.0
        %2920 = vmatpush1.msra.mxu0 0.0
        %2921 = vmatprep.subr.mxu0 0.0
        %2922 = vmatpush1.msra.mxu0 0.0
        %2923 = vmatprep.subr.mxu0 0.0
        %2924 = vmatpush1.msra.mxu0 0.0
        %2925 = vmatprep.subr.mxu0 0.0
        %2926 = vmatpush1.msra.mxu0 0.0
        %2927 = vmatprep.subr.mxu0 0.0
        %2928 = vmatpush1.msra.mxu0 0.0
        %2929 = vmatprep.subr.mxu0 0.0
        %2930 = vmatpush1.msra.mxu0 0.0
        %2931 = vmatprep.subr.mxu0 0.0
        %2932 = vmatpush1.msra.mxu0 0.0
        %2933 = vmatprep.subr.mxu0 0.0
        %2934 = vmatpush1.msra.mxu0 0.0
        %2935 = vmatprep.subr.mxu0 0.0
        %2936 = vmatpush1.msra.mxu0 0.0
        %2937 = vmatprep.subr.mxu0 0.0
        %2938 = vmatpush1.msra.mxu0 0.0
        %2939 = vmatprep.subr.mxu0 0.0
        %2940 = vmatpush1.msra.mxu0 0.0
        %2941 = vmatprep.subr.mxu0 0.0
        %2942 = vmatpush1.msra.mxu0 0.0
        %2943 = vmatprep.subr.mxu0 0.0
        %2944 = vmatpush1.msra.mxu0 0.0
        %2945 = vmatprep.subr.mxu0 0.0
        %2946 = vmatpush1.msra.mxu0 0.0
        %2947 = vmatprep.subr.mxu0 0.0
        %2948 = vmatpush1.msra.mxu0 0.0
        %2949 = vmatprep.subr.mxu0 0.0
        %2950 = vmatpush1.msra.mxu0 0.0
        %2951 = vmatprep.subr.mxu0 0.0
        %2952 = vmatpush1.msra.mxu0 0.0
        %2953 = vmatprep.subr.mxu0 0.0
        %2954 = vmatpush1.msra.mxu0 0.0
        %2955 = vmatprep.subr.mxu0 0.0
        %2956 = vmatpush1.msra.mxu0 0.0
        %2957 = vmatprep.subr.mxu0 0.0
        %2958 = vmatpush1.msra.mxu0 0.0
        %2959 = vmatprep.subr.mxu0 0.0
        %2960 = vmatpush1.msra.mxu0 0.0
        %2961 = vmatprep.subr.mxu0 0.0
        %2962 = vmatpush1.msra.mxu0 0.0
        %2963 = vmatprep.subr.mxu0 0.0
        %2964 = vmatpush1.msra.mxu0 0.0
        %2965 = vmatprep.subr.mxu0 0.0
        %2966 = vmatpush1.msra.mxu0 0.0
        %2967 = vmatprep.subr.mxu0 0.0
        %2968 = vmatpush1.msra.mxu0 0.0
        %2969 = vmatprep.subr.mxu0 0.0
        %2970 = vmatpush1.msra.mxu0 0.0
        %2971 = vmatprep.mubr.f32.mxu0 0.0
        %v2972 = vand.u32 %v2678, 4294901760
        %v2973 = vsub.f32 %v2678, %v2972
        %v2974 = vand.u32 %v2973, 4294901760
        %2975 = vmatmul.mubr.f32.gmra.mrb[0].mxu0 %v2974
        %v2976 = vpop.f32.mrb[0].mxu0
        %v2977 = vadd.f32 %v2903, %v2976
        %v2978 = vpop.f32.mrb[0].mxu0
        %2979 = vdwg.mxu0
        %2980 = vmatprep.subr.mxu0 0.0
        %v2981 = vand.u32 %v2675, 4294901760
        %v2982 = vsub.f32 %v2675, %v2981
        %v2983 = vand.u32 %v2982, 4294901760
        %2984 = vmatpush1.msra.mxu0 %v2983
        %2985 = vmatprep.subr.mxu0 0.0
        %2986 = vmatpush1.msra.mxu0 0.0
        %2987 = vmatprep.subr.mxu0 0.0
        %2988 = vmatpush1.msra.mxu0 0.0
        %2989 = vmatprep.subr.mxu0 0.0
        %2990 = vmatpush1.msra.mxu0 0.0
        %2991 = vmatprep.subr.mxu0 0.0
        %2992 = vmatpush1.msra.mxu0 0.0
        %2993 = vmatprep.subr.mxu0 0.0
        %2994 = vmatpush1.msra.mxu0 0.0
        %2995 = vmatprep.subr.mxu0 0.0
        %2996 = vmatpush1.msra.mxu0 0.0
        %2997 = vmatprep.subr.mxu0 0.0
        %2998 = vmatpush1.msra.mxu0 0.0
        %2999 = vmatprep.subr.mxu0 0.0
        %3000 = vmatpush1.msra.mxu0 0.0
        %3001 = vmatprep.subr.mxu0 0.0
        %3002 = vmatpush1.msra.mxu0 0.0
        %3003 = vmatprep.subr.mxu0 0.0
        %3004 = vmatpush1.msra.mxu0 0.0
        %3005 = vmatprep.subr.mxu0 0.0
        %3006 = vmatpush1.msra.mxu0 0.0
        %3007 = vmatprep.subr.mxu0 0.0
        %3008 = vmatpush1.msra.mxu0 0.0
        %3009 = vmatprep.subr.mxu0 0.0
        %3010 = vmatpush1.msra.mxu0 0.0
        %3011 = vmatprep.subr.mxu0 0.0
        %3012 = vmatpush1.msra.mxu0 0.0
        %3013 = vmatprep.subr.mxu0 0.0
        %3014 = vmatpush1.msra.mxu0 0.0
        %3015 = vmatprep.subr.mxu0 0.0
        %3016 = vmatpush1.msra.mxu0 0.0
        %3017 = vmatprep.subr.mxu0 0.0
        %3018 = vmatpush1.msra.mxu0 0.0
        %3019 = vmatprep.subr.mxu0 0.0
        %3020 = vmatpush1.msra.mxu0 0.0
        %3021 = vmatprep.subr.mxu0 0.0
        %3022 = vmatpush1.msra.mxu0 0.0
        %3023 = vmatprep.subr.mxu0 0.0
        %3024 = vmatpush1.msra.mxu0 0.0
        %3025 = vmatprep.subr.mxu0 0.0
        %3026 = vmatpush1.msra.mxu0 0.0
        %3027 = vmatprep.subr.mxu0 0.0
        %3028 = vmatpush1.msra.mxu0 0.0
        %3029 = vmatprep.subr.mxu0 0.0
        %3030 = vmatpush1.msra.mxu0 0.0
        %3031 = vmatprep.subr.mxu0 0.0
        %3032 = vmatpush1.msra.mxu0 0.0
        %3033 = vmatprep.subr.mxu0 0.0
        %3034 = vmatpush1.msra.mxu0 0.0
        %3035 = vmatprep.subr.mxu0 0.0
        %3036 = vmatpush1.msra.mxu0 0.0
        %3037 = vmatprep.subr.mxu0 0.0
        %3038 = vmatpush1.msra.mxu0 0.0
        %3039 = vmatprep.subr.mxu0 0.0
        %3040 = vmatpush1.msra.mxu0 0.0
        %3041 = vmatprep.subr.mxu0 0.0
        %3042 = vmatpush1.msra.mxu0 0.0
        %3043 = vmatprep.subr.mxu0 0.0
        %3044 = vmatpush1.msra.mxu0 0.0
        %3045 = vmatprep.subr.mxu0 0.0
        %3046 = vmatpush1.msra.mxu0 0.0
        %3047 = vmatprep.mubr.f32.mxu0 0.0
        %v3048 = vand.u32 %v2678, 4294901760
        %3049 = vmatmul.mubr.f32.gmra.mrb[0].mxu0 %v3048
        %v3050 = vpop.f32.mrb[0].mxu0
        %v3051 = vadd.f32 %v2977, %v3050
        %v3052 = vpop.f32.mrb[0].mxu0
        %3053 = vdwg.mxu0
        %3054 = vmatprep.subr.mxu0 0.0
        %v3055 = vand.u32 %v2675, 4294901760
        %3056 = vmatpush1.msra.mxu0 %v3055
        %3057 = vmatprep.subr.mxu0 0.0
        %3058 = vmatpush1.msra.mxu0 0.0
        %3059 = vmatprep.subr.mxu0 0.0
        %3060 = vmatpush1.msra.mxu0 0.0
        %3061 = vmatprep.subr.mxu0 0.0
        %3062 = vmatpush1.msra.mxu0 0.0
        %3063 = vmatprep.subr.mxu0 0.0
        %3064 = vmatpush1.msra.mxu0 0.0
        %3065 = vmatprep.subr.mxu0 0.0
        %3066 = vmatpush1.msra.mxu0 0.0
        %3067 = vmatprep.subr.mxu0 0.0
        %3068 = vmatpush1.msra.mxu0 0.0
        %3069 = vmatprep.subr.mxu0 0.0
        %3070 = vmatpush1.msra.mxu0 0.0
        %3071 = vmatprep.subr.mxu0 0.0
        %3072 = vmatpush1.msra.mxu0 0.0
        %3073 = vmatprep.subr.mxu0 0.0
        %3074 = vmatpush1.msra.mxu0 0.0
        %3075 = vmatprep.subr.mxu0 0.0
        %3076 = vmatpush1.msra.mxu0 0.0
        %3077 = vmatprep.subr.mxu0 0.0
        %3078 = vmatpush1.msra.mxu0 0.0
        %3079 = vmatprep.subr.mxu0 0.0
        %3080 = vmatpush1.msra.mxu0 0.0
        %3081 = vmatprep.subr.mxu0 0.0
        %3082 = vmatpush1.msra.mxu0 0.0
        %3083 = vmatprep.subr.mxu0 0.0
        %3084 = vmatpush1.msra.mxu0 0.0
        %3085 = vmatprep.subr.mxu0 0.0
        %3086 = vmatpush1.msra.mxu0 0.0
        %3087 = vmatprep.subr.mxu0 0.0
        %3088 = vmatpush1.msra.mxu0 0.0
        %3089 = vmatprep.subr.mxu0 0.0
        %3090 = vmatpush1.msra.mxu0 0.0
        %3091 = vmatprep.subr.mxu0 0.0
        %3092 = vmatpush1.msra.mxu0 0.0
        %3093 = vmatprep.subr.mxu0 0.0
        %3094 = vmatpush1.msra.mxu0 0.0
        %3095 = vmatprep.subr.mxu0 0.0
        %3096 = vmatpush1.msra.mxu0 0.0
        %3097 = vmatprep.subr.mxu0 0.0
        %3098 = vmatpush1.msra.mxu0 0.0
        %3099 = vmatprep.subr.mxu0 0.0
        %3100 = vmatpush1.msra.mxu0 0.0
        %3101 = vmatprep.subr.mxu0 0.0
        %3102 = vmatpush1.msra.mxu0 0.0
        %3103 = vmatprep.subr.mxu0 0.0
        %3104 = vmatpush1.msra.mxu0 0.0
        %3105 = vmatprep.subr.mxu0 0.0
        %3106 = vmatpush1.msra.mxu0 0.0
        %3107 = vmatprep.subr.mxu0 0.0
        %3108 = vmatpush1.msra.mxu0 0.0
        %3109 = vmatprep.subr.mxu0 0.0
        %3110 = vmatpush1.msra.mxu0 0.0
        %3111 = vmatprep.subr.mxu0 0.0
        %3112 = vmatpush1.msra.mxu0 0.0
        %3113 = vmatprep.subr.mxu0 0.0
        %3114 = vmatpush1.msra.mxu0 0.0
        %3115 = vmatprep.subr.mxu0 0.0
        %3116 = vmatpush1.msra.mxu0 0.0
        %3117 = vmatprep.subr.mxu0 0.0
        %3118 = vmatpush1.msra.mxu0 0.0
        %3119 = vmatprep.mubr.f32.mxu0 0.0
        %v3120 = vand.u32 %v2678, 4294901760
        %3121 = vmatmul.mubr.f32.gmra.mrb[0].mxu0 %v3120
        %v3122 = vpop.f32.mrb[0].mxu0
        %v3123 = vadd.f32 %v3051, %v3122
        %v3124 = vpop.f32.mrb[0].mxu0
        %3125 = vdwg.mxu0
        %3126 = vrot.lane.b32.xlu0 %v1290, 112
        %v3127 = vpop.permute.xlu0 %3126
        %3128 = vrot.lane.b32.xlu0 %v1287, 112
        %v3129 = vpop.permute.xlu0 %3128
        %v3130 = vsel %vm1291, %v3127, 0
        %v3132 = vsel %vm1291, %v3129, 0
        %3134 = vmatprep.subr.mxu0 0.0
        %v3135 = vand.u32 %v3132, 4294901760
        %3136 = vmatpush1.xpose.msra.mxu0 %v3135
        %3137 = vmatprep.subr.mxu0 0.0
        %3138 = vmatpush1.xpose.msra.mxu0 0.0
        %3139 = vmatprep.subr.mxu0 0.0
        %3140 = vmatpush1.xpose.msra.mxu0 0.0
        %3141 = vmatprep.subr.mxu0 0.0
        %3142 = vmatpush1.xpose.msra.mxu0 0.0
        %3143 = vmatprep.subr.mxu0 0.0
        %3144 = vmatpush1.xpose.msra.mxu0 0.0
        %3145 = vmatprep.subr.mxu0 0.0
        %3146 = vmatpush1.xpose.msra.mxu0 0.0
        %3147 = vmatprep.subr.mxu0 0.0
        %3148 = vmatpush1.xpose.msra.mxu0 0.0
        %3149 = vmatprep.subr.mxu0 0.0
        %3150 = vmatpush1.xpose.msra.mxu0 0.0
        %3151 = vmatprep.subr.mxu0 0.0
        %3152 = vmatpush1.xpose.msra.mxu0 0.0
        %3153 = vmatprep.subr.mxu0 0.0
        %3154 = vmatpush1.xpose.msra.mxu0 0.0
        %3155 = vmatprep.subr.mxu0 0.0
        %3156 = vmatpush1.xpose.msra.mxu0 0.0
        %3157 = vmatprep.subr.mxu0 0.0
        %3158 = vmatpush1.xpose.msra.mxu0 0.0
        %3159 = vmatprep.subr.mxu0 0.0
        %3160 = vmatpush1.xpose.msra.mxu0 0.0
        %3161 = vmatprep.subr.mxu0 0.0
        %3162 = vmatpush1.xpose.msra.mxu0 0.0
        %3163 = vmatprep.subr.mxu0 0.0
        %3164 = vmatpush1.xpose.msra.mxu0 0.0
        %3165 = vmatprep.subr.mxu0 0.0
        %3166 = vmatpush1.xpose.msra.mxu0 0.0
        %3167 = vmatprep.subr.mxu0 0.0
        %3168 = vmatpush1.xpose.msra.mxu0 0.0
        %3169 = vmatprep.subr.mxu0 0.0
        %3170 = vmatpush1.xpose.msra.mxu0 0.0
        %3171 = vmatprep.subr.mxu0 0.0
        %3172 = vmatpush1.xpose.msra.mxu0 0.0
        %3173 = vmatprep.subr.mxu0 0.0
        %3174 = vmatpush1.xpose.msra.mxu0 0.0
        %3175 = vmatprep.subr.mxu0 0.0
        %3176 = vmatpush1.xpose.msra.mxu0 0.0
        %3177 = vmatprep.subr.mxu0 0.0
        %3178 = vmatpush1.xpose.msra.mxu0 0.0
        %3179 = vmatprep.subr.mxu0 0.0
        %3180 = vmatpush1.xpose.msra.mxu0 0.0
        %3181 = vmatprep.subr.mxu0 0.0
        %3182 = vmatpush1.xpose.msra.mxu0 0.0
        %3183 = vmatprep.subr.mxu0 0.0
        %3184 = vmatpush1.xpose.msra.mxu0 0.0
        %3185 = vmatprep.subr.mxu0 0.0
        %3186 = vmatpush1.xpose.msra.mxu0 0.0
        %3187 = vmatprep.subr.mxu0 0.0
        %3188 = vmatpush1.xpose.msra.mxu0 0.0
        %3189 = vmatprep.subr.mxu0 0.0
        %3190 = vmatpush1.xpose.msra.mxu0 0.0
        %3191 = vmatprep.subr.mxu0 0.0
        %3192 = vmatpush1.xpose.msra.mxu0 0.0
        %3193 = vmatprep.subr.mxu0 0.0
        %3194 = vmatpush1.xpose.msra.mxu0 0.0
        %3195 = vmatprep.subr.mxu0 0.0
        %3196 = vmatpush1.xpose.msra.mxu0 0.0
        %3197 = vmatprep.subr.mxu0 0.0
        %3198 = vmatpush1.xpose.msra.mxu0 0.0
        %3199 = vmatprep.mubr.f32.mxu0 0.0
        %v3200 = vand.u32 %v3130, 4294901760
        %v3201 = vsub.f32 %v3130, %v3200
        %v3202 = vand.u32 %v3201, 4294901760
        %v3203 = vsub.f32 %v3201, %v3202
        %v3204 = vand.u32 %v3203, 4294901760
        %3205 = vmatmul.mubr.f32.gmra.mrb[0].mxu0 %v3204
        %v3206 = vpop.f32.mrb[0].mxu0
        %v3207 = vadd.f32 0.0, %v3206
        %v3208 = vpop.f32.mrb[0].mxu0
        %3209 = vdwg.mxu0
        %3210 = vmatprep.subr.mxu0 0.0
        %v3211 = vand.u32 %v3132, 4294901760
        %v3212 = vsub.f32 %v3132, %v3211
        %v3213 = vand.u32 %v3212, 4294901760
        %v3214 = vsub.f32 %v3212, %v3213
        %v3215 = vand.u32 %v3214, 4294901760
        %3216 = vmatpush1.xpose.msra.mxu0 %v3215
        %3217 = vmatprep.subr.mxu0 0.0
        %3218 = vmatpush1.xpose.msra.mxu0 0.0
        %3219 = vmatprep.subr.mxu0 0.0
        %3220 = vmatpush1.xpose.msra.mxu0 0.0
        %3221 = vmatprep.subr.mxu0 0.0
        %3222 = vmatpush1.xpose.msra.mxu0 0.0
        %3223 = vmatprep.subr.mxu0 0.0
        %3224 = vmatpush1.xpose.msra.mxu0 0.0
        %3225 = vmatprep.subr.mxu0 0.0
        %3226 = vmatpush1.xpose.msra.mxu0 0.0
        %3227 = vmatprep.subr.mxu0 0.0
        %3228 = vmatpush1.xpose.msra.mxu0 0.0
        %3229 = vmatprep.subr.mxu0 0.0
        %3230 = vmatpush1.xpose.msra.mxu0 0.0
        %3231 = vmatprep.subr.mxu0 0.0
        %3232 = vmatpush1.xpose.msra.mxu0 0.0
        %3233 = vmatprep.subr.mxu0 0.0
        %3234 = vmatpush1.xpose.msra.mxu0 0.0
        %3235 = vmatprep.subr.mxu0 0.0
        %3236 = vmatpush1.xpose.msra.mxu0 0.0
        %3237 = vmatprep.subr.mxu0 0.0
        %3238 = vmatpush1.xpose.msra.mxu0 0.0
        %3239 = vmatprep.subr.mxu0 0.0
        %3240 = vmatpush1.xpose.msra.mxu0 0.0
        %3241 = vmatprep.subr.mxu0 0.0
        %3242 = vmatpush1.xpose.msra.mxu0 0.0
        %3243 = vmatprep.subr.mxu0 0.0
        %3244 = vmatpush1.xpose.msra.mxu0 0.0
        %3245 = vmatprep.subr.mxu0 0.0
        %3246 = vmatpush1.xpose.msra.mxu0 0.0
        %3247 = vmatprep.subr.mxu0 0.0
        %3248 = vmatpush1.xpose.msra.mxu0 0.0
        %3249 = vmatprep.subr.mxu0 0.0
        %3250 = vmatpush1.xpose.msra.mxu0 0.0
        %3251 = vmatprep.subr.mxu0 0.0
        %3252 = vmatpush1.xpose.msra.mxu0 0.0
        %3253 = vmatprep.subr.mxu0 0.0
        %3254 = vmatpush1.xpose.msra.mxu0 0.0
        %3255 = vmatprep.subr.mxu0 0.0
        %3256 = vmatpush1.xpose.msra.mxu0 0.0
        %3257 = vmatprep.subr.mxu0 0.0
        %3258 = vmatpush1.xpose.msra.mxu0 0.0
        %3259 = vmatprep.subr.mxu0 0.0
        %3260 = vmatpush1.xpose.msra.mxu0 0.0
        %3261 = vmatprep.subr.mxu0 0.0
        %3262 = vmatpush1.xpose.msra.mxu0 0.0
        %3263 = vmatprep.subr.mxu0 0.0
        %3264 = vmatpush1.xpose.msra.mxu0 0.0
        %3265 = vmatprep.subr.mxu0 0.0
        %3266 = vmatpush1.xpose.msra.mxu0 0.0
        %3267 = vmatprep.subr.mxu0 0.0
        %3268 = vmatpush1.xpose.msra.mxu0 0.0
        %3269 = vmatprep.subr.mxu0 0.0
        %3270 = vmatpush1.xpose.msra.mxu0 0.0
        %3271 = vmatprep.subr.mxu0 0.0
        %3272 = vmatpush1.xpose.msra.mxu0 0.0
        %3273 = vmatprep.subr.mxu0 0.0
        %3274 = vmatpush1.xpose.msra.mxu0 0.0
        %3275 = vmatprep.subr.mxu0 0.0
        %3276 = vmatpush1.xpose.msra.mxu0 0.0
        %3277 = vmatprep.subr.mxu0 0.0
        %3278 = vmatpush1.xpose.msra.mxu0 0.0
        %3279 = vmatprep.mubr.f32.mxu0 0.0
        %v3280 = vand.u32 %v3130, 4294901760
        %3281 = vmatmul.mubr.f32.gmra.mrb[0].mxu0 %v3280
        %v3282 = vpop.f32.mrb[0].mxu0
        %v3283 = vadd.f32 %v3207, %v3282
        %v3284 = vpop.f32.mrb[0].mxu0
        %3285 = vdwg.mxu0
        %3286 = vmatprep.subr.mxu0 0.0
        %v3287 = vand.u32 %v3132, 4294901760
        %v3288 = vsub.f32 %v3132, %v3287
        %3289 = vmatpush1.xpose.msra.mxu0 %v3288
        %3290 = vmatprep.subr.mxu0 0.0
        %3291 = vmatpush1.xpose.msra.mxu0 0.0
        %3292 = vmatprep.subr.mxu0 0.0
        %3293 = vmatpush1.xpose.msra.mxu0 0.0
        %3294 = vmatprep.subr.mxu0 0.0
        %3295 = vmatpush1.xpose.msra.mxu0 0.0
        %3296 = vmatprep.subr.mxu0 0.0
        %3297 = vmatpush1.xpose.msra.mxu0 0.0
        %3298 = vmatprep.subr.mxu0 0.0
        %3299 = vmatpush1.xpose.msra.mxu0 0.0
        %3300 = vmatprep.subr.mxu0 0.0
        %3301 = vmatpush1.xpose.msra.mxu0 0.0
        %3302 = vmatprep.subr.mxu0 0.0
        %3303 = vmatpush1.xpose.msra.mxu0 0.0
        %3304 = vmatprep.subr.mxu0 0.0
        %3305 = vmatpush1.xpose.msra.mxu0 0.0
        %3306 = vmatprep.subr.mxu0 0.0
        %3307 = vmatpush1.xpose.msra.mxu0 0.0
        %3308 = vmatprep.subr.mxu0 0.0
        %3309 = vmatpush1.xpose.msra.mxu0 0.0
        %3310 = vmatprep.subr.mxu0 0.0
        %3311 = vmatpush1.xpose.msra.mxu0 0.0
        %3312 = vmatprep.subr.mxu0 0.0
        %3313 = vmatpush1.xpose.msra.mxu0 0.0
        %3314 = vmatprep.subr.mxu0 0.0
        %3315 = vmatpush1.xpose.msra.mxu0 0.0
        %3316 = vmatprep.subr.mxu0 0.0
        %3317 = vmatpush1.xpose.msra.mxu0 0.0
        %3318 = vmatprep.subr.mxu0 0.0
        %3319 = vmatpush1.xpose.msra.mxu0 0.0
        %3320 = vmatprep.subr.mxu0 0.0
        %3321 = vmatpush1.xpose.msra.mxu0 0.0
        %3322 = vmatprep.subr.mxu0 0.0
        %3323 = vmatpush1.xpose.msra.mxu0 0.0
        %3324 = vmatprep.subr.mxu0 0.0
        %3325 = vmatpush1.xpose.msra.mxu0 0.0
        %3326 = vmatprep.subr.mxu0 0.0
        %3327 = vmatpush1.xpose.msra.mxu0 0.0
        %3328 = vmatprep.subr.mxu0 0.0
        %3329 = vmatpush1.xpose.msra.mxu0 0.0
        %3330 = vmatprep.subr.mxu0 0.0
        %3331 = vmatpush1.xpose.msra.mxu0 0.0
        %3332 = vmatprep.subr.mxu0 0.0
        %3333 = vmatpush1.xpose.msra.mxu0 0.0
        %3334 = vmatprep.subr.mxu0 0.0
        %3335 = vmatpush1.xpose.msra.mxu0 0.0
        %3336 = vmatprep.subr.mxu0 0.0
        %3337 = vmatpush1.xpose.msra.mxu0 0.0
        %3338 = vmatprep.subr.mxu0 0.0
        %3339 = vmatpush1.xpose.msra.mxu0 0.0
        %3340 = vmatprep.subr.mxu0 0.0
        %3341 = vmatpush1.xpose.msra.mxu0 0.0
        %3342 = vmatprep.subr.mxu0 0.0
        %3343 = vmatpush1.xpose.msra.mxu0 0.0
        %3344 = vmatprep.subr.mxu0 0.0
        %3345 = vmatpush1.xpose.msra.mxu0 0.0
        %3346 = vmatprep.subr.mxu0 0.0
        %3347 = vmatpush1.xpose.msra.mxu0 0.0
        %3348 = vmatprep.subr.mxu0 0.0
        %3349 = vmatpush1.xpose.msra.mxu0 0.0
        %3350 = vmatprep.subr.mxu0 0.0
        %3351 = vmatpush1.xpose.msra.mxu0 0.0
        %3352 = vmatprep.mubr.f32.mxu0 0.0
        %v3353 = vand.u32 %v3130, 4294901760
        %v3354 = vsub.f32 %v3130, %v3353
        %3355 = vmatmul.mubr.f32.gmra.mrb[0].mxu0 %v3354
        %v3356 = vpop.f32.mrb[0].mxu0
        %v3357 = vadd.f32 %v3283, %v3356
        %v3358 = vpop.f32.mrb[0].mxu0
        %3359 = vdwg.mxu0
        %3360 = vmatprep.subr.mxu0 0.0
        %v3361 = vand.u32 %v3132, 4294901760
        %3362 = vmatpush1.xpose.msra.mxu0 %v3361
        %3363 = vmatprep.subr.mxu0 0.0
        %3364 = vmatpush1.xpose.msra.mxu0 0.0
        %3365 = vmatprep.subr.mxu0 0.0
        %3366 = vmatpush1.xpose.msra.mxu0 0.0
        %3367 = vmatprep.subr.mxu0 0.0
        %3368 = vmatpush1.xpose.msra.mxu0 0.0
        %3369 = vmatprep.subr.mxu0 0.0
        %3370 = vmatpush1.xpose.msra.mxu0 0.0
        %3371 = vmatprep.subr.mxu0 0.0
        %3372 = vmatpush1.xpose.msra.mxu0 0.0
        %3373 = vmatprep.subr.mxu0 0.0
        %3374 = vmatpush1.xpose.msra.mxu0 0.0
        %3375 = vmatprep.subr.mxu0 0.0
        %3376 = vmatpush1.xpose.msra.mxu0 0.0
        %3377 = vmatprep.subr.mxu0 0.0
        %3378 = vmatpush1.xpose.msra.mxu0 0.0
        %3379 = vmatprep.subr.mxu0 0.0
        %3380 = vmatpush1.xpose.msra.mxu0 0.0
        %3381 = vmatprep.subr.mxu0 0.0
        %3382 = vmatpush1.xpose.msra.mxu0 0.0
        %3383 = vmatprep.subr.mxu0 0.0
        %3384 = vmatpush1.xpose.msra.mxu0 0.0
        %3385 = vmatprep.subr.mxu0 0.0
        %3386 = vmatpush1.xpose.msra.mxu0 0.0
        %3387 = vmatprep.subr.mxu0 0.0
        %3388 = vmatpush1.xpose.msra.mxu0 0.0
        %3389 = vmatprep.subr.mxu0 0.0
        %3390 = vmatpush1.xpose.msra.mxu0 0.0
        %3391 = vmatprep.subr.mxu0 0.0
        %3392 = vmatpush1.xpose.msra.mxu0 0.0
        %3393 = vmatprep.subr.mxu0 0.0
        %3394 = vmatpush1.xpose.msra.mxu0 0.0
        %3395 = vmatprep.subr.mxu0 0.0
        %3396 = vmatpush1.xpose.msra.mxu0 0.0
        %3397 = vmatprep.subr.mxu0 0.0
        %3398 = vmatpush1.xpose.msra.mxu0 0.0
        %3399 = vmatprep.subr.mxu0 0.0
        %3400 = vmatpush1.xpose.msra.mxu0 0.0
        %3401 = vmatprep.subr.mxu0 0.0
        %3402 = vmatpush1.xpose.msra.mxu0 0.0
        %3403 = vmatprep.subr.mxu0 0.0
        %3404 = vmatpush1.xpose.msra.mxu0 0.0
        %3405 = vmatprep.subr.mxu0 0.0
        %3406 = vmatpush1.xpose.msra.mxu0 0.0
        %3407 = vmatprep.subr.mxu0 0.0
        %3408 = vmatpush1.xpose.msra.mxu0 0.0
        %3409 = vmatprep.subr.mxu0 0.0
        %3410 = vmatpush1.xpose.msra.mxu0 0.0
        %3411 = vmatprep.subr.mxu0 0.0
        %3412 = vmatpush1.xpose.msra.mxu0 0.0
        %3413 = vmatprep.subr.mxu0 0.0
        %3414 = vmatpush1.xpose.msra.mxu0 0.0
        %3415 = vmatprep.subr.mxu0 0.0
        %3416 = vmatpush1.xpose.msra.mxu0 0.0
        %3417 = vmatprep.subr.mxu0 0.0
        %3418 = vmatpush1.xpose.msra.mxu0 0.0
        %3419 = vmatprep.subr.mxu0 0.0
        %3420 = vmatpush1.xpose.msra.mxu0 0.0
        %3421 = vmatprep.subr.mxu0 0.0
        %3422 = vmatpush1.xpose.msra.mxu0 0.0
        %3423 = vmatprep.subr.mxu0 0.0
        %3424 = vmatpush1.xpose.msra.mxu0 0.0
        %3425 = vmatprep.mubr.f32.mxu0 0.0
        %v3426 = vand.u32 %v3130, 4294901760
        %v3427 = vsub.f32 %v3130, %v3426
        %v3428 = vand.u32 %v3427, 4294901760
        %3429 = vmatmul.mubr.f32.gmra.mrb[0].mxu0 %v3428
        %v3430 = vpop.f32.mrb[0].mxu0
        %v3431 = vadd.f32 %v3357, %v3430
        %v3432 = vpop.f32.mrb[0].mxu0
        %3433 = vdwg.mxu0
        %3434 = vmatprep.subr.mxu0 0.0
        %v3435 = vand.u32 %v3132, 4294901760
        %v3436 = vsub.f32 %v3132, %v3435
        %v3437 = vand.u32 %v3436, 4294901760
        %3438 = vmatpush1.xpose.msra.mxu0 %v3437
        %3439 = vmatprep.subr.mxu0 0.0
        %3440 = vmatpush1.xpose.msra.mxu0 0.0
        %3441 = vmatprep.subr.mxu0 0.0
        %3442 = vmatpush1.xpose.msra.mxu0 0.0
        %3443 = vmatprep.subr.mxu0 0.0
        %3444 = vmatpush1.xpose.msra.mxu0 0.0
        %3445 = vmatprep.subr.mxu0 0.0
        %3446 = vmatpush1.xpose.msra.mxu0 0.0
        %3447 = vmatprep.subr.mxu0 0.0
        %3448 = vmatpush1.xpose.msra.mxu0 0.0
        %3449 = vmatprep.subr.mxu0 0.0
        %3450 = vmatpush1.xpose.msra.mxu0 0.0
        %3451 = vmatprep.subr.mxu0 0.0
        %3452 = vmatpush1.xpose.msra.mxu0 0.0
        %3453 = vmatprep.subr.mxu0 0.0
        %3454 = vmatpush1.xpose.msra.mxu0 0.0
        %3455 = vmatprep.subr.mxu0 0.0
        %3456 = vmatpush1.xpose.msra.mxu0 0.0
        %3457 = vmatprep.subr.mxu0 0.0
        %3458 = vmatpush1.xpose.msra.mxu0 0.0
        %3459 = vmatprep.subr.mxu0 0.0
        %3460 = vmatpush1.xpose.msra.mxu0 0.0
        %3461 = vmatprep.subr.mxu0 0.0
        %3462 = vmatpush1.xpose.msra.mxu0 0.0
        %3463 = vmatprep.subr.mxu0 0.0
        %3464 = vmatpush1.xpose.msra.mxu0 0.0
        %3465 = vmatprep.subr.mxu0 0.0
        %3466 = vmatpush1.xpose.msra.mxu0 0.0
        %3467 = vmatprep.subr.mxu0 0.0
        %3468 = vmatpush1.xpose.msra.mxu0 0.0
        %3469 = vmatprep.subr.mxu0 0.0
        %3470 = vmatpush1.xpose.msra.mxu0 0.0
        %3471 = vmatprep.subr.mxu0 0.0
        %3472 = vmatpush1.xpose.msra.mxu0 0.0
        %3473 = vmatprep.subr.mxu0 0.0
        %3474 = vmatpush1.xpose.msra.mxu0 0.0
        %3475 = vmatprep.subr.mxu0 0.0
        %3476 = vmatpush1.xpose.msra.mxu0 0.0
        %3477 = vmatprep.subr.mxu0 0.0
        %3478 = vmatpush1.xpose.msra.mxu0 0.0
        %3479 = vmatprep.subr.mxu0 0.0
        %3480 = vmatpush1.xpose.msra.mxu0 0.0
        %3481 = vmatprep.subr.mxu0 0.0
        %3482 = vmatpush1.xpose.msra.mxu0 0.0
        %3483 = vmatprep.subr.mxu0 0.0
        %3484 = vmatpush1.xpose.msra.mxu0 0.0
        %3485 = vmatprep.subr.mxu0 0.0
        %3486 = vmatpush1.xpose.msra.mxu0 0.0
        %3487 = vmatprep.subr.mxu0 0.0
        %3488 = vmatpush1.xpose.msra.mxu0 0.0
        %3489 = vmatprep.subr.mxu0 0.0
        %3490 = vmatpush1.xpose.msra.mxu0 0.0
        %3491 = vmatprep.subr.mxu0 0.0
        %3492 = vmatpush1.xpose.msra.mxu0 0.0
        %3493 = vmatprep.subr.mxu0 0.0
        %3494 = vmatpush1.xpose.msra.mxu0 0.0
        %3495 = vmatprep.subr.mxu0 0.0
        %3496 = vmatpush1.xpose.msra.mxu0 0.0
        %3497 = vmatprep.subr.mxu0 0.0
        %3498 = vmatpush1.xpose.msra.mxu0 0.0
        %3499 = vmatprep.subr.mxu0 0.0
        %3500 = vmatpush1.xpose.msra.mxu0 0.0
        %3501 = vmatprep.mubr.f32.mxu0 0.0
        %v3502 = vand.u32 %v3130, 4294901760
        %3503 = vmatmul.mubr.f32.gmra.mrb[0].mxu0 %v3502
        %v3504 = vpop.f32.mrb[0].mxu0
        %v3505 = vadd.f32 %v3431, %v3504
        %v3506 = vpop.f32.mrb[0].mxu0
        %3507 = vdwg.mxu0
        %3508 = vmatprep.subr.mxu0 0.0
        %v3509 = vand.u32 %v3132, 4294901760
        %3510 = vmatpush1.xpose.msra.mxu0 %v3509
        %3511 = vmatprep.subr.mxu0 0.0
        %3512 = vmatpush1.xpose.msra.mxu0 0.0
        %3513 = vmatprep.subr.mxu0 0.0
        %3514 = vmatpush1.xpose.msra.mxu0 0.0
        %3515 = vmatprep.subr.mxu0 0.0
        %3516 = vmatpush1.xpose.msra.mxu0 0.0
        %3517 = vmatprep.subr.mxu0 0.0
        %3518 = vmatpush1.xpose.msra.mxu0 0.0
        %3519 = vmatprep.subr.mxu0 0.0
        %3520 = vmatpush1.xpose.msra.mxu0 0.0
        %3521 = vmatprep.subr.mxu0 0.0
        %3522 = vmatpush1.xpose.msra.mxu0 0.0
        %3523 = vmatprep.subr.mxu0 0.0
        %3524 = vmatpush1.xpose.msra.mxu0 0.0
        %3525 = vmatprep.subr.mxu0 0.0
        %3526 = vmatpush1.xpose.msra.mxu0 0.0
        %3527 = vmatprep.subr.mxu0 0.0
        %3528 = vmatpush1.xpose.msra.mxu0 0.0
        %3529 = vmatprep.subr.mxu0 0.0
        %3530 = vmatpush1.xpose.msra.mxu0 0.0
        %3531 = vmatprep.subr.mxu0 0.0
        %3532 = vmatpush1.xpose.msra.mxu0 0.0
        %3533 = vmatprep.subr.mxu0 0.0
        %3534 = vmatpush1.xpose.msra.mxu0 0.0
        %3535 = vmatprep.subr.mxu0 0.0
        %3536 = vmatpush1.xpose.msra.mxu0 0.0
        %3537 = vmatprep.subr.mxu0 0.0
        %3538 = vmatpush1.xpose.msra.mxu0 0.0
        %3539 = vmatprep.subr.mxu0 0.0
        %3540 = vmatpush1.xpose.msra.mxu0 0.0
        %3541 = vmatprep.subr.mxu0 0.0
        %3542 = vmatpush1.xpose.msra.mxu0 0.0
        %3543 = vmatprep.subr.mxu0 0.0
        %3544 = vmatpush1.xpose.msra.mxu0 0.0
        %3545 = vmatprep.subr.mxu0 0.0
        %3546 = vmatpush1.xpose.msra.mxu0 0.0
        %3547 = vmatprep.subr.mxu0 0.0
        %3548 = vmatpush1.xpose.msra.mxu0 0.0
        %3549 = vmatprep.subr.mxu0 0.0
        %3550 = vmatpush1.xpose.msra.mxu0 0.0
        %3551 = vmatprep.subr.mxu0 0.0
        %3552 = vmatpush1.xpose.msra.mxu0 0.0
        %3553 = vmatprep.subr.mxu0 0.0
        %3554 = vmatpush1.xpose.msra.mxu0 0.0
        %3555 = vmatprep.subr.mxu0 0.0
        %3556 = vmatpush1.xpose.msra.mxu0 0.0
        %3557 = vmatprep.subr.mxu0 0.0
        %3558 = vmatpush1.xpose.msra.mxu0 0.0
        %3559 = vmatprep.subr.mxu0 0.0
        %3560 = vmatpush1.xpose.msra.mxu0 0.0
        %3561 = vmatprep.subr.mxu0 0.0
        %3562 = vmatpush1.xpose.msra.mxu0 0.0
        %3563 = vmatprep.subr.mxu0 0.0
        %3564 = vmatpush1.xpose.msra.mxu0 0.0
        %3565 = vmatprep.subr.mxu0 0.0
        %3566 = vmatpush1.xpose.msra.mxu0 0.0
        %3567 = vmatprep.subr.mxu0 0.0
        %3568 = vmatpush1.xpose.msra.mxu0 0.0
        %3569 = vmatprep.subr.mxu0 0.0
        %3570 = vmatpush1.xpose.msra.mxu0 0.0
        %3571 = vmatprep.subr.mxu0 0.0
        %3572 = vmatpush1.xpose.msra.mxu0 0.0
        %3573 = vmatprep.mubr.f32.mxu0 0.0
        %v3574 = vand.u32 %v3130, 4294901760
        %3575 = vmatmul.mubr.f32.gmra.mrb[0].mxu0 %v3574
        %v3576 = vpop.f32.mrb[0].mxu0
        %v3577 = vadd.f32 %v3505, %v3576
        %v3578 = vpop.f32.mrb[0].mxu0
        %3579 = vdwg.mxu0
        %v3580 = vsel %vm1291, %v3577, -inf
        %3581 = vmax.xlane.f32.xlu0 %v3580
        %v3582 = vpop.xlane.xlu0 %3581
        %v3583 = vsub.f32 %v3577, %v3582
        %v3584 = vmul.f32 %v3583, 1.442695
        %v3585 = vpow.pop %v3584
        %v3586 = vsel %vm1291, %v3585, 0.0
        %3587 = vadd.xlane.f32.xlu0 %v3586
        %v3588 = vpop.xlane.xlu0 %3587
        %v3589 = vrcp.pop %v3588
        %v3590 = vmul.f32 1.0, %v3589
        %v3591 = vmul.f32 %v3585, %v3590
        %3592 = vrot.lane.b32.xlu0 %v1287, 80
        %v3593 = vpop.permute.xlu0 %3592
        %v3596 = vsel %vm1291, %v3591, 0
        %3598 = vmatprep.subr.mxu0 0.0
        %v3599 = vand.u32 %v3593, 4294901760
        %3600 = vmatpush1.msra.mxu0 %v3599
        %3601 = vmatprep.subr.mxu0 0.0
        %3602 = vmatpush1.msra.mxu0 0.0
        %3603 = vmatprep.subr.mxu0 0.0
        %3604 = vmatpush1.msra.mxu0 0.0
        %3605 = vmatprep.subr.mxu0 0.0
        %3606 = vmatpush1.msra.mxu0 0.0
        %3607 = vmatprep.subr.mxu0 0.0
        %3608 = vmatpush1.msra.mxu0 0.0
        %3609 = vmatprep.subr.mxu0 0.0
        %3610 = vmatpush1.msra.mxu0 0.0
        %3611 = vmatprep.subr.mxu0 0.0
        %3612 = vmatpush1.msra.mxu0 0.0
        %3613 = vmatprep.subr.mxu0 0.0
        %3614 = vmatpush1.msra.mxu0 0.0
        %3615 = vmatprep.subr.mxu0 0.0
        %3616 = vmatpush1.msra.mxu0 0.0
        %3617 = vmatprep.subr.mxu0 0.0
        %3618 = vmatpush1.msra.mxu0 0.0
        %3619 = vmatprep.subr.mxu0 0.0
        %3620 = vmatpush1.msra.mxu0 0.0
        %3621 = vmatprep.subr.mxu0 0.0
        %3622 = vmatpush1.msra.mxu0 0.0
        %3623 = vmatprep.subr.mxu0 0.0
        %3624 = vmatpush1.msra.mxu0 0.0
        %3625 = vmatprep.subr.mxu0 0.0
        %3626 = vmatpush1.msra.mxu0 0.0
        %3627 = vmatprep.subr.mxu0 0.0
        %3628 = vmatpush1.msra.mxu0 0.0
        %3629 = vmatprep.subr.mxu0 0.0
        %3630 = vmatpush1.msra.mxu0 0.0
        %3631 = vmatprep.subr.mxu0 0.0
        %3632 = vmatpush1.msra.mxu0 0.0
        %3633 = vmatprep.subr.mxu0 0.0
        %3634 = vmatpush1.msra.mxu0 0.0
        %3635 = vmatprep.subr.mxu0 0.0
        %3636 = vmatpush1.msra.mxu0 0.0
        %3637 = vmatprep.subr.mxu0 0.0
        %3638 = vmatpush1.msra.mxu0 0.0
        %3639 = vmatprep.subr.mxu0 0.0
        %3640 = vmatpush1.msra.mxu0 0.0
        %3641 = vmatprep.subr.mxu0 0.0
        %3642 = vmatpush1.msra.mxu0 0.0
        %3643 = vmatprep.subr.mxu0 0.0
        %3644 = vmatpush1.msra.mxu0 0.0
        %3645 = vmatprep.subr.mxu0 0.0
        %3646 = vmatpush1.msra.mxu0 0.0
        %3647 = vmatprep.subr.mxu0 0.0
        %3648 = vmatpush1.msra.mxu0 0.0
        %3649 = vmatprep.subr.mxu0 0.0
        %3650 = vmatpush1.msra.mxu0 0.0
        %3651 = vmatprep.subr.mxu0 0.0
        %3652 = vmatpush1.msra.mxu0 0.0
        %3653 = vmatprep.subr.mxu0 0.0
        %3654 = vmatpush1.msra.mxu0 0.0
        %3655 = vmatprep.subr.mxu0 0.0
        %3656 = vmatpush1.msra.mxu0 0.0
        %3657 = vmatprep.subr.mxu0 0.0
        %3658 = vmatpush1.msra.mxu0 0.0
        %3659 = vmatprep.subr.mxu0 0.0
        %3660 = vmatpush1.msra.mxu0 0.0
        %3661 = vmatprep.subr.mxu0 0.0
        %3662 = vmatpush1.msra.mxu0 0.0
        %3663 = vmatprep.mubr.f32.mxu0 0.0
        %v3664 = vand.u32 %v3596, 4294901760
        %v3665 = vsub.f32 %v3596, %v3664
        %v3666 = vand.u32 %v3665, 4294901760
        %v3667 = vsub.f32 %v3665, %v3666
        %v3668 = vand.u32 %v3667, 4294901760
        %3669 = vmatmul.mubr.f32.gmra.mrb[0].mxu0 %v3668
        %v3670 = vpop.f32.mrb[0].mxu0
        %v3671 = vadd.f32 0.0, %v3670
        %v3672 = vpop.f32.mrb[0].mxu0
        %3673 = vdwg.mxu0
        %3674 = vmatprep.subr.mxu0 0.0
        %v3675 = vand.u32 %v3593, 4294901760
        %v3676 = vsub.f32 %v3593, %v3675
        %v3677 = vand.u32 %v3676, 4294901760
        %v3678 = vsub.f32 %v3676, %v3677
        %v3679 = vand.u32 %v3678, 4294901760
        %3680 = vmatpush1.msra.mxu0 %v3679
        %3681 = vmatprep.subr.mxu0 0.0
        %3682 = vmatpush1.msra.mxu0 0.0
        %3683 = vmatprep.subr.mxu0 0.0
        %3684 = vmatpush1.msra.mxu0 0.0
        %3685 = vmatprep.subr.mxu0 0.0
        %3686 = vmatpush1.msra.mxu0 0.0
        %3687 = vmatprep.subr.mxu0 0.0
        %3688 = vmatpush1.msra.mxu0 0.0
        %3689 = vmatprep.subr.mxu0 0.0
        %3690 = vmatpush1.msra.mxu0 0.0
        %3691 = vmatprep.subr.mxu0 0.0
        %3692 = vmatpush1.msra.mxu0 0.0
        %3693 = vmatprep.subr.mxu0 0.0
        %3694 = vmatpush1.msra.mxu0 0.0
        %3695 = vmatprep.subr.mxu0 0.0
        %3696 = vmatpush1.msra.mxu0 0.0
        %3697 = vmatprep.subr.mxu0 0.0
        %3698 = vmatpush1.msra.mxu0 0.0
        %3699 = vmatprep.subr.mxu0 0.0
        %3700 = vmatpush1.msra.mxu0 0.0
        %3701 = vmatprep.subr.mxu0 0.0
        %3702 = vmatpush1.msra.mxu0 0.0
        %3703 = vmatprep.subr.mxu0 0.0
        %3704 = vmatpush1.msra.mxu0 0.0
        %3705 = vmatprep.subr.mxu0 0.0
        %3706 = vmatpush1.msra.mxu0 0.0
        %3707 = vmatprep.subr.mxu0 0.0
        %3708 = vmatpush1.msra.mxu0 0.0
        %3709 = vmatprep.subr.mxu0 0.0
        %3710 = vmatpush1.msra.mxu0 0.0
        %3711 = vmatprep.subr.mxu0 0.0
        %3712 = vmatpush1.msra.mxu0 0.0
        %3713 = vmatprep.subr.mxu0 0.0
        %3714 = vmatpush1.msra.mxu0 0.0
        %3715 = vmatprep.subr.mxu0 0.0
        %3716 = vmatpush1.msra.mxu0 0.0
        %3717 = vmatprep.subr.mxu0 0.0
        %3718 = vmatpush1.msra.mxu0 0.0
        %3719 = vmatprep.subr.mxu0 0.0
        %3720 = vmatpush1.msra.mxu0 0.0
        %3721 = vmatprep.subr.mxu0 0.0
        %3722 = vmatpush1.msra.mxu0 0.0
        %3723 = vmatprep.subr.mxu0 0.0
        %3724 = vmatpush1.msra.mxu0 0.0
        %3725 = vmatprep.subr.mxu0 0.0
        %3726 = vmatpush1.msra.mxu0 0.0
        %3727 = vmatprep.subr.mxu0 0.0
        %3728 = vmatpush1.msra.mxu0 0.0
        %3729 = vmatprep.subr.mxu0 0.0
        %3730 = vmatpush1.msra.mxu0 0.0
        %3731 = vmatprep.subr.mxu0 0.0
        %3732 = vmatpush1.msra.mxu0 0.0
        %3733 = vmatprep.subr.mxu0 0.0
        %3734 = vmatpush1.msra.mxu0 0.0
        %3735 = vmatprep.subr.mxu0 0.0
        %3736 = vmatpush1.msra.mxu0 0.0
        %3737 = vmatprep.subr.mxu0 0.0
        %3738 = vmatpush1.msra.mxu0 0.0
        %3739 = vmatprep.subr.mxu0 0.0
        %3740 = vmatpush1.msra.mxu0 0.0
        %3741 = vmatprep.subr.mxu0 0.0
        %3742 = vmatpush1.msra.mxu0 0.0
        %3743 = vmatprep.mubr.f32.mxu0 0.0
        %v3744 = vand.u32 %v3596, 4294901760
        %3745 = vmatmul.mubr.f32.gmra.mrb[0].mxu0 %v3744
        %v3746 = vpop.f32.mrb[0].mxu0
        %v3747 = vadd.f32 %v3671, %v3746
        %v3748 = vpop.f32.mrb[0].mxu0
        %3749 = vdwg.mxu0
        %3750 = vmatprep.subr.mxu0 0.0
        %v3751 = vand.u32 %v3593, 4294901760
        %v3752 = vsub.f32 %v3593, %v3751
        %3753 = vmatpush1.msra.mxu0 %v3752
        %3754 = vmatprep.subr.mxu0 0.0
        %3755 = vmatpush1.msra.mxu0 0.0
        %3756 = vmatprep.subr.mxu0 0.0
        %3757 = vmatpush1.msra.mxu0 0.0
        %3758 = vmatprep.subr.mxu0 0.0
        %3759 = vmatpush1.msra.mxu0 0.0
        %3760 = vmatprep.subr.mxu0 0.0
        %3761 = vmatpush1.msra.mxu0 0.0
        %3762 = vmatprep.subr.mxu0 0.0
        %3763 = vmatpush1.msra.mxu0 0.0
        %3764 = vmatprep.subr.mxu0 0.0
        %3765 = vmatpush1.msra.mxu0 0.0
        %3766 = vmatprep.subr.mxu0 0.0
        %3767 = vmatpush1.msra.mxu0 0.0
        %3768 = vmatprep.subr.mxu0 0.0
        %3769 = vmatpush1.msra.mxu0 0.0
        %3770 = vmatprep.subr.mxu0 0.0
        %3771 = vmatpush1.msra.mxu0 0.0
        %3772 = vmatprep.subr.mxu0 0.0
        %3773 = vmatpush1.msra.mxu0 0.0
        %3774 = vmatprep.subr.mxu0 0.0
        %3775 = vmatpush1.msra.mxu0 0.0
        %3776 = vmatprep.subr.mxu0 0.0
        %3777 = vmatpush1.msra.mxu0 0.0
        %3778 = vmatprep.subr.mxu0 0.0
        %3779 = vmatpush1.msra.mxu0 0.0
        %3780 = vmatprep.subr.mxu0 0.0
        %3781 = vmatpush1.msra.mxu0 0.0
        %3782 = vmatprep.subr.mxu0 0.0
        %3783 = vmatpush1.msra.mxu0 0.0
        %3784 = vmatprep.subr.mxu0 0.0
        %3785 = vmatpush1.msra.mxu0 0.0
        %3786 = vmatprep.subr.mxu0 0.0
        %3787 = vmatpush1.msra.mxu0 0.0
        %3788 = vmatprep.subr.mxu0 0.0
        %3789 = vmatpush1.msra.mxu0 0.0
        %3790 = vmatprep.subr.mxu0 0.0
        %3791 = vmatpush1.msra.mxu0 0.0
        %3792 = vmatprep.subr.mxu0 0.0
        %3793 = vmatpush1.msra.mxu0 0.0
        %3794 = vmatprep.subr.mxu0 0.0
        %3795 = vmatpush1.msra.mxu0 0.0
        %3796 = vmatprep.subr.mxu0 0.0
        %3797 = vmatpush1.msra.mxu0 0.0
        %3798 = vmatprep.subr.mxu0 0.0
        %3799 = vmatpush1.msra.mxu0 0.0
        %3800 = vmatprep.subr.mxu0 0.0
        %3801 = vmatpush1.msra.mxu0 0.0
        %3802 = vmatprep.subr.mxu0 0.0
        %3803 = vmatpush1.msra.mxu0 0.0
        %3804 = vmatprep.subr.mxu0 0.0
        %3805 = vmatpush1.msra.mxu0 0.0
        %3806 = vmatprep.subr.mxu0 0.0
        %3807 = vmatpush1.msra.mxu0 0.0
        %3808 = vmatprep.subr.mxu0 0.0
        %3809 = vmatpush1.msra.mxu0 0.0
        %3810 = vmatprep.subr.mxu0 0.0
        %3811 = vmatpush1.msra.mxu0 0.0
        %3812 = vmatprep.subr.mxu0 0.0
        %3813 = vmatpush1.msra.mxu0 0.0
        %3814 = vmatprep.subr.mxu0 0.0
        %3815 = vmatpush1.msra.mxu0 0.0
        %3816 = vmatprep.mubr.f32.mxu0 0.0
        %v3817 = vand.u32 %v3596, 4294901760
        %v3818 = vsub.f32 %v3596, %v3817
        %3819 = vmatmul.mubr.f32.gmra.mrb[0].mxu0 %v3818
        %v3820 = vpop.f32.mrb[0].mxu0
        %v3821 = vadd.f32 %v3747, %v3820
        %v3822 = vpop.f32.mrb[0].mxu0
        %3823 = vdwg.mxu0
        %3824 = vmatprep.subr.mxu0 0.0
        %v3825 = vand.u32 %v3593, 4294901760
        %3826 = vmatpush1.msra.mxu0 %v3825
        %3827 = vmatprep.subr.mxu0 0.0
        %3828 = vmatpush1.msra.mxu0 0.0
        %3829 = vmatprep.subr.mxu0 0.0
        %3830 = vmatpush1.msra.mxu0 0.0
        %3831 = vmatprep.subr.mxu0 0.0
        %3832 = vmatpush1.msra.mxu0 0.0
        %3833 = vmatprep.subr.mxu0 0.0
        %3834 = vmatpush1.msra.mxu0 0.0
        %3835 = vmatprep.subr.mxu0 0.0
        %3836 = vmatpush1.msra.mxu0 0.0
        %3837 = vmatprep.subr.mxu0 0.0
        %3838 = vmatpush1.msra.mxu0 0.0
        %3839 = vmatprep.subr.mxu0 0.0
        %3840 = vmatpush1.msra.mxu0 0.0
        %3841 = vmatprep.subr.mxu0 0.0
        %3842 = vmatpush1.msra.mxu0 0.0
        %3843 = vmatprep.subr.mxu0 0.0
        %3844 = vmatpush1.msra.mxu0 0.0
        %3845 = vmatprep.subr.mxu0 0.0
        %3846 = vmatpush1.msra.mxu0 0.0
        %3847 = vmatprep.subr.mxu0 0.0
        %3848 = vmatpush1.msra.mxu0 0.0
        %3849 = vmatprep.subr.mxu0 0.0
        %3850 = vmatpush1.msra.mxu0 0.0
        %3851 = vmatprep.subr.mxu0 0.0
        %3852 = vmatpush1.msra.mxu0 0.0
        %3853 = vmatprep.subr.mxu0 0.0
        %3854 = vmatpush1.msra.mxu0 0.0
        %3855 = vmatprep.subr.mxu0 0.0
        %3856 = vmatpush1.msra.mxu0 0.0
        %3857 = vmatprep.subr.mxu0 0.0
        %3858 = vmatpush1.msra.mxu0 0.0
        %3859 = vmatprep.subr.mxu0 0.0
        %3860 = vmatpush1.msra.mxu0 0.0
        %3861 = vmatprep.subr.mxu0 0.0
        %3862 = vmatpush1.msra.mxu0 0.0
        %3863 = vmatprep.subr.mxu0 0.0
        %3864 = vmatpush1.msra.mxu0 0.0
        %3865 = vmatprep.subr.mxu0 0.0
        %3866 = vmatpush1.msra.mxu0 0.0
        %3867 = vmatprep.subr.mxu0 0.0
        %3868 = vmatpush1.msra.mxu0 0.0
        %3869 = vmatprep.subr.mxu0 0.0
        %3870 = vmatpush1.msra.mxu0 0.0
        %3871 = vmatprep.subr.mxu0 0.0
        %3872 = vmatpush1.msra.mxu0 0.0
        %3873 = vmatprep.subr.mxu0 0.0
        %3874 = vmatpush1.msra.mxu0 0.0
        %3875 = vmatprep.subr.mxu0 0.0
        %3876 = vmatpush1.msra.mxu0 0.0
        %3877 = vmatprep.subr.mxu0 0.0
        %3878 = vmatpush1.msra.mxu0 0.0
        %3879 = vmatprep.subr.mxu0 0.0
        %3880 = vmatpush1.msra.mxu0 0.0
        %3881 = vmatprep.subr.mxu0 0.0
        %3882 = vmatpush1.msra.mxu0 0.0
        %3883 = vmatprep.subr.mxu0 0.0
        %3884 = vmatpush1.msra.mxu0 0.0
        %3885 = vmatprep.subr.mxu0 0.0
        %3886 = vmatpush1.msra.mxu0 0.0
        %3887 = vmatprep.subr.mxu0 0.0
        %3888 = vmatpush1.msra.mxu0 0.0
        %3889 = vmatprep.mubr.f32.mxu0 0.0
        %v3890 = vand.u32 %v3596, 4294901760
        %v3891 = vsub.f32 %v3596, %v3890
        %v3892 = vand.u32 %v3891, 4294901760
        %3893 = vmatmul.mubr.f32.gmra.mrb[0].mxu0 %v3892
        %v3894 = vpop.f32.mrb[0].mxu0
        %v3895 = vadd.f32 %v3821, %v3894
        %v3896 = vpop.f32.mrb[0].mxu0
        %3897 = vdwg.mxu0
        %3898 = vmatprep.subr.mxu0 0.0
        %v3899 = vand.u32 %v3593, 4294901760
        %v3900 = vsub.f32 %v3593, %v3899
        %v3901 = vand.u32 %v3900, 4294901760
        %3902 = vmatpush1.msra.mxu0 %v3901
        %3903 = vmatprep.subr.mxu0 0.0
        %3904 = vmatpush1.msra.mxu0 0.0
        %3905 = vmatprep.subr.mxu0 0.0
        %3906 = vmatpush1.msra.mxu0 0.0
        %3907 = vmatprep.subr.mxu0 0.0
        %3908 = vmatpush1.msra.mxu0 0.0
        %3909 = vmatprep.subr.mxu0 0.0
        %3910 = vmatpush1.msra.mxu0 0.0
        %3911 = vmatprep.subr.mxu0 0.0
        %3912 = vmatpush1.msra.mxu0 0.0
        %3913 = vmatprep.subr.mxu0 0.0
        %3914 = vmatpush1.msra.mxu0 0.0
        %3915 = vmatprep.subr.mxu0 0.0
        %3916 = vmatpush1.msra.mxu0 0.0
        %3917 = vmatprep.subr.mxu0 0.0
        %3918 = vmatpush1.msra.mxu0 0.0
        %3919 = vmatprep.subr.mxu0 0.0
        %3920 = vmatpush1.msra.mxu0 0.0
        %3921 = vmatprep.subr.mxu0 0.0
        %3922 = vmatpush1.msra.mxu0 0.0
        %3923 = vmatprep.subr.mxu0 0.0
        %3924 = vmatpush1.msra.mxu0 0.0
        %3925 = vmatprep.subr.mxu0 0.0
        %3926 = vmatpush1.msra.mxu0 0.0
        %3927 = vmatprep.subr.mxu0 0.0
        %3928 = vmatpush1.msra.mxu0 0.0
        %3929 = vmatprep.subr.mxu0 0.0
        %3930 = vmatpush1.msra.mxu0 0.0
        %3931 = vmatprep.subr.mxu0 0.0
        %3932 = vmatpush1.msra.mxu0 0.0
        %3933 = vmatprep.subr.mxu0 0.0
        %3934 = vmatpush1.msra.mxu0 0.0
        %3935 = vmatprep.subr.mxu0 0.0
        %3936 = vmatpush1.msra.mxu0 0.0
        %3937 = vmatprep.subr.mxu0 0.0
        %3938 = vmatpush1.msra.mxu0 0.0
        %3939 = vmatprep.subr.mxu0 0.0
        %3940 = vmatpush1.msra.mxu0 0.0
        %3941 = vmatprep.subr.mxu0 0.0
        %3942 = vmatpush1.msra.mxu0 0.0
        %3943 = vmatprep.subr.mxu0 0.0
        %3944 = vmatpush1.msra.mxu0 0.0
        %3945 = vmatprep.subr.mxu0 0.0
        %3946 = vmatpush1.msra.mxu0 0.0
        %3947 = vmatprep.subr.mxu0 0.0
        %3948 = vmatpush1.msra.mxu0 0.0
        %3949 = vmatprep.subr.mxu0 0.0
        %3950 = vmatpush1.msra.mxu0 0.0
        %3951 = vmatprep.subr.mxu0 0.0
        %3952 = vmatpush1.msra.mxu0 0.0
        %3953 = vmatprep.subr.mxu0 0.0
        %3954 = vmatpush1.msra.mxu0 0.0
        %3955 = vmatprep.subr.mxu0 0.0
        %3956 = vmatpush1.msra.mxu0 0.0
        %3957 = vmatprep.subr.mxu0 0.0
        %3958 = vmatpush1.msra.mxu0 0.0
        %3959 = vmatprep.subr.mxu0 0.0
        %3960 = vmatpush1.msra.mxu0 0.0
        %3961 = vmatprep.subr.mxu0 0.0
        %3962 = vmatpush1.msra.mxu0 0.0
        %3963 = vmatprep.subr.mxu0 0.0
        %3964 = vmatpush1.msra.mxu0 0.0
        %3965 = vmatprep.mubr.f32.mxu0 0.0
        %v3966 = vand.u32 %v3596, 4294901760
        %3967 = vmatmul.mubr.f32.gmra.mrb[0].mxu0 %v3966
        %v3968 = vpop.f32.mrb[0].mxu0
        %v3969 = vadd.f32 %v3895, %v3968
        %v3970 = vpop.f32.mrb[0].mxu0
        %3971 = vdwg.mxu0
        %3972 = vmatprep.subr.mxu0 0.0
        %v3973 = vand.u32 %v3593, 4294901760
        %3974 = vmatpush1.msra.mxu0 %v3973
        %3975 = vmatprep.subr.mxu0 0.0
        %3976 = vmatpush1.msra.mxu0 0.0
        %3977 = vmatprep.subr.mxu0 0.0
        %3978 = vmatpush1.msra.mxu0 0.0
        %3979 = vmatprep.subr.mxu0 0.0
        %3980 = vmatpush1.msra.mxu0 0.0
        %3981 = vmatprep.subr.mxu0 0.0
        %3982 = vmatpush1.msra.mxu0 0.0
        %3983 = vmatprep.subr.mxu0 0.0
        %3984 = vmatpush1.msra.mxu0 0.0
        %3985 = vmatprep.subr.mxu0 0.0
        %3986 = vmatpush1.msra.mxu0 0.0
        %3987 = vmatprep.subr.mxu0 0.0
        %3988 = vmatpush1.msra.mxu0 0.0
        %3989 = vmatprep.subr.mxu0 0.0
        %3990 = vmatpush1.msra.mxu0 0.0
        %3991 = vmatprep.subr.mxu0 0.0
        %3992 = vmatpush1.msra.mxu0 0.0
        %3993 = vmatprep.subr.mxu0 0.0
        %3994 = vmatpush1.msra.mxu0 0.0
        %3995 = vmatprep.subr.mxu0 0.0
        %3996 = vmatpush1.msra.mxu0 0.0
        %3997 = vmatprep.subr.mxu0 0.0
        %3998 = vmatpush1.msra.mxu0 0.0
        %3999 = vmatprep.subr.mxu0 0.0
        %4000 = vmatpush1.msra.mxu0 0.0
        %4001 = vmatprep.subr.mxu0 0.0
        %4002 = vmatpush1.msra.mxu0 0.0
        %4003 = vmatprep.subr.mxu0 0.0
        %4004 = vmatpush1.msra.mxu0 0.0
        %4005 = vmatprep.subr.mxu0 0.0
        %4006 = vmatpush1.msra.mxu0 0.0
        %4007 = vmatprep.subr.mxu0 0.0
        %4008 = vmatpush1.msra.mxu0 0.0
        %4009 = vmatprep.subr.mxu0 0.0
        %4010 = vmatpush1.msra.mxu0 0.0
        %4011 = vmatprep.subr.mxu0 0.0
        %4012 = vmatpush1.msra.mxu0 0.0
        %4013 = vmatprep.subr.mxu0 0.0
        %4014 = vmatpush1.msra.mxu0 0.0
        %4015 = vmatprep.subr.mxu0 0.0
        %4016 = vmatpush1.msra.mxu0 0.0
        %4017 = vmatprep.subr.mxu0 0.0
        %4018 = vmatpush1.msra.mxu0 0.0
        %4019 = vmatprep.subr.mxu0 0.0
        %4020 = vmatpush1.msra.mxu0 0.0
        %4021 = vmatprep.subr.mxu0 0.0
        %4022 = vmatpush1.msra.mxu0 0.0
        %4023 = vmatprep.subr.mxu0 0.0
        %4024 = vmatpush1.msra.mxu0 0.0
        %4025 = vmatprep.subr.mxu0 0.0
        %4026 = vmatpush1.msra.mxu0 0.0
        %4027 = vmatprep.subr.mxu0 0.0
        %4028 = vmatpush1.msra.mxu0 0.0
        %4029 = vmatprep.subr.mxu0 0.0
        %4030 = vmatpush1.msra.mxu0 0.0
        %4031 = vmatprep.subr.mxu0 0.0
        %4032 = vmatpush1.msra.mxu0 0.0
        %4033 = vmatprep.subr.mxu0 0.0
        %4034 = vmatpush1.msra.mxu0 0.0
        %4035 = vmatprep.subr.mxu0 0.0
        %4036 = vmatpush1.msra.mxu0 0.0
        %4037 = vmatprep.mubr.f32.mxu0 0.0
        %v4038 = vand.u32 %v3596, 4294901760
        %4039 = vmatmul.mubr.f32.gmra.mrb[0].mxu0 %v4038
        %v4040 = vpop.f32.mrb[0].mxu0
        %v4041 = vadd.f32 %v3969, %v4040
        %v4042 = vpop.f32.mrb[0].mxu0
        %4043 = vdwg.mxu0
        %4044 = vrot.lane.b32.xlu0 %v1290, 104
        %v4045 = vpop.permute.xlu0 %4044
        %4046 = vrot.lane.b32.xlu0 %v1287, 104
        %v4047 = vpop.permute.xlu0 %4046
        %v4048 = vsel %vm1291, %v4045, 0
        %v4050 = vsel %vm1291, %v4047, 0
        %4052 = vmatprep.subr.mxu0 0.0
        %v4053 = vand.u32 %v4050, 4294901760
        %4054 = vmatpush1.xpose.msra.mxu0 %v4053
        %4055 = vmatprep.subr.mxu0 0.0
        %4056 = vmatpush1.xpose.msra.mxu0 0.0
        %4057 = vmatprep.subr.mxu0 0.0
        %4058 = vmatpush1.xpose.msra.mxu0 0.0
        %4059 = vmatprep.subr.mxu0 0.0
        %4060 = vmatpush1.xpose.msra.mxu0 0.0
        %4061 = vmatprep.subr.mxu0 0.0
        %4062 = vmatpush1.xpose.msra.mxu0 0.0
        %4063 = vmatprep.subr.mxu0 0.0
        %4064 = vmatpush1.xpose.msra.mxu0 0.0
        %4065 = vmatprep.subr.mxu0 0.0
        %4066 = vmatpush1.xpose.msra.mxu0 0.0
        %4067 = vmatprep.subr.mxu0 0.0
        %4068 = vmatpush1.xpose.msra.mxu0 0.0
        %4069 = vmatprep.subr.mxu0 0.0
        %4070 = vmatpush1.xpose.msra.mxu0 0.0
        %4071 = vmatprep.subr.mxu0 0.0
        %4072 = vmatpush1.xpose.msra.mxu0 0.0
        %4073 = vmatprep.subr.mxu0 0.0
        %4074 = vmatpush1.xpose.msra.mxu0 0.0
        %4075 = vmatprep.subr.mxu0 0.0
        %4076 = vmatpush1.xpose.msra.mxu0 0.0
        %4077 = vmatprep.subr.mxu0 0.0
        %4078 = vmatpush1.xpose.msra.mxu0 0.0
        %4079 = vmatprep.subr.mxu0 0.0
        %4080 = vmatpush1.xpose.msra.mxu0 0.0
        %4081 = vmatprep.subr.mxu0 0.0
        %4082 = vmatpush1.xpose.msra.mxu0 0.0
        %4083 = vmatprep.subr.mxu0 0.0
        %4084 = vmatpush1.xpose.msra.mxu0 0.0
        %4085 = vmatprep.subr.mxu0 0.0
        %4086 = vmatpush1.xpose.msra.mxu0 0.0
        %4087 = vmatprep.subr.mxu0 0.0
        %4088 = vmatpush1.xpose.msra.mxu0 0.0
        %4089 = vmatprep.subr.mxu0 0.0
        %4090 = vmatpush1.xpose.msra.mxu0 0.0
        %4091 = vmatprep.subr.mxu0 0.0
        %4092 = vmatpush1.xpose.msra.mxu0 0.0
        %4093 = vmatprep.subr.mxu0 0.0
        %4094 = vmatpush1.xpose.msra.mxu0 0.0
        %4095 = vmatprep.subr.mxu0 0.0
        %4096 = vmatpush1.xpose.msra.mxu0 0.0
        %4097 = vmatprep.subr.mxu0 0.0
        %4098 = vmatpush1.xpose.msra.mxu0 0.0
        %4099 = vmatprep.subr.mxu0 0.0
        %4100 = vmatpush1.xpose.msra.mxu0 0.0
        %4101 = vmatprep.subr.mxu0 0.0
        %4102 = vmatpush1.xpose.msra.mxu0 0.0
        %4103 = vmatprep.subr.mxu0 0.0
        %4104 = vmatpush1.xpose.msra.mxu0 0.0
        %4105 = vmatprep.subr.mxu0 0.0
        %4106 = vmatpush1.xpose.msra.mxu0 0.0
        %4107 = vmatprep.subr.mxu0 0.0
        %4108 = vmatpush1.xpose.msra.mxu0 0.0
        %4109 = vmatprep.subr.mxu0 0.0
        %4110 = vmatpush1.xpose.msra.mxu0 0.0
        %4111 = vmatprep.subr.mxu0 0.0
        %4112 = vmatpush1.xpose.msra.mxu0 0.0
        %4113 = vmatprep.subr.mxu0 0.0
        %4114 = vmatpush1.xpose.msra.mxu0 0.0
        %4115 = vmatprep.subr.mxu0 0.0
        %4116 = vmatpush1.xpose.msra.mxu0 0.0
        %4117 = vmatprep.mubr.f32.mxu0 0.0
        %v4118 = vand.u32 %v4048, 4294901760
        %v4119 = vsub.f32 %v4048, %v4118
        %v4120 = vand.u32 %v4119, 4294901760
        %v4121 = vsub.f32 %v4119, %v4120
        %v4122 = vand.u32 %v4121, 4294901760
        %4123 = vmatmul.mubr.f32.gmra.mrb[0].mxu0 %v4122
        %v4124 = vpop.f32.mrb[0].mxu0
        %v4125 = vadd.f32 0.0, %v4124
        %v4126 = vpop.f32.mrb[0].mxu0
        %4127 = vdwg.mxu0
        %4128 = vmatprep.subr.mxu0 0.0
        %v4129 = vand.u32 %v4050, 4294901760
        %v4130 = vsub.f32 %v4050, %v4129
        %v4131 = vand.u32 %v4130, 4294901760
        %v4132 = vsub.f32 %v4130, %v4131
        %v4133 = vand.u32 %v4132, 4294901760
        %4134 = vmatpush1.xpose.msra.mxu0 %v4133
        %4135 = vmatprep.subr.mxu0 0.0
        %4136 = vmatpush1.xpose.msra.mxu0 0.0
        %4137 = vmatprep.subr.mxu0 0.0
        %4138 = vmatpush1.xpose.msra.mxu0 0.0
        %4139 = vmatprep.subr.mxu0 0.0
        %4140 = vmatpush1.xpose.msra.mxu0 0.0
        %4141 = vmatprep.subr.mxu0 0.0
        %4142 = vmatpush1.xpose.msra.mxu0 0.0
        %4143 = vmatprep.subr.mxu0 0.0
        %4144 = vmatpush1.xpose.msra.mxu0 0.0
        %4145 = vmatprep.subr.mxu0 0.0
        %4146 = vmatpush1.xpose.msra.mxu0 0.0
        %4147 = vmatprep.subr.mxu0 0.0
        %4148 = vmatpush1.xpose.msra.mxu0 0.0
        %4149 = vmatprep.subr.mxu0 0.0
        %4150 = vmatpush1.xpose.msra.mxu0 0.0
        %4151 = vmatprep.subr.mxu0 0.0
        %4152 = vmatpush1.xpose.msra.mxu0 0.0
        %4153 = vmatprep.subr.mxu0 0.0
        %4154 = vmatpush1.xpose.msra.mxu0 0.0
        %4155 = vmatprep.subr.mxu0 0.0
        %4156 = vmatpush1.xpose.msra.mxu0 0.0
        %4157 = vmatprep.subr.mxu0 0.0
        %4158 = vmatpush1.xpose.msra.mxu0 0.0
        %4159 = vmatprep.subr.mxu0 0.0
        %4160 = vmatpush1.xpose.msra.mxu0 0.0
        %4161 = vmatprep.subr.mxu0 0.0
        %4162 = vmatpush1.xpose.msra.mxu0 0.0
        %4163 = vmatprep.subr.mxu0 0.0
        %4164 = vmatpush1.xpose.msra.mxu0 0.0
        %4165 = vmatprep.subr.mxu0 0.0
        %4166 = vmatpush1.xpose.msra.mxu0 0.0
        %4167 = vmatprep.subr.mxu0 0.0
        %4168 = vmatpush1.xpose.msra.mxu0 0.0
        %4169 = vmatprep.subr.mxu0 0.0
        %4170 = vmatpush1.xpose.msra.mxu0 0.0
        %4171 = vmatprep.subr.mxu0 0.0
        %4172 = vmatpush1.xpose.msra.mxu0 0.0
        %4173 = vmatprep.subr.mxu0 0.0
        %4174 = vmatpush1.xpose.msra.mxu0 0.0
        %4175 = vmatprep.subr.mxu0 0.0
        %4176 = vmatpush1.xpose.msra.mxu0 0.0
        %4177 = vmatprep.subr.mxu0 0.0
        %4178 = vmatpush1.xpose.msra.mxu0 0.0
        %4179 = vmatprep.subr.mxu0 0.0
        %4180 = vmatpush1.xpose.msra.mxu0 0.0
        %4181 = vmatprep.subr.mxu0 0.0
        %4182 = vmatpush1.xpose.msra.mxu0 0.0
        %4183 = vmatprep.subr.mxu0 0.0
        %4184 = vmatpush1.xpose.msra.mxu0 0.0
        %4185 = vmatprep.subr.mxu0 0.0
        %4186 = vmatpush1.xpose.msra.mxu0 0.0
        %4187 = vmatprep.subr.mxu0 0.0
        %4188 = vmatpush1.xpose.msra.mxu0 0.0
        %4189 = vmatprep.subr.mxu0 0.0
        %4190 = vmatpush1.xpose.msra.mxu0 0.0
        %4191 = vmatprep.subr.mxu0 0.0
        %4192 = vmatpush1.xpose.msra.mxu0 0.0
        %4193 = vmatprep.subr.mxu0 0.0
        %4194 = vmatpush1.xpose.msra.mxu0 0.0
        %4195 = vmatprep.subr.mxu0 0.0
        %4196 = vmatpush1.xpose.msra.mxu0 0.0
        %4197 = vmatprep.mubr.f32.mxu0 0.0
        %v4198 = vand.u32 %v4048, 4294901760
        %4199 = vmatmul.mubr.f32.gmra.mrb[0].mxu0 %v4198
        %v4200 = vpop.f32.mrb[0].mxu0
        %v4201 = vadd.f32 %v4125, %v4200
        %v4202 = vpop.f32.mrb[0].mxu0
        %4203 = vdwg.mxu0
        %4204 = vmatprep.subr.mxu0 0.0
        %v4205 = vand.u32 %v4050, 4294901760
        %v4206 = vsub.f32 %v4050, %v4205
        %4207 = vmatpush1.xpose.msra.mxu0 %v4206
        %4208 = vmatprep.subr.mxu0 0.0
        %4209 = vmatpush1.xpose.msra.mxu0 0.0
        %4210 = vmatprep.subr.mxu0 0.0
        %4211 = vmatpush1.xpose.msra.mxu0 0.0
        %4212 = vmatprep.subr.mxu0 0.0
        %4213 = vmatpush1.xpose.msra.mxu0 0.0
        %4214 = vmatprep.subr.mxu0 0.0
        %4215 = vmatpush1.xpose.msra.mxu0 0.0
        %4216 = vmatprep.subr.mxu0 0.0
        %4217 = vmatpush1.xpose.msra.mxu0 0.0
        %4218 = vmatprep.subr.mxu0 0.0
        %4219 = vmatpush1.xpose.msra.mxu0 0.0
        %4220 = vmatprep.subr.mxu0 0.0
        %4221 = vmatpush1.xpose.msra.mxu0 0.0
        %4222 = vmatprep.subr.mxu0 0.0
        %4223 = vmatpush1.xpose.msra.mxu0 0.0
        %4224 = vmatprep.subr.mxu0 0.0
        %4225 = vmatpush1.xpose.msra.mxu0 0.0
        %4226 = vmatprep.subr.mxu0 0.0
        %4227 = vmatpush1.xpose.msra.mxu0 0.0
        %4228 = vmatprep.subr.mxu0 0.0
        %4229 = vmatpush1.xpose.msra.mxu0 0.0
        %4230 = vmatprep.subr.mxu0 0.0
        %4231 = vmatpush1.xpose.msra.mxu0 0.0
        %4232 = vmatprep.subr.mxu0 0.0
        %4233 = vmatpush1.xpose.msra.mxu0 0.0
        %4234 = vmatprep.subr.mxu0 0.0
        %4235 = vmatpush1.xpose.msra.mxu0 0.0
        %4236 = vmatprep.subr.mxu0 0.0
        %4237 = vmatpush1.xpose.msra.mxu0 0.0
        %4238 = vmatprep.subr.mxu0 0.0
        %4239 = vmatpush1.xpose.msra.mxu0 0.0
        %4240 = vmatprep.subr.mxu0 0.0
        %4241 = vmatpush1.xpose.msra.mxu0 0.0
        %4242 = vmatprep.subr.mxu0 0.0
        %4243 = vmatpush1.xpose.msra.mxu0 0.0
        %4244 = vmatprep.subr.mxu0 0.0
        %4245 = vmatpush1.xpose.msra.mxu0 0.0
        %4246 = vmatprep.subr.mxu0 0.0
        %4247 = vmatpush1.xpose.msra.mxu0 0.0
        %4248 = vmatprep.subr.mxu0 0.0
        %4249 = vmatpush1.xpose.msra.mxu0 0.0
        %4250 = vmatprep.subr.mxu0 0.0
        %4251 = vmatpush1.xpose.msra.mxu0 0.0
        %4252 = vmatprep.subr.mxu0 0.0
        %4253 = vmatpush1.xpose.msra.mxu0 0.0
        %4254 = vmatprep.subr.mxu0 0.0
        %4255 = vmatpush1.xpose.msra.mxu0 0.0
        %4256 = vmatprep.subr.mxu0 0.0
        %4257 = vmatpush1.xpose.msra.mxu0 0.0
        %4258 = vmatprep.subr.mxu0 0.0
        %4259 = vmatpush1.xpose.msra.mxu0 0.0
        %4260 = vmatprep.subr.mxu0 0.0
        %4261 = vmatpush1.xpose.msra.mxu0 0.0
        %4262 = vmatprep.subr.mxu0 0.0
        %4263 = vmatpush1.xpose.msra.mxu0 0.0
        %4264 = vmatprep.subr.mxu0 0.0
        %4265 = vmatpush1.xpose.msra.mxu0 0.0
        %4266 = vmatprep.subr.mxu0 0.0
        %4267 = vmatpush1.xpose.msra.mxu0 0.0
        %4268 = vmatprep.subr.mxu0 0.0
        %4269 = vmatpush1.xpose.msra.mxu0 0.0
        %4270 = vmatprep.mubr.f32.mxu0 0.0
        %v4271 = vand.u32 %v4048, 4294901760
        %v4272 = vsub.f32 %v4048, %v4271
        %4273 = vmatmul.mubr.f32.gmra.mrb[0].mxu0 %v4272
        %v4274 = vpop.f32.mrb[0].mxu0
        %v4275 = vadd.f32 %v4201, %v4274
        %v4276 = vpop.f32.mrb[0].mxu0
        %4277 = vdwg.mxu0
        %4278 = vmatprep.subr.mxu0 0.0
        %v4279 = vand.u32 %v4050, 4294901760
        %4280 = vmatpush1.xpose.msra.mxu0 %v4279
        %4281 = vmatprep.subr.mxu0 0.0
        %4282 = vmatpush1.xpose.msra.mxu0 0.0
        %4283 = vmatprep.subr.mxu0 0.0
        %4284 = vmatpush1.xpose.msra.mxu0 0.0
        %4285 = vmatprep.subr.mxu0 0.0
        %4286 = vmatpush1.xpose.msra.mxu0 0.0
        %4287 = vmatprep.subr.mxu0 0.0
        %4288 = vmatpush1.xpose.msra.mxu0 0.0
        %4289 = vmatprep.subr.mxu0 0.0
        %4290 = vmatpush1.xpose.msra.mxu0 0.0
        %4291 = vmatprep.subr.mxu0 0.0
        %4292 = vmatpush1.xpose.msra.mxu0 0.0
        %4293 = vmatprep.subr.mxu0 0.0
        %4294 = vmatpush1.xpose.msra.mxu0 0.0
        %4295 = vmatprep.subr.mxu0 0.0
        %4296 = vmatpush1.xpose.msra.mxu0 0.0
        %4297 = vmatprep.subr.mxu0 0.0
        %4298 = vmatpush1.xpose.msra.mxu0 0.0
        %4299 = vmatprep.subr.mxu0 0.0
        %4300 = vmatpush1.xpose.msra.mxu0 0.0
        %4301 = vmatprep.subr.mxu0 0.0
        %4302 = vmatpush1.xpose.msra.mxu0 0.0
        %4303 = vmatprep.subr.mxu0 0.0
        %4304 = vmatpush1.xpose.msra.mxu0 0.0
        %4305 = vmatprep.subr.mxu0 0.0
        %4306 = vmatpush1.xpose.msra.mxu0 0.0
        %4307 = vmatprep.subr.mxu0 0.0
        %4308 = vmatpush1.xpose.msra.mxu0 0.0
        %4309 = vmatprep.subr.mxu0 0.0
        %4310 = vmatpush1.xpose.msra.mxu0 0.0
        %4311 = vmatprep.subr.mxu0 0.0
        %4312 = vmatpush1.xpose.msra.mxu0 0.0
        %4313 = vmatprep.subr.mxu0 0.0
        %4314 = vmatpush1.xpose.msra.mxu0 0.0
        %4315 = vmatprep.subr.mxu0 0.0
        %4316 = vmatpush1.xpose.msra.mxu0 0.0
        %4317 = vmatprep.subr.mxu0 0.0
        %4318 = vmatpush1.xpose.msra.mxu0 0.0
        %4319 = vmatprep.subr.mxu0 0.0
        %4320 = vmatpush1.xpose.msra.mxu0 0.0
        %4321 = vmatprep.subr.mxu0 0.0
        %4322 = vmatpush1.xpose.msra.mxu0 0.0
        %4323 = vmatprep.subr.mxu0 0.0
        %4324 = vmatpush1.xpose.msra.mxu0 0.0
        %4325 = vmatprep.subr.mxu0 0.0
        %4326 = vmatpush1.xpose.msra.mxu0 0.0
        %4327 = vmatprep.subr.mxu0 0.0
        %4328 = vmatpush1.xpose.msra.mxu0 0.0
        %4329 = vmatprep.subr.mxu0 0.0
        %4330 = vmatpush1.xpose.msra.mxu0 0.0
        %4331 = vmatprep.subr.mxu0 0.0
        %4332 = vmatpush1.xpose.msra.mxu0 0.0
        %4333 = vmatprep.subr.mxu0 0.0
        %4334 = vmatpush1.xpose.msra.mxu0 0.0
        %4335 = vmatprep.subr.mxu0 0.0
        %4336 = vmatpush1.xpose.msra.mxu0 0.0
        %4337 = vmatprep.subr.mxu0 0.0
        %4338 = vmatpush1.xpose.msra.mxu0 0.0
        %4339 = vmatprep.subr.mxu0 0.0
        %4340 = vmatpush1.xpose.msra.mxu0 0.0
        %4341 = vmatprep.subr.mxu0 0.0
        %4342 = vmatpush1.xpose.msra.mxu0 0.0
        %4343 = vmatprep.mubr.f32.mxu0 0.0
        %v4344 = vand.u32 %v4048, 4294901760
        %v4345 = vsub.f32 %v4048, %v4344
        %v4346 = vand.u32 %v4345, 4294901760
        %4347 = vmatmul.mubr.f32.gmra.mrb[0].mxu0 %v4346
        %v4348 = vpop.f32.mrb[0].mxu0
        %v4349 = vadd.f32 %v4275, %v4348
        %v4350 = vpop.f32.mrb[0].mxu0
        %4351 = vdwg.mxu0
        %4352 = vmatprep.subr.mxu0 0.0
        %v4353 = vand.u32 %v4050, 4294901760
        %v4354 = vsub.f32 %v4050, %v4353
        %v4355 = vand.u32 %v4354, 4294901760
        %4356 = vmatpush1.xpose.msra.mxu0 %v4355
        %4357 = vmatprep.subr.mxu0 0.0
        %4358 = vmatpush1.xpose.msra.mxu0 0.0
        %4359 = vmatprep.subr.mxu0 0.0
        %4360 = vmatpush1.xpose.msra.mxu0 0.0
        %4361 = vmatprep.subr.mxu0 0.0
        %4362 = vmatpush1.xpose.msra.mxu0 0.0
        %4363 = vmatprep.subr.mxu0 0.0
        %4364 = vmatpush1.xpose.msra.mxu0 0.0
        %4365 = vmatprep.subr.mxu0 0.0
        %4366 = vmatpush1.xpose.msra.mxu0 0.0
        %4367 = vmatprep.subr.mxu0 0.0
        %4368 = vmatpush1.xpose.msra.mxu0 0.0
        %4369 = vmatprep.subr.mxu0 0.0
        %4370 = vmatpush1.xpose.msra.mxu0 0.0
        %4371 = vmatprep.subr.mxu0 0.0
        %4372 = vmatpush1.xpose.msra.mxu0 0.0
        %4373 = vmatprep.subr.mxu0 0.0
        %4374 = vmatpush1.xpose.msra.mxu0 0.0
        %4375 = vmatprep.subr.mxu0 0.0
        %4376 = vmatpush1.xpose.msra.mxu0 0.0
        %4377 = vmatprep.subr.mxu0 0.0
        %4378 = vmatpush1.xpose.msra.mxu0 0.0
        %4379 = vmatprep.subr.mxu0 0.0
        %4380 = vmatpush1.xpose.msra.mxu0 0.0
        %4381 = vmatprep.subr.mxu0 0.0
        %4382 = vmatpush1.xpose.msra.mxu0 0.0
        %4383 = vmatprep.subr.mxu0 0.0
        %4384 = vmatpush1.xpose.msra.mxu0 0.0
        %4385 = vmatprep.subr.mxu0 0.0
        %4386 = vmatpush1.xpose.msra.mxu0 0.0
        %4387 = vmatprep.subr.mxu0 0.0
        %4388 = vmatpush1.xpose.msra.mxu0 0.0
        %4389 = vmatprep.subr.mxu0 0.0
        %4390 = vmatpush1.xpose.msra.mxu0 0.0
        %4391 = vmatprep.subr.mxu0 0.0
        %4392 = vmatpush1.xpose.msra.mxu0 0.0
        %4393 = vmatprep.subr.mxu0 0.0
        %4394 = vmatpush1.xpose.msra.mxu0 0.0
        %4395 = vmatprep.subr.mxu0 0.0
        %4396 = vmatpush1.xpose.msra.mxu0 0.0
        %4397 = vmatprep.subr.mxu0 0.0
        %4398 = vmatpush1.xpose.msra.mxu0 0.0
        %4399 = vmatprep.subr.mxu0 0.0
        %4400 = vmatpush1.xpose.msra.mxu0 0.0
        %4401 = vmatprep.subr.mxu0 0.0
        %4402 = vmatpush1.xpose.msra.mxu0 0.0
        %4403 = vmatprep.subr.mxu0 0.0
        %4404 = vmatpush1.xpose.msra.mxu0 0.0
        %4405 = vmatprep.subr.mxu0 0.0
        %4406 = vmatpush1.xpose.msra.mxu0 0.0
        %4407 = vmatprep.subr.mxu0 0.0
        %4408 = vmatpush1.xpose.msra.mxu0 0.0
        %4409 = vmatprep.subr.mxu0 0.0
        %4410 = vmatpush1.xpose.msra.mxu0 0.0
        %4411 = vmatprep.subr.mxu0 0.0
        %4412 = vmatpush1.xpose.msra.mxu0 0.0
        %4413 = vmatprep.subr.mxu0 0.0
        %4414 = vmatpush1.xpose.msra.mxu0 0.0
        %4415 = vmatprep.subr.mxu0 0.0
        %4416 = vmatpush1.xpose.msra.mxu0 0.0
        %4417 = vmatprep.subr.mxu0 0.0
        %4418 = vmatpush1.xpose.msra.mxu0 0.0
        %4419 = vmatprep.mubr.f32.mxu0 0.0
        %v4420 = vand.u32 %v4048, 4294901760
        %4421 = vmatmul.mubr.f32.gmra.mrb[0].mxu0 %v4420
        %v4422 = vpop.f32.mrb[0].mxu0
        %v4423 = vadd.f32 %v4349, %v4422
        %v4424 = vpop.f32.mrb[0].mxu0
        %4425 = vdwg.mxu0
        %4426 = vmatprep.subr.mxu0 0.0
        %v4427 = vand.u32 %v4050, 4294901760
        %4428 = vmatpush1.xpose.msra.mxu0 %v4427
        %4429 = vmatprep.subr.mxu0 0.0
        %4430 = vmatpush1.xpose.msra.mxu0 0.0
        %4431 = vmatprep.subr.mxu0 0.0
        %4432 = vmatpush1.xpose.msra.mxu0 0.0
        %4433 = vmatprep.subr.mxu0 0.0
        %4434 = vmatpush1.xpose.msra.mxu0 0.0
        %4435 = vmatprep.subr.mxu0 0.0
        %4436 = vmatpush1.xpose.msra.mxu0 0.0
        %4437 = vmatprep.subr.mxu0 0.0
        %4438 = vmatpush1.xpose.msra.mxu0 0.0
        %4439 = vmatprep.subr.mxu0 0.0
        %4440 = vmatpush1.xpose.msra.mxu0 0.0
        %4441 = vmatprep.subr.mxu0 0.0
        %4442 = vmatpush1.xpose.msra.mxu0 0.0
        %4443 = vmatprep.subr.mxu0 0.0
        %4444 = vmatpush1.xpose.msra.mxu0 0.0
        %4445 = vmatprep.subr.mxu0 0.0
        %4446 = vmatpush1.xpose.msra.mxu0 0.0
        %4447 = vmatprep.subr.mxu0 0.0
        %4448 = vmatpush1.xpose.msra.mxu0 0.0
        %4449 = vmatprep.subr.mxu0 0.0
        %4450 = vmatpush1.xpose.msra.mxu0 0.0
        %4451 = vmatprep.subr.mxu0 0.0
        %4452 = vmatpush1.xpose.msra.mxu0 0.0
        %4453 = vmatprep.subr.mxu0 0.0
        %4454 = vmatpush1.xpose.msra.mxu0 0.0
        %4455 = vmatprep.subr.mxu0 0.0
        %4456 = vmatpush1.xpose.msra.mxu0 0.0
        %4457 = vmatprep.subr.mxu0 0.0
        %4458 = vmatpush1.xpose.msra.mxu0 0.0
        %4459 = vmatprep.subr.mxu0 0.0
        %4460 = vmatpush1.xpose.msra.mxu0 0.0
        %4461 = vmatprep.subr.mxu0 0.0
        %4462 = vmatpush1.xpose.msra.mxu0 0.0
        %4463 = vmatprep.subr.mxu0 0.0
        %4464 = vmatpush1.xpose.msra.mxu0 0.0
        %4465 = vmatprep.subr.mxu0 0.0
        %4466 = vmatpush1.xpose.msra.mxu0 0.0
        %4467 = vmatprep.subr.mxu0 0.0
        %4468 = vmatpush1.xpose.msra.mxu0 0.0
        %4469 = vmatprep.subr.mxu0 0.0
        %4470 = vmatpush1.xpose.msra.mxu0 0.0
        %4471 = vmatprep.subr.mxu0 0.0
        %4472 = vmatpush1.xpose.msra.mxu0 0.0
        %4473 = vmatprep.subr.mxu0 0.0
        %4474 = vmatpush1.xpose.msra.mxu0 0.0
        %4475 = vmatprep.subr.mxu0 0.0
        %4476 = vmatpush1.xpose.msra.mxu0 0.0
        %4477 = vmatprep.subr.mxu0 0.0
        %4478 = vmatpush1.xpose.msra.mxu0 0.0
        %4479 = vmatprep.subr.mxu0 0.0
        %4480 = vmatpush1.xpose.msra.mxu0 0.0
        %4481 = vmatprep.subr.mxu0 0.0
        %4482 = vmatpush1.xpose.msra.mxu0 0.0
        %4483 = vmatprep.subr.mxu0 0.0
        %4484 = vmatpush1.xpose.msra.mxu0 0.0
        %4485 = vmatprep.subr.mxu0 0.0
        %4486 = vmatpush1.xpose.msra.mxu0 0.0
        %4487 = vmatprep.subr.mxu0 0.0
        %4488 = vmatpush1.xpose.msra.mxu0 0.0
        %4489 = vmatprep.subr.mxu0 0.0
        %4490 = vmatpush1.xpose.msra.mxu0 0.0
        %4491 = vmatprep.mubr.f32.mxu0 0.0
        %v4492 = vand.u32 %v4048, 4294901760
        %4493 = vmatmul.mubr.f32.gmra.mrb[0].mxu0 %v4492
        %v4494 = vpop.f32.mrb[0].mxu0
        %v4495 = vadd.f32 %v4423, %v4494
        %v4496 = vpop.f32.mrb[0].mxu0
        %4497 = vdwg.mxu0
        %v4498 = vsel %vm1291, %v4495, -inf
        %4499 = vmax.xlane.f32.xlu0 %v4498
        %v4500 = vpop.xlane.xlu0 %4499
        %v4501 = vsub.f32 %v4495, %v4500
        %v4502 = vmul.f32 %v4501, 1.442695
        %v4503 = vpow.pop %v4502
        %v4504 = vsel %vm1291, %v4503, 0.0
        %4505 = vadd.xlane.f32.xlu0 %v4504
        %v4506 = vpop.xlane.xlu0 %4505
        %v4507 = vrcp.pop %v4506
        %v4508 = vmul.f32 1.0, %v4507
        %v4509 = vmul.f32 %v4503, %v4508
        %4510 = vrot.lane.b32.xlu0 %v1287, 72
        %v4511 = vpop.permute.xlu0 %4510
        %v4514 = vsel %vm1291, %v4509, 0
        %4516 = vmatprep.subr.mxu0 0.0
        %v4517 = vand.u32 %v4511, 4294901760
        %4518 = vmatpush1.msra.mxu0 %v4517
        %4519 = vmatprep.subr.mxu0 0.0
        %4520 = vmatpush1.msra.mxu0 0.0
        %4521 = vmatprep.subr.mxu0 0.0
        %4522 = vmatpush1.msra.mxu0 0.0
        %4523 = vmatprep.subr.mxu0 0.0
        %4524 = vmatpush1.msra.mxu0 0.0
        %4525 = vmatprep.subr.mxu0 0.0
        %4526 = vmatpush1.msra.mxu0 0.0
        %4527 = vmatprep.subr.mxu0 0.0
        %4528 = vmatpush1.msra.mxu0 0.0
        %4529 = vmatprep.subr.mxu0 0.0
        %4530 = vmatpush1.msra.mxu0 0.0
        %4531 = vmatprep.subr.mxu0 0.0
        %4532 = vmatpush1.msra.mxu0 0.0
        %4533 = vmatprep.subr.mxu0 0.0
        %4534 = vmatpush1.msra.mxu0 0.0
        %4535 = vmatprep.subr.mxu0 0.0
        %4536 = vmatpush1.msra.mxu0 0.0
        %4537 = vmatprep.subr.mxu0 0.0
        %4538 = vmatpush1.msra.mxu0 0.0
        %4539 = vmatprep.subr.mxu0 0.0
        %4540 = vmatpush1.msra.mxu0 0.0
        %4541 = vmatprep.subr.mxu0 0.0
        %4542 = vmatpush1.msra.mxu0 0.0
        %4543 = vmatprep.subr.mxu0 0.0
        %4544 = vmatpush1.msra.mxu0 0.0
        %4545 = vmatprep.subr.mxu0 0.0
        %4546 = vmatpush1.msra.mxu0 0.0
        %4547 = vmatprep.subr.mxu0 0.0
        %4548 = vmatpush1.msra.mxu0 0.0
        %4549 = vmatprep.subr.mxu0 0.0
        %4550 = vmatpush1.msra.mxu0 0.0
        %4551 = vmatprep.subr.mxu0 0.0
        %4552 = vmatpush1.msra.mxu0 0.0
        %4553 = vmatprep.subr.mxu0 0.0
        %4554 = vmatpush1.msra.mxu0 0.0
        %4555 = vmatprep.subr.mxu0 0.0
        %4556 = vmatpush1.msra.mxu0 0.0
        %4557 = vmatprep.subr.mxu0 0.0
        %4558 = vmatpush1.msra.mxu0 0.0
        %4559 = vmatprep.subr.mxu0 0.0
        %4560 = vmatpush1.msra.mxu0 0.0
        %4561 = vmatprep.subr.mxu0 0.0
        %4562 = vmatpush1.msra.mxu0 0.0
        %4563 = vmatprep.subr.mxu0 0.0
        %4564 = vmatpush1.msra.mxu0 0.0
        %4565 = vmatprep.subr.mxu0 0.0
        %4566 = vmatpush1.msra.mxu0 0.0
        %4567 = vmatprep.subr.mxu0 0.0
        %4568 = vmatpush1.msra.mxu0 0.0
        %4569 = vmatprep.subr.mxu0 0.0
        %4570 = vmatpush1.msra.mxu0 0.0
        %4571 = vmatprep.subr.mxu0 0.0
        %4572 = vmatpush1.msra.mxu0 0.0
        %4573 = vmatprep.subr.mxu0 0.0
        %4574 = vmatpush1.msra.mxu0 0.0
        %4575 = vmatprep.subr.mxu0 0.0
        %4576 = vmatpush1.msra.mxu0 0.0
        %4577 = vmatprep.subr.mxu0 0.0
        %4578 = vmatpush1.msra.mxu0 0.0
        %4579 = vmatprep.subr.mxu0 0.0
        %4580 = vmatpush1.msra.mxu0 0.0
        %4581 = vmatprep.mubr.f32.mxu0 0.0
        %v4582 = vand.u32 %v4514, 4294901760
        %v4583 = vsub.f32 %v4514, %v4582
        %v4584 = vand.u32 %v4583, 4294901760
        %v4585 = vsub.f32 %v4583, %v4584
        %v4586 = vand.u32 %v4585, 4294901760
        %4587 = vmatmul.mubr.f32.gmra.mrb[0].mxu0 %v4586
        %v4588 = vpop.f32.mrb[0].mxu0
        %v4589 = vadd.f32 0.0, %v4588
        %v4590 = vpop.f32.mrb[0].mxu0
        %4591 = vdwg.mxu0
        %4592 = vmatprep.subr.mxu0 0.0
        %v4593 = vand.u32 %v4511, 4294901760
        %v4594 = vsub.f32 %v4511, %v4593
        %v4595 = vand.u32 %v4594, 4294901760
        %v4596 = vsub.f32 %v4594, %v4595
        %v4597 = vand.u32 %v4596, 4294901760
        %4598 = vmatpush1.msra.mxu0 %v4597
        %4599 = vmatprep.subr.mxu0 0.0
        %4600 = vmatpush1.msra.mxu0 0.0
        %4601 = vmatprep.subr.mxu0 0.0
        %4602 = vmatpush1.msra.mxu0 0.0
        %4603 = vmatprep.subr.mxu0 0.0
        %4604 = vmatpush1.msra.mxu0 0.0
        %4605 = vmatprep.subr.mxu0 0.0
        %4606 = vmatpush1.msra.mxu0 0.0
        %4607 = vmatprep.subr.mxu0 0.0
        %4608 = vmatpush1.msra.mxu0 0.0
        %4609 = vmatprep.subr.mxu0 0.0
        %4610 = vmatpush1.msra.mxu0 0.0
        %4611 = vmatprep.subr.mxu0 0.0
        %4612 = vmatpush1.msra.mxu0 0.0
        %4613 = vmatprep.subr.mxu0 0.0
        %4614 = vmatpush1.msra.mxu0 0.0
        %4615 = vmatprep.subr.mxu0 0.0
        %4616 = vmatpush1.msra.mxu0 0.0
        %4617 = vmatprep.subr.mxu0 0.0
        %4618 = vmatpush1.msra.mxu0 0.0
        %4619 = vmatprep.subr.mxu0 0.0
        %4620 = vmatpush1.msra.mxu0 0.0
        %4621 = vmatprep.subr.mxu0 0.0
        %4622 = vmatpush1.msra.mxu0 0.0
        %4623 = vmatprep.subr.mxu0 0.0
        %4624 = vmatpush1.msra.mxu0 0.0
        %4625 = vmatprep.subr.mxu0 0.0
        %4626 = vmatpush1.msra.mxu0 0.0
        %4627 = vmatprep.subr.mxu0 0.0
        %4628 = vmatpush1.msra.mxu0 0.0
        %4629 = vmatprep.subr.mxu0 0.0
        %4630 = vmatpush1.msra.mxu0 0.0
        %4631 = vmatprep.subr.mxu0 0.0
        %4632 = vmatpush1.msra.mxu0 0.0
        %4633 = vmatprep.subr.mxu0 0.0
        %4634 = vmatpush1.msra.mxu0 0.0
        %4635 = vmatprep.subr.mxu0 0.0
        %4636 = vmatpush1.msra.mxu0 0.0
        %4637 = vmatprep.subr.mxu0 0.0
        %4638 = vmatpush1.msra.mxu0 0.0
        %4639 = vmatprep.subr.mxu0 0.0
        %4640 = vmatpush1.msra.mxu0 0.0
        %4641 = vmatprep.subr.mxu0 0.0
        %4642 = vmatpush1.msra.mxu0 0.0
        %4643 = vmatprep.subr.mxu0 0.0
        %4644 = vmatpush1.msra.mxu0 0.0
        %4645 = vmatprep.subr.mxu0 0.0
        %4646 = vmatpush1.msra.mxu0 0.0
        %4647 = vmatprep.subr.mxu0 0.0
        %4648 = vmatpush1.msra.mxu0 0.0
        %4649 = vmatprep.subr.mxu0 0.0
        %4650 = vmatpush1.msra.mxu0 0.0
        %4651 = vmatprep.subr.mxu0 0.0
        %4652 = vmatpush1.msra.mxu0 0.0
        %4653 = vmatprep.subr.mxu0 0.0
        %4654 = vmatpush1.msra.mxu0 0.0
        %4655 = vmatprep.subr.mxu0 0.0
        %4656 = vmatpush1.msra.mxu0 0.0
        %4657 = vmatprep.subr.mxu0 0.0
        %4658 = vmatpush1.msra.mxu0 0.0
        %4659 = vmatprep.subr.mxu0 0.0
        %4660 = vmatpush1.msra.mxu0 0.0
        %4661 = vmatprep.mubr.f32.mxu0 0.0
        %v4662 = vand.u32 %v4514, 4294901760
        %4663 = vmatmul.mubr.f32.gmra.mrb[0].mxu0 %v4662
        %v4664 = vpop.f32.mrb[0].mxu0
        %v4665 = vadd.f32 %v4589, %v4664
        %v4666 = vpop.f32.mrb[0].mxu0
        %4667 = vdwg.mxu0
        %4668 = vmatprep.subr.mxu0 0.0
        %v4669 = vand.u32 %v4511, 4294901760
        %v4670 = vsub.f32 %v4511, %v4669
        %4671 = vmatpush1.msra.mxu0 %v4670
        %4672 = vmatprep.subr.mxu0 0.0
        %4673 = vmatpush1.msra.mxu0 0.0
        %4674 = vmatprep.subr.mxu0 0.0
        %4675 = vmatpush1.msra.mxu0 0.0
        %4676 = vmatprep.subr.mxu0 0.0
        %4677 = vmatpush1.msra.mxu0 0.0
        %4678 = vmatprep.subr.mxu0 0.0
        %4679 = vmatpush1.msra.mxu0 0.0
        %4680 = vmatprep.subr.mxu0 0.0
        %4681 = vmatpush1.msra.mxu0 0.0
        %4682 = vmatprep.subr.mxu0 0.0
        %4683 = vmatpush1.msra.mxu0 0.0
        %4684 = vmatprep.subr.mxu0 0.0
        %4685 = vmatpush1.msra.mxu0 0.0
        %4686 = vmatprep.subr.mxu0 0.0
        %4687 = vmatpush1.msra.mxu0 0.0
        %4688 = vmatprep.subr.mxu0 0.0
        %4689 = vmatpush1.msra.mxu0 0.0
        %4690 = vmatprep.subr.mxu0 0.0
        %4691 = vmatpush1.msra.mxu0 0.0
        %4692 = vmatprep.subr.mxu0 0.0
        %4693 = vmatpush1.msra.mxu0 0.0
        %4694 = vmatprep.subr.mxu0 0.0
        %4695 = vmatpush1.msra.mxu0 0.0
        %4696 = vmatprep.subr.mxu0 0.0
        %4697 = vmatpush1.msra.mxu0 0.0
        %4698 = vmatprep.subr.mxu0 0.0
        %4699 = vmatpush1.msra.mxu0 0.0
        %4700 = vmatprep.subr.mxu0 0.0
        %4701 = vmatpush1.msra.mxu0 0.0
        %4702 = vmatprep.subr.mxu0 0.0
        %4703 = vmatpush1.msra.mxu0 0.0
        %4704 = vmatprep.subr.mxu0 0.0
        %4705 = vmatpush1.msra.mxu0 0.0
        %4706 = vmatprep.subr.mxu0 0.0
        %4707 = vmatpush1.msra.mxu0 0.0
        %4708 = vmatprep.subr.mxu0 0.0
        %4709 = vmatpush1.msra.mxu0 0.0
        %4710 = vmatprep.subr.mxu0 0.0
        %4711 = vmatpush1.msra.mxu0 0.0
        %4712 = vmatprep.subr.mxu0 0.0
        %4713 = vmatpush1.msra.mxu0 0.0
        %4714 = vmatprep.subr.mxu0 0.0
        %4715 = vmatpush1.msra.mxu0 0.0
        %4716 = vmatprep.subr.mxu0 0.0
        %4717 = vmatpush1.msra.mxu0 0.0
        %4718 = vmatprep.subr.mxu0 0.0
        %4719 = vmatpush1.msra.mxu0 0.0
        %4720 = vmatprep.subr.mxu0 0.0
        %4721 = vmatpush1.msra.mxu0 0.0
        %4722 = vmatprep.subr.mxu0 0.0
        %4723 = vmatpush1.msra.mxu0 0.0
        %4724 = vmatprep.subr.mxu0 0.0
        %4725 = vmatpush1.msra.mxu0 0.0
        %4726 = vmatprep.subr.mxu0 0.0
        %4727 = vmatpush1.msra.mxu0 0.0
        %4728 = vmatprep.subr.mxu0 0.0
        %4729 = vmatpush1.msra.mxu0 0.0
        %4730 = vmatprep.subr.mxu0 0.0
        %4731 = vmatpush1.msra.mxu0 0.0
        %4732 = vmatprep.subr.mxu0 0.0
        %4733 = vmatpush1.msra.mxu0 0.0
        %4734 = vmatprep.mubr.f32.mxu0 0.0
        %v4735 = vand.u32 %v4514, 4294901760
        %v4736 = vsub.f32 %v4514, %v4735
        %4737 = vmatmul.mubr.f32.gmra.mrb[0].mxu0 %v4736
        %v4738 = vpop.f32.mrb[0].mxu0
        %v4739 = vadd.f32 %v4665, %v4738
        %v4740 = vpop.f32.mrb[0].mxu0
        %4741 = vdwg.mxu0
        %4742 = vmatprep.subr.mxu0 0.0
        %v4743 = vand.u32 %v4511, 4294901760
        %4744 = vmatpush1.msra.mxu0 %v4743
        %4745 = vmatprep.subr.mxu0 0.0
        %4746 = vmatpush1.msra.mxu0 0.0
        %4747 = vmatprep.subr.mxu0 0.0
        %4748 = vmatpush1.msra.mxu0 0.0
        %4749 = vmatprep.subr.mxu0 0.0
        %4750 = vmatpush1.msra.mxu0 0.0
        %4751 = vmatprep.subr.mxu0 0.0
        %4752 = vmatpush1.msra.mxu0 0.0
        %4753 = vmatprep.subr.mxu0 0.0
        %4754 = vmatpush1.msra.mxu0 0.0
        %4755 = vmatprep.subr.mxu0 0.0
        %4756 = vmatpush1.msra.mxu0 0.0
        %4757 = vmatprep.subr.mxu0 0.0
        %4758 = vmatpush1.msra.mxu0 0.0
        %4759 = vmatprep.subr.mxu0 0.0
        %4760 = vmatpush1.msra.mxu0 0.0
        %4761 = vmatprep.subr.mxu0 0.0
        %4762 = vmatpush1.msra.mxu0 0.0
        %4763 = vmatprep.subr.mxu0 0.0
        %4764 = vmatpush1.msra.mxu0 0.0
        %4765 = vmatprep.subr.mxu0 0.0
        %4766 = vmatpush1.msra.mxu0 0.0
        %4767 = vmatprep.subr.mxu0 0.0
        %4768 = vmatpush1.msra.mxu0 0.0
        %4769 = vmatprep.subr.mxu0 0.0
        %4770 = vmatpush1.msra.mxu0 0.0
        %4771 = vmatprep.subr.mxu0 0.0
        %4772 = vmatpush1.msra.mxu0 0.0
        %4773 = vmatprep.subr.mxu0 0.0
        %4774 = vmatpush1.msra.mxu0 0.0
        %4775 = vmatprep.subr.mxu0 0.0
        %4776 = vmatpush1.msra.mxu0 0.0
        %4777 = vmatprep.subr.mxu0 0.0
        %4778 = vmatpush1.msra.mxu0 0.0
        %4779 = vmatprep.subr.mxu0 0.0
        %4780 = vmatpush1.msra.mxu0 0.0
        %4781 = vmatprep.subr.mxu0 0.0
        %4782 = vmatpush1.msra.mxu0 0.0
        %4783 = vmatprep.subr.mxu0 0.0
        %4784 = vmatpush1.msra.mxu0 0.0
        %4785 = vmatprep.subr.mxu0 0.0
        %4786 = vmatpush1.msra.mxu0 0.0
        %4787 = vmatprep.subr.mxu0 0.0
        %4788 = vmatpush1.msra.mxu0 0.0
        %4789 = vmatprep.subr.mxu0 0.0
        %4790 = vmatpush1.msra.mxu0 0.0
        %4791 = vmatprep.subr.mxu0 0.0
        %4792 = vmatpush1.msra.mxu0 0.0
        %4793 = vmatprep.subr.mxu0 0.0
        %4794 = vmatpush1.msra.mxu0 0.0
        %4795 = vmatprep.subr.mxu0 0.0
        %4796 = vmatpush1.msra.mxu0 0.0
        %4797 = vmatprep.subr.mxu0 0.0
        %4798 = vmatpush1.msra.mxu0 0.0
        %4799 = vmatprep.subr.mxu0 0.0
        %4800 = vmatpush1.msra.mxu0 0.0
        %4801 = vmatprep.subr.mxu0 0.0
        %4802 = vmatpush1.msra.mxu0 0.0
        %4803 = vmatprep.subr.mxu0 0.0
        %4804 = vmatpush1.msra.mxu0 0.0
        %4805 = vmatprep.subr.mxu0 0.0
        %4806 = vmatpush1.msra.mxu0 0.0
        %4807 = vmatprep.mubr.f32.mxu0 0.0
        %v4808 = vand.u32 %v4514, 4294901760
        %v4809 = vsub.f32 %v4514, %v4808
        %v4810 = vand.u32 %v4809, 4294901760
        %4811 = vmatmul.mubr.f32.gmra.mrb[0].mxu0 %v4810
        %v4812 = vpop.f32.mrb[0].mxu0
        %v4813 = vadd.f32 %v4739, %v4812
        %v4814 = vpop.f32.mrb[0].mxu0
        %4815 = vdwg.mxu0
        %4816 = vmatprep.subr.mxu0 0.0
        %v4817 = vand.u32 %v4511, 4294901760
        %v4818 = vsub.f32 %v4511, %v4817
        %v4819 = vand.u32 %v4818, 4294901760
        %4820 = vmatpush1.msra.mxu0 %v4819
        %4821 = vmatprep.subr.mxu0 0.0
        %4822 = vmatpush1.msra.mxu0 0.0
        %4823 = vmatprep.subr.mxu0 0.0
        %4824 = vmatpush1.msra.mxu0 0.0
        %4825 = vmatprep.subr.mxu0 0.0
        %4826 = vmatpush1.msra.mxu0 0.0
        %4827 = vmatprep.subr.mxu0 0.0
        %4828 = vmatpush1.msra.mxu0 0.0
        %4829 = vmatprep.subr.mxu0 0.0
        %4830 = vmatpush1.msra.mxu0 0.0
        %4831 = vmatprep.subr.mxu0 0.0
        %4832 = vmatpush1.msra.mxu0 0.0
        %4833 = vmatprep.subr.mxu0 0.0
        %4834 = vmatpush1.msra.mxu0 0.0
        %4835 = vmatprep.subr.mxu0 0.0
        %4836 = vmatpush1.msra.mxu0 0.0
        %4837 = vmatprep.subr.mxu0 0.0
        %4838 = vmatpush1.msra.mxu0 0.0
        %4839 = vmatprep.subr.mxu0 0.0
        %4840 = vmatpush1.msra.mxu0 0.0
        %4841 = vmatprep.subr.mxu0 0.0
        %4842 = vmatpush1.msra.mxu0 0.0
        %4843 = vmatprep.subr.mxu0 0.0
        %4844 = vmatpush1.msra.mxu0 0.0
        %4845 = vmatprep.subr.mxu0 0.0
        %4846 = vmatpush1.msra.mxu0 0.0
        %4847 = vmatprep.subr.mxu0 0.0
        %4848 = vmatpush1.msra.mxu0 0.0
        %4849 = vmatprep.subr.mxu0 0.0
        %4850 = vmatpush1.msra.mxu0 0.0
        %4851 = vmatprep.subr.mxu0 0.0
        %4852 = vmatpush1.msra.mxu0 0.0
        %4853 = vmatprep.subr.mxu0 0.0
        %4854 = vmatpush1.msra.mxu0 0.0
        %4855 = vmatprep.subr.mxu0 0.0
        %4856 = vmatpush1.msra.mxu0 0.0
        %4857 = vmatprep.subr.mxu0 0.0
        %4858 = vmatpush1.msra.mxu0 0.0
        %4859 = vmatprep.subr.mxu0 0.0
        %4860 = vmatpush1.msra.mxu0 0.0
        %4861 = vmatprep.subr.mxu0 0.0
        %4862 = vmatpush1.msra.mxu0 0.0
        %4863 = vmatprep.subr.mxu0 0.0
        %4864 = vmatpush1.msra.mxu0 0.0
        %4865 = vmatprep.subr.mxu0 0.0
        %4866 = vmatpush1.msra.mxu0 0.0
        %4867 = vmatprep.subr.mxu0 0.0
        %4868 = vmatpush1.msra.mxu0 0.0
        %4869 = vmatprep.subr.mxu0 0.0
        %4870 = vmatpush1.msra.mxu0 0.0
        %4871 = vmatprep.subr.mxu0 0.0
        %4872 = vmatpush1.msra.mxu0 0.0
        %4873 = vmatprep.subr.mxu0 0.0
        %4874 = vmatpush1.msra.mxu0 0.0
        %4875 = vmatprep.subr.mxu0 0.0
        %4876 = vmatpush1.msra.mxu0 0.0
        %4877 = vmatprep.subr.mxu0 0.0
        %4878 = vmatpush1.msra.mxu0 0.0
        %4879 = vmatprep.subr.mxu0 0.0
        %4880 = vmatpush1.msra.mxu0 0.0
        %4881 = vmatprep.subr.mxu0 0.0
        %4882 = vmatpush1.msra.mxu0 0.0
        %4883 = vmatprep.mubr.f32.mxu0 0.0
        %v4884 = vand.u32 %v4514, 4294901760
        %4885 = vmatmul.mubr.f32.gmra.mrb[0].mxu0 %v4884
        %v4886 = vpop.f32.mrb[0].mxu0
        %v4887 = vadd.f32 %v4813, %v4886
        %v4888 = vpop.f32.mrb[0].mxu0
        %4889 = vdwg.mxu0
        %4890 = vmatprep.subr.mxu0 0.0
        %v4891 = vand.u32 %v4511, 4294901760
        %4892 = vmatpush1.msra.mxu0 %v4891
        %4893 = vmatprep.subr.mxu0 0.0
        %4894 = vmatpush1.msra.mxu0 0.0
        %4895 = vmatprep.subr.mxu0 0.0
        %4896 = vmatpush1.msra.mxu0 0.0
        %4897 = vmatprep.subr.mxu0 0.0
        %4898 = vmatpush1.msra.mxu0 0.0
        %4899 = vmatprep.subr.mxu0 0.0
        %4900 = vmatpush1.msra.mxu0 0.0
        %4901 = vmatprep.subr.mxu0 0.0
        %4902 = vmatpush1.msra.mxu0 0.0
        %4903 = vmatprep.subr.mxu0 0.0
        %4904 = vmatpush1.msra.mxu0 0.0
        %4905 = vmatprep.subr.mxu0 0.0
        %4906 = vmatpush1.msra.mxu0 0.0
        %4907 = vmatprep.subr.mxu0 0.0
        %4908 = vmatpush1.msra.mxu0 0.0
        %4909 = vmatprep.subr.mxu0 0.0
        %4910 = vmatpush1.msra.mxu0 0.0
        %4911 = vmatprep.subr.mxu0 0.0
        %4912 = vmatpush1.msra.mxu0 0.0
        %4913 = vmatprep.subr.mxu0 0.0
        %4914 = vmatpush1.msra.mxu0 0.0
        %4915 = vmatprep.subr.mxu0 0.0
        %4916 = vmatpush1.msra.mxu0 0.0
        %4917 = vmatprep.subr.mxu0 0.0
        %4918 = vmatpush1.msra.mxu0 0.0
        %4919 = vmatprep.subr.mxu0 0.0
        %4920 = vmatpush1.msra.mxu0 0.0
        %4921 = vmatprep.subr.mxu0 0.0
        %4922 = vmatpush1.msra.mxu0 0.0
        %4923 = vmatprep.subr.mxu0 0.0
        %4924 = vmatpush1.msra.mxu0 0.0
        %4925 = vmatprep.subr.mxu0 0.0
        %4926 = vmatpush1.msra.mxu0 0.0
        %4927 = vmatprep.subr.mxu0 0.0
        %4928 = vmatpush1.msra.mxu0 0.0
        %4929 = vmatprep.subr.mxu0 0.0
        %4930 = vmatpush1.msra.mxu0 0.0
        %4931 = vmatprep.subr.mxu0 0.0
        %4932 = vmatpush1.msra.mxu0 0.0
        %4933 = vmatprep.subr.mxu0 0.0
        %4934 = vmatpush1.msra.mxu0 0.0
        %4935 = vmatprep.subr.mxu0 0.0
        %4936 = vmatpush1.msra.mxu0 0.0
        %4937 = vmatprep.subr.mxu0 0.0
        %4938 = vmatpush1.msra.mxu0 0.0
        %4939 = vmatprep.subr.mxu0 0.0
        %4940 = vmatpush1.msra.mxu0 0.0
        %4941 = vmatprep.subr.mxu0 0.0
        %4942 = vmatpush1.msra.mxu0 0.0
        %4943 = vmatprep.subr.mxu0 0.0
        %4944 = vmatpush1.msra.mxu0 0.0
        %4945 = vmatprep.subr.mxu0 0.0
        %4946 = vmatpush1.msra.mxu0 0.0
        %4947 = vmatprep.subr.mxu0 0.0
        %4948 = vmatpush1.msra.mxu0 0.0
        %4949 = vmatprep.subr.mxu0 0.0
        %4950 = vmatpush1.msra.mxu0 0.0
        %4951 = vmatprep.subr.mxu0 0.0
        %4952 = vmatpush1.msra.mxu0 0.0
        %4953 = vmatprep.subr.mxu0 0.0
        %4954 = vmatpush1.msra.mxu0 0.0
        %4955 = vmatprep.mubr.f32.mxu0 0.0
        %v4956 = vand.u32 %v4514, 4294901760
        %4957 = vmatmul.mubr.f32.gmra.mrb[0].mxu0 %v4956
        %v4958 = vpop.f32.mrb[0].mxu0
        %v4959 = vadd.f32 %v4887, %v4958
        %v4960 = vpop.f32.mrb[0].mxu0
        %4961 = vdwg.mxu0
        %4963 = vrot.lane.b32.xlu0 %v3123, 8
        %v4964 = vpop.permute.xlu0 %4963
        %4967 = vrot.lane.b32.xlu0 %v4041, 16
        %v4968 = vpop.permute.xlu0 %4967
        %4971 = vrot.lane.b32.xlu0 %v4959, 24
        %v4972 = vpop.permute.xlu0 %4971
        %v4974 = vsel %vm1291, %v2205, %v4964
        %vm4975 = vcmask 130048
        %v4976 = vsel %vm4975, %v4974, %v4968
        %vm4977 = vcmask 195584
        %v4978 = vsel %vm4977, %v4976, %v4972
        %4979 = vst.msk [vmem:[%s280] sm:$0xff] %vm294, %v4978
        %s4980 = sand.u32 %s142, 1
        %s4981 = scalar_lea.sflag [#allocation4], %s4980
        %s4982 = sand.u32 %s142, 1
        %s4983 = smul.addr %s4982, 8
        %s4984 = scalar_lea.vmem [#allocation8], %s4983
        // Predicated region
        $region49: #{tpu_custom_call.1} parent=35 // pred_check
          %p4985 = pneg %p152
        $region50: #{tpu_custom_call.1} parent=35 // pred_check_branch
          %4987 = sbr.rel (%p4985) target = $region52
        $region51: #{tpu_custom_call.1} parent=35 // pred_region
          %s4989 = ssub.s32 128, 128
          %4990 = vsyncadd %s4981, %s4989
          %s4991 = sadd.s32 %s29, %s28
          %s4992 = smul.addr %s4991, 128
          %s4993 = scalar_lea.hbm %s4, %s4992
          %s4995 = sshll.u32 %s4984, 4
          %s4996 = int_to_ptr.vmem [resolvable:$true] %s4995
          %4998 = dma.vmem_to_hbm [thread:$0]  %s4996, 128, %s4993, %s4981
        $region52: #{tpu_custom_call.1} parent=35 // pred_fallthru
          _
      $region36: #{tpu_custom_call.1} parent=5 // pred_fallthru
        _
      %p4999 = scmp.le.s32.totalorder 2, %s19
      // Predicated region
      $region53: #{tpu_custom_call.1} parent=5 // pred_check
        %p5000 = pneg %p4999
      $region54: #{tpu_custom_call.1} parent=5 // pred_check_branch
        %5002 = sbr.rel (%p5000) target = $region56
      $region55: #{tpu_custom_call.1} parent=5 // pred_region
        %s5003 = ssub.s32 %s19, 2
        // Predicated region
        $region57: #{tpu_custom_call.1} parent=55 // pred_check
          %p5004 = pneg %p158
        $region58: #{tpu_custom_call.1} parent=55 // pred_check_branch
          %5006 = sbr.rel (%p5004) target = $region60
        $region59: #{tpu_custom_call.1} parent=55 // pred_region
          %s5007 = sand.u32 %s143, 1
          %s5008 = scalar_lea.sflag [#allocation4], %s5007
          %s5009 = sand.u32 %s143, 1
          %s5010 = smul.addr %s5009, 8
          %s5011 = scalar_lea.vmem [#allocation8], %s5010
          %5012 = dma.done %s5008, 128
        $region60: #{tpu_custom_call.1} parent=55 // pred_fallthru
          _
      $region56: #{tpu_custom_call.1} parent=5 // pred_fallthru
        _
    $region6: #{tpu_custom_call.1} parent=1 // loop_footer
      %s23 = sadd.s32 1, %s19
    $region7: #{tpu_custom_call.1} parent=1 // loop_footer_branch
      %18 = sbr.rel target = $region3
    $region8: #{tpu_custom_call.1} parent=1 // loop_exit
      _
    %5013 = vsyncpa [#allocation3], 1
    %s5014 = scalar_lea.sflag [#allocation3], 1
    %5015 = vsyncpa %s5014, 1
    %5016 = vsyncpa [#allocation6], 1
    %s5017 = scalar_lea.sflag [#allocation6], 1
    %5018 = vsyncpa %s5017, 1
    %5019 = vsyncpa [#allocation4], 1
    %s5020 = scalar_lea.sflag [#allocation4], 1
    %5021 = vsyncpa %s5020, 1

</llo_original>
